<compile_context>
chip_gen: v7x
topology: tpu7x:2x2x1
jax: 0.10.0
libtpu: 0.0.40
codegen_flags: <defaults>
</compile_context>

<pallas_src>
import functools

import jax
import jax.numpy as jnp
from jax.experimental import pallas as pl
from jax.experimental.pallas import tpu as pltpu


def fused_decoder_kernel(
    # ---- activations ----
    emb_ref,      # (T*B, E)    embeddings, time-major rows (row = t*B + b)
    tmask_ref,    # (T*B, 1)    1.0 where t < tgt_len[b] else 0.0
    amask_ref,    # (T*B, B*Ss) 1.0 where col batch == row batch AND src valid
    enc_ref,      # (B*Ss, H)   encoder hidden states, batch-major flattened
    h0_ref,       # (2, B, H)   decoder GRU initial hidden (= enc_out)
    # ---- decoder GRU layer 0 (pre-transposed, biases pre-folded) ----
    wih0_ref, whh0_ref, bi0_ref, bn0_ref,     # (E,3H) (H,3H) (1,3H) (1,H)
    # ---- decoder GRU layer 1 ----
    wih1_ref, whh1_ref, bi1_ref, bn1_ref,     # (H,3H) (H,3H) (1,3H) (1,H)
    # ---- Q / K / V linears ----
    wq_ref, bq_ref, wk_ref, bk_ref, wv_ref, bv_ref,   # (H,H)/(1,H) x3
    # ---- final GRU (2H input split into dec / attn halves) ----
    wfd_ref, wfa_ref, wfhh_ref, bif_ref, bnf_ref,     # (H,3H)x3 (1,3H) (1,H)
    # ---- projection ----
    wproj_ref, bproj_ref,                     # (H, Vout) (1, Vout)
    # ---- outputs ----
    prob_ref,     # (T*B, Vout)   time-major; wrapper reshapes to (B, T, Vout)
    attw_ref,     # (T*B, B*Ss)   full masked softmax; wrapper extracts blocks
    # ---- VMEM scratch ----
    gi_ref,       # (T*B, 3H)  hoisted input gates (layer 0, then final GRU)
    dec1_ref,     # (T*B, H)   decoder layer-1 outputs (masked), time-major
    fout_ref,     # (T*B, H)   final-GRU outputs, time-major
    *, pitch_vocab, batch):
  TB = emb_ref.shape[0]
  B = batch
  T = TB // B
  H = dec1_ref.shape[1]
  H2 = 2 * H
  V1 = pitch_vocab
  f32 = jnp.float32

  def gru_step(gi, gh, h, bn):
    # r and z with a single sigmoid over the first 2H columns; b_ih and the
    # r/z chunks of b_hh were folded into gi by the wrapper, only b_hn stays.
    rz = jax.nn.sigmoid(gi[:, :H2] + gh[:, :H2])
    r = rz[:, :H]
    z = rz[:, H:]
    n = jnp.tanh(gi[:, H2:] + r * (gh[:, H2:] + bn))
    return (1.0 - z) * n + z * h

  # ---------------- decoder GRU: layer-0 input gates hoisted ----------------
  gi_ref[...] = jnp.dot(emb_ref[...], wih0_ref[...],
                        preferred_element_type=f32) + bi0_ref[...]

  whh0 = whh0_ref[...]
  whh1 = whh1_ref[...]
  wih1 = wih1_ref[...]
  bn0 = jnp.broadcast_to(bn0_ref[...], (B, H))       # hoisted broadcasts
  bn1 = jnp.broadcast_to(bn1_ref[...], (B, H))
  bi1 = jnp.broadcast_to(bi1_ref[...], (B, 3 * H))

  h0 = h0_ref[0]
  h1 = h0_ref[1]

  def layer1_step(d0_in, h1_c, t_out):
    # per-step input-gate matmul is off layer-1's recurrence chain.
    gi1 = jnp.dot(d0_in, wih1, preferred_element_type=f32) + bi1
    gh1 = jnp.dot(h1_c, whh1, preferred_element_type=f32)
    h1_n = gru_step(gi1, gh1, h1_c, bn1)
    r0 = t_out * B
    # padded rows zeroed (matches pad_packed_sequence).  NOTE: packed-sequence
    # hidden "freezing" past tgt_len is intentionally skipped; it only affects
    # values this module never returns.
    dec1_ref[r0:r0 + B, :] = h1_n * tmask_ref[r0:r0 + B, :]
    return h1_n

  # Interleave the two layers: layer 1 runs one timestep behind layer 0 so two
  # independent matmul/EUP chains are in flight (serial depth ~T+1, not 2T).
  d0_prev = None
  for t in range(T):                                  # T small: fully unrolled
    gi0 = gi_ref[t * B:t * B + B, :]
    gh0 = jnp.dot(h0, whh0, preferred_element_type=f32)
    h0_new = gru_step(gi0, gh0, h0, bn0)
    if t > 0:
      h1 = layer1_step(d0_prev, h1, t - 1)
    h0 = h0_new
    d0_prev = h0
  h1 = layer1_step(d0_prev, h1, T - 1)

  # -------- Q/K/V attention, batched over B via a block-masked score --------
  dec_tm = dec1_ref[...]                                          # (T*B, H)
  enc = enc_ref[...]                                              # (B*Ss, H)
  q = jnp.dot(dec_tm, wq_ref[...], preferred_element_type=f32) + bq_ref[...]
  k = jnp.dot(enc, wk_ref[...], preferred_element_type=f32) + bk_ref[...]
  v = jnp.dot(enc, wv_ref[...], preferred_element_type=f32) + bv_ref[...]

  # score[t*B+b, b'*Ss+s] = q . k ; amask keeps only b' == b and valid source
  # positions, so each row softmax equals the per-batch masked softmax.
  score = jax.lax.dot_general(q, k, (((1,), (1,)), ((), ())),
                              preferred_element_type=f32)         # (T*B, B*Ss)
  score = jnp.where(amask_ref[...] > 0.0, score, -1e30)           # finite: no NaN
  m = jnp.max(score, axis=-1, keepdims=True)
  e = jnp.exp(score - m)                                          # masked -> 0.0
  attw = e * pl.reciprocal(jnp.sum(e, axis=-1, keepdims=True), approx=True)
  attw_ref[...] = attw
  attn_vec = jnp.dot(attw, v, preferred_element_type=f32)         # (T*B, H)

  # -------- final GRU: ONE batched T-step recurrence, state (B, H) --------
  # cat([dec, attn_vec]) @ W_ih^T == dec@Wd^T + attn@Wa^T, hoisted over all
  # timesteps; kept as a direct sum (v7x MRB accumulates both matmuls).
  gi_ref[...] = (jnp.dot(dec_tm, wfd_ref[...], preferred_element_type=f32)
                 + jnp.dot(attn_vec, wfa_ref[...], preferred_element_type=f32)
                 + bif_ref[...])

  wfhh = wfhh_ref[...]
  bnf = jnp.broadcast_to(bnf_ref[...], (B, H))
  hf = jnp.zeros((B, H), f32)
  for t in range(T):
    gif = gi_ref[t * B:t * B + B, :]
    ghf = jnp.dot(hf, wfhh, preferred_element_type=f32)
    hf = gru_step(gif, ghf, hf, bnf)
    fout_ref[t * B:t * B + B, :] = hf

  # -------- projection + split softmax, hoisted over all (t, b) rows --------
  logit = jnp.dot(fout_ref[...], wproj_ref[...],
                  preferred_element_type=f32) + bproj_ref[...]    # (T*B, Vout)
  lp = logit[:, :V1]
  ld = logit[:, V1:]
  lp = jnp.exp(lp - jnp.max(lp, axis=-1, keepdims=True))
  lp = lp * pl.reciprocal(jnp.sum(lp, axis=-1, keepdims=True), approx=True)
  ld = jnp.exp(ld - jnp.max(ld, axis=-1, keepdims=True))
  ld = ld * pl.reciprocal(jnp.sum(ld, axis=-1, keepdims=True), approx=True)
  prob_ref[:, :V1] = lp
  prob_ref[:, V1:] = ld


def qkv_attn_decoder_more_forward(params, src, tgt, tgt_lens,
                                  enc_hidden_state_by_t, enc_out, vocab_sizes):
  """Forward of QkvAttnDecoderMore (padded tensors + lengths stand in for the
  PackedSequence).  Returns ((prob_padded, target_lens), attention_weight)."""
  B, St, _ = tgt.shape
  Ss = src.shape[1]
  L, _, H = enc_out.shape
  assert L == 2, "fused kernel is specialized for num_layers == 2"
  # reduce_enc only exists/runs when enc_out width != gru_size; with the
  # module's own config (gru_size == hidden_size) that branch is dead.

  # MultiEmbedding lookup.  TODO(synk): the per-feature gather stays as tiny
  # XLA glue; a data-dependent in-kernel gather is not worth it at this size.
  emb = jnp.concatenate(
      [params["emb"][i][tgt[..., i]] for i in range(len(params["emb"]))],
      axis=-1)                                                    # (B, St, E)
  # TODO(synk): PackedDropout(emb_dropout) is identity in eval mode; train-mode
  # dropout is not implemented.
  emb_tm = jnp.transpose(emb, (1, 0, 2)).reshape(St * B, -1)      # row = t*B+b

  tmask = (jnp.arange(St, dtype=jnp.int32)[:, None]
           < tgt_lens.astype(jnp.int32)[None, :]).astype(jnp.float32)
  tmask = tmask.reshape(St * B, 1)

  # TODO(synk): mask uses the pitch feature (src[..., 1] != 0), matching the
  # module only if pad id 0 never occurs as a real pitch token.
  smask = (src[..., 1] != 0).astype(jnp.float32)                  # (B, Ss)
  eye = jnp.eye(B, dtype=jnp.float32)
  amask = eye[:, :, None] * smask[None, :, :]                     # (b, b', s)
  amask = jnp.broadcast_to(amask[None], (St, B, B, Ss)).reshape(St * B, B * Ss)

  enc_flat = enc_hidden_state_by_t.reshape(B * Ss, H)

  (w_ih0, w_hh0, b_ih0, b_hh0), (w_ih1, w_hh1, b_ih1, b_hh1) = params["gru"]
  w_f_ih, w_f_hh, b_f_ih, b_f_hh = params["final_rnn"]

  def fold_bias(b_ih, b_hh):
    # b_ih plus the r/z chunks of b_hh go into the hoisted input gates; only
    # the b_hn chunk remains inside the recurrence.
    bi = b_ih + jnp.concatenate([b_hh[:2 * H], jnp.zeros((H,), b_hh.dtype)])
    return bi.reshape(1, -1), b_hh[2 * H:].reshape(1, -1)

  bi0, bn0 = fold_bias(b_ih0, b_hh0)
  bi1, bn1 = fold_bias(b_ih1, b_hh1)
  bif, bnf = fold_bias(b_f_ih, b_f_hh)

  Vout = params["w_proj"].shape[0]
  V1 = vocab_sizes[1]
  row = lambda x: x.reshape(1, -1)

  # TODO(synk): on v7x a grid=(B,) with dimension_semantics=("parallel",)
  # would put the two batch elements on the two TensorCores; kept grid-less
  # here since v5e/v6e have a single core and B is tiny.
  prob_tm, attw_full = pl.pallas_call(
      functools.partial(fused_decoder_kernel, pitch_vocab=V1, batch=B),
      out_shape=(jax.ShapeDtypeStruct((St * B, Vout), jnp.float32),
                 jax.ShapeDtypeStruct((St * B, B * Ss), jnp.float32)),
      scratch_shapes=[
          pltpu.VMEM((St * B, 3 * H), jnp.float32),   # hoisted input gates
          pltpu.VMEM((St * B, H), jnp.float32),       # decoder layer-1 outputs
          pltpu.VMEM((St * B, H), jnp.float32),       # final-GRU outputs
      ],
  )(emb_tm, tmask, amask, enc_flat, enc_out,
    w_ih0.T, w_hh0.T, bi0, bn0,
    w_ih1.T, w_hh1.T, bi1, bn1,
    params["w_q"].T, row(params["b_q"]),
    params["w_k"].T, row(params["b_k"]),
    params["w_v"].T, row(params["b_v"]),
    w_f_ih[:, :H].T, w_f_ih[:, H:].T, w_f_hh.T, bif, bnf,
    params["w_proj"].T, row(params["b_proj"]))

  # cheap XLA layout fixups (outputs are < 2 KB total)
  prob = prob_tm.reshape(St, B, Vout).transpose(1, 0, 2)          # (B, St, Vout)
  idx = jnp.arange(B)
  attw = attw_full.reshape(St, B, B, Ss)[:, idx, idx, :]          # (St, B, Ss)
  attw = jnp.transpose(attw, (1, 2, 0))                           # (B, Ss, St)
  # TODO(synk): pack_padded_sequence(prob, target_lens) has no Pallas
  # equivalent; the padded prob plus lengths stands in for the PackedSequence.
  return (prob, tgt_lens), attw


# ------------------------- pure-JAX reference ---------------------------- #
def _gru_cell_ref(x, h, w_ih, w_hh, b_ih, b_hh):
  H = h.shape[-1]
  gi = x @ w_ih.T + b_ih
  gh = h @ w_hh.T + b_hh
  r = jax.nn.sigmoid(gi[:, :H] + gh[:, :H])
  z = jax.nn.sigmoid(gi[:, H:2 * H] + gh[:, H:2 * H])
  n = jnp.tanh(gi[:, 2 * H:] + r * gh[:, 2 * H:])
  return (1.0 - z) * n + z * h


def reference_forward(params, src, tgt, tgt_lens, enc_by_t, enc_out,
                      vocab_sizes):
  B, St, _ = tgt.shape
  H = enc_out.shape[-1]
  emb = jnp.concatenate(
      [params["emb"][i][tgt[..., i]] for i in range(len(params["emb"]))], -1)
  (w_ih0, w_hh0, b_ih0, b_hh0), (w_ih1, w_hh1, b_ih1, b_hh1) = params["gru"]
  h0, h1 = enc_out[0], enc_out[1]
  dec = []
  for t in range(St):
    h0 = _gru_cell_ref(emb[:, t], h0, w_ih0, w_hh0, b_ih0, b_hh0)
    h1 = _gru_cell_ref(h0, h1, w_ih1, w_hh1, b_ih1, b_hh1)
    dec.append(h1)
  dec = jnp.stack(dec, axis=1)                                    # (B, St, H)
  tmask = (jnp.arange(St)[None, :] < tgt_lens[:, None]).astype(jnp.float32)
  dec = dec * tmask[..., None]          # pad_packed_sequence zero-pads outputs
  q = dec @ params["w_q"].T + params["b_q"]
  k = enc_by_t @ params["w_k"].T + params["b_k"]
  v = enc_by_t @ params["w_v"].T + params["b_v"]
  score = jnp.einsum("bsh,bth->bst", k, q)                        # (B, Ss, St)
  smask = (src[..., 1] != 0)[:, :, None]
  score = jnp.where(smask, score, -jnp.inf)
  attw = jax.nn.softmax(score, axis=1)
  attn_vec = jnp.einsum("bst,bsh->bth", attw, v)                  # (B, St, H)
  w_f_ih, w_f_hh, b_f_ih, b_f_hh = params["final_rnn"]
  x = jnp.concatenate([dec, attn_vec], axis=-1)
  hf = jnp.zeros((B, H), jnp.float32)
  fout = []
  for t in range(St):
    hf = _gru_cell_ref(x[:, t], hf, w_f_ih, w_f_hh, b_f_ih, b_f_hh)
    fout.append(hf)
  fout = jnp.stack(fout, axis=1)
  logit = fout @ params["w_proj"].T + params["b_proj"]
  V1 = vocab_sizes[1]
  prob = jnp.concatenate([jax.nn.softmax(logit[..., :V1], axis=-1),
                          jax.nn.softmax(logit[..., V1:], axis=-1)], axis=-1)
  return prob, attw


if __name__ == "__main__":
  key = jax.random.PRNGKey(0)

  # module config (small, consistent with QkvAttnDecoderMore.__init__)
  vocab_size_dict = {"offset": 7, "pitch": 10, "duration": 6}
  vocab_sizes = list(vocab_size_dict.values())
  emb_sizes = [8, 8, 8]
  E = sum(emb_sizes)              # param.emb.total_size
  H = 32                          # param.gru.hidden_size (== gru_size)
  L = 2                           # param.gru.num_layers
  B, Ss, St = 2, 12, 8
  Vout = vocab_sizes[1] + vocab_sizes[2]

  keys = iter(jax.random.split(key, 64))

  params = {}
  params["emb"] = [0.1 * jax.random.normal(next(keys), (v, e), jnp.float32)
                   for v, e in zip(vocab_sizes, emb_sizes)]
  gru = []
  for l in range(L):
    in_dim = E if l == 0 else H
    gru.append((
        0.1 * jax.random.normal(next(keys), (3 * H, in_dim), jnp.float32),
        0.1 * jax.random.normal(next(keys), (3 * H, H), jnp.float32),
        0.1 * jax.random.normal(next(keys), (3 * H,), jnp.float32),
        0.1 * jax.random.normal(next(keys), (3 * H,), jnp.float32),
    ))
  params["gru"] = tuple(gru)
  for name in ("q", "k", "v"):
    params[f"w_{name}"] = 0.1 * jax.random.normal(next(keys), (H, H), jnp.float32)
    params[f"b_{name}"] = 0.1 * jax.random.normal(next(keys), (H,), jnp.float32)
  params["final_rnn"] = (
      0.1 * jax.random.normal(next(keys), (3 * H, 2 * H), jnp.float32),
      0.1 * jax.random.normal(next(keys), (3 * H, H), jnp.float32),
      0.1 * jax.random.normal(next(keys), (3 * H,), jnp.float32),
      0.1 * jax.random.normal(next(keys), (3 * H,), jnp.float32),
  )
  params["w_proj"] = 0.1 * jax.random.normal(next(keys), (Vout, H), jnp.float32)
  params["b_proj"] = 0.1 * jax.random.normal(next(keys), (Vout,), jnp.float32)

  # padded token sequences (pad id = 0) + lengths (== PackedSequence repr)
  src_lens = jnp.array([Ss, 9], dtype=jnp.int32)
  tgt_lens = jnp.array([St, 5], dtype=jnp.int32)

  def make_tokens(k, bsz, slen, lens):
    cols = []
    for v in vocab_sizes:
      k, sub = jax.random.split(k)
      cols.append(jax.random.randint(sub, (bsz, slen), 1, v))
    tok = jnp.stack(cols, axis=-1)
    pos = jnp.arange(slen)[None, :, None]
    return jnp.where(pos < lens[:, None, None], tok, 0)

  src = make_tokens(next(keys), B, Ss, src_lens)
  tgt = make_tokens(next(keys), B, St, tgt_lens)

  # encoder hidden states by t (padded positions zero, as pad_packed gives)
  enc_hidden_by_t = jax.random.normal(next(keys), (B, Ss, H), jnp.float32)
  enc_hidden_by_t = enc_hidden_by_t * (
      jnp.arange(Ss)[None, :, None] < src_lens[:, None, None])
  # encoder final hidden (num_layers, B, H) -> decoder GRU initial state
  enc_out = 0.1 * jax.random.normal(next(keys), (L, B, H), jnp.float32)

  (prob, plens), attw = qkv_attn_decoder_more_forward(
      params, src, tgt, tgt_lens, enc_hidden_by_t, enc_out, vocab_sizes)
  jax.block_until_ready((prob, attw))

  assert prob.shape == (B, St, Vout)
  assert attw.shape == (B, Ss, St)
  assert bool(jnp.all(jnp.isfinite(prob)))
  assert bool(jnp.all(jnp.isfinite(attw)))
  # attention softmax over the source axis -> columns sum to 1 (approx recip)
  assert bool(jnp.allclose(jnp.sum(attw, axis=1), 1.0, atol=1e-2))
  # each vocab-chunk softmax sums to 1
  assert bool(jnp.allclose(jnp.sum(prob[..., :vocab_sizes[1]], axis=-1), 1.0,
                           atol=1e-2))
  assert bool(jnp.allclose(jnp.sum(prob[..., vocab_sizes[1]:], axis=-1), 1.0,
                           atol=1e-2))

  # pure-JAX reference comparison
  prob_ref, attw_ref = reference_forward(
      params, src, tgt, tgt_lens, enc_hidden_by_t, enc_out, vocab_sizes)
  assert bool(jnp.allclose(prob, prob_ref, atol=2e-2)), float(
      jnp.max(jnp.abs(prob - prob_ref)))
  assert bool(jnp.allclose(attw, attw_ref, atol=2e-2)), float(
      jnp.max(jnp.abs(attw - attw_ref)))

  print("KERNEL_OK")
</pallas_src>

<mosaic_0001>
module attributes {stable_mosaic.version = 11 : i64} {
  func.func @fused_decoder_kernel(%arg0: memref<16x24xf32, #tpu.memory_space<vmem>>, %arg1: memref<16x1xf32, #tpu.memory_space<vmem>>, %arg2: memref<16x24xf32, #tpu.memory_space<vmem>>, %arg3: memref<24x32xf32, #tpu.memory_space<vmem>>, %arg4: memref<2x2x32xf32, #tpu.memory_space<vmem>>, %arg5: memref<24x96xf32, #tpu.memory_space<vmem>>, %arg6: memref<32x96xf32, #tpu.memory_space<vmem>>, %arg7: memref<1x96xf32, #tpu.memory_space<vmem>>, %arg8: memref<1x32xf32, #tpu.memory_space<vmem>>, %arg9: memref<32x96xf32, #tpu.memory_space<vmem>>, %arg10: memref<32x96xf32, #tpu.memory_space<vmem>>, %arg11: memref<1x96xf32, #tpu.memory_space<vmem>>, %arg12: memref<1x32xf32, #tpu.memory_space<vmem>>, %arg13: memref<32x32xf32, #tpu.memory_space<vmem>>, %arg14: memref<1x32xf32, #tpu.memory_space<vmem>>, %arg15: memref<32x32xf32, #tpu.memory_space<vmem>>, %arg16: memref<1x32xf32, #tpu.memory_space<vmem>>, %arg17: memref<32x32xf32, #tpu.memory_space<vmem>>, %arg18: memref<1x32xf32, #tpu.memory_space<vmem>>, %arg19: memref<32x96xf32, #tpu.memory_space<vmem>>, %arg20: memref<32x96xf32, #tpu.memory_space<vmem>>, %arg21: memref<32x96xf32, #tpu.memory_space<vmem>>, %arg22: memref<1x96xf32, #tpu.memory_space<vmem>>, %arg23: memref<1x32xf32, #tpu.memory_space<vmem>>, %arg24: memref<32x16xf32, #tpu.memory_space<vmem>>, %arg25: memref<1x16xf32, #tpu.memory_space<vmem>>, %arg26: memref<16x16xf32, #tpu.memory_space<vmem>>, %arg27: memref<16x24xf32, #tpu.memory_space<vmem>>, %arg28: memref<16x96xf32, #tpu.memory_space<vmem>>, %arg29: memref<16x32xf32, #tpu.memory_space<vmem>>, %arg30: memref<16x32xf32, #tpu.memory_space<vmem>>) attributes {dimension_semantics = [], scalar_prefetch = 0 : i64, scratch_operands = 3 : i64, tpu.core_type = #tpu.core_type<tc>} {
    %c0 = arith.constant 0 : index
    %c0_0 = arith.constant 0 : index
    %0 = vector.load %arg0[%c0, %c0_0] : memref<16x24xf32, #tpu.memory_space<vmem>>, vector<16x24xf32>
    %c0_1 = arith.constant 0 : index
    %c0_2 = arith.constant 0 : index
    %1 = vector.load %arg5[%c0_1, %c0_2] : memref<24x96xf32, #tpu.memory_space<vmem>>, vector<24x96xf32>
    %cst = arith.constant dense<0.000000e+00> : vector<16x96xf32>
    %2 = tpu.matmul %0, %1, %cst {dimension_numbers = #tpu.dot_dimension_numbers<[1], [0], [0], [1], [0, 0, 1, 1], [], []>} : vector<16x24xf32>, vector<24x96xf32>, vector<16x96xf32> -> vector<16x96xf32>
    %c0_3 = arith.constant 0 : index
    %c0_4 = arith.constant 0 : index
    %3 = vector.load %arg7[%c0_3, %c0_4] : memref<1x96xf32, #tpu.memory_space<vmem>>, vector<1x96xf32>
    %4 = vector.broadcast %3 : vector<1x96xf32> to vector<16x96xf32>
    %5 = arith.addf %2, %4 : vector<16x96xf32>
    %c0_5 = arith.constant 0 : index
    %c0_6 = arith.constant 0 : index
    %6 = vector.load %arg28[%c0_5, %c0_6] : memref<16x96xf32, #tpu.memory_space<vmem>>, vector<16x96xf32>
    tpu.vector_store %arg28[%c0_5, %c0_6], %5 {strides = array<i32>} : memref<16x96xf32, #tpu.memory_space<vmem>>, vector<16x96xf32>,
    %c0_7 = arith.constant 0 : index
    %c0_8 = arith.constant 0 : index
    %7 = vector.load %arg6[%c0_7, %c0_8] : memref<32x96xf32, #tpu.memory_space<vmem>>, vector<32x96xf32>
    %c0_9 = arith.constant 0 : index
    %c0_10 = arith.constant 0 : index
    %8 = vector.load %arg10[%c0_9, %c0_10] : memref<32x96xf32, #tpu.memory_space<vmem>>, vector<32x96xf32>
    %c0_11 = arith.constant 0 : index
    %c0_12 = arith.constant 0 : index
    %9 = vector.load %arg9[%c0_11, %c0_12] : memref<32x96xf32, #tpu.memory_space<vmem>>, vector<32x96xf32>
    %c0_13 = arith.constant 0 : index
    %c0_14 = arith.constant 0 : index
    %10 = vector.load %arg8[%c0_13, %c0_14] : memref<1x32xf32, #tpu.memory_space<vmem>>, vector<1x32xf32>
    %11 = vector.shape_cast %10 : vector<1x32xf32> to vector<1x32xf32>
    %12 = vector.broadcast %11 : vector<1x32xf32> to vector<2x32xf32>
    %c0_15 = arith.constant 0 : index
    %c0_16 = arith.constant 0 : index
    %13 = vector.load %arg12[%c0_15, %c0_16] : memref<1x32xf32, #tpu.memory_space<vmem>>, vector<1x32xf32>
    %14 = vector.shape_cast %13 : vector<1x32xf32> to vector<1x32xf32>
    %15 = vector.broadcast %14 : vector<1x32xf32> to vector<2x32xf32>
    %c0_17 = arith.constant 0 : index
    %c0_18 = arith.constant 0 : index
    %16 = vector.load %arg11[%c0_17, %c0_18] : memref<1x96xf32, #tpu.memory_space<vmem>>, vector<1x96xf32>
    %17 = vector.shape_cast %16 : vector<1x96xf32> to vector<1x96xf32>
    %18 = vector.broadcast %17 : vector<1x96xf32> to vector<2x96xf32>
    %c0_19 = arith.constant 0 : index
    %c0_20 = arith.constant 0 : index
    %c0_21 = arith.constant 0 : index
    %19 = vector.load %arg4[%c0_19, %c0_20, %c0_21] : memref<2x2x32xf32, #tpu.memory_space<vmem>>, vector<1x2x32xf32>
    %20 = vector.shape_cast %19 : vector<1x2x32xf32> to vector<2x32xf32>
    %c1 = arith.constant 1 : index
    %c0_22 = arith.constant 0 : index
    %c0_23 = arith.constant 0 : index
    %21 = vector.load %arg4[%c1, %c0_22, %c0_23] : memref<2x2x32xf32, #tpu.memory_space<vmem>>, vector<1x2x32xf32>
    %22 = vector.shape_cast %21 : vector<1x2x32xf32> to vector<2x32xf32>
    %c0_24 = arith.constant 0 : index
    %c0_25 = arith.constant 0 : index
    %23 = vector.load %arg28[%c0_24, %c0_25] : memref<16x96xf32, #tpu.memory_space<vmem>>, vector<2x96xf32>
    %cst_26 = arith.constant dense<0.000000e+00> : vector<2x96xf32>
    %24 = tpu.matmul %20, %7, %cst_26 {dimension_numbers = #tpu.dot_dimension_numbers<[1], [0], [0], [1], [0, 0, 1, 1], [], []>} : vector<2x32xf32>, vector<32x96xf32>, vector<2x96xf32> -> vector<2x96xf32>
    %25 = vector.extract_strided_slice %23 {offsets = [0, 0], sizes = [2, 64], strides = [1, 1]} : vector<2x96xf32> to vector<2x64xf32>
    %26 = vector.extract_strided_slice %24 {offsets = [0, 0], sizes = [2, 64], strides = [1, 1]} : vector<2x96xf32> to vector<2x64xf32>
    %27 = arith.addf %25, %26 : vector<2x64xf32>
    %28 = arith.negf %27 : vector<2x64xf32>
    %29 = math.exp %28 : vector<2x64xf32>
    %cst_27 = arith.constant 1.000000e+00 : f32
    %30 = vector.broadcast %cst_27 : f32 to vector<2x64xf32>
    %31 = arith.addf %30, %29 : vector<2x64xf32>
    %32 = arith.divf %30, %31 : vector<2x64xf32>
    %33 = vector.extract_strided_slice %32 {offsets = [0, 0], sizes = [2, 32], strides = [1, 1]} : vector<2x64xf32> to vector<2x32xf32>
    %34 = vector.extract_strided_slice %32 {offsets = [0, 32], sizes = [2, 32], strides = [1, 1]} : vector<2x64xf32> to vector<2x32xf32>
    %35 = vector.extract_strided_slice %23 {offsets = [0, 64], sizes = [2, 32], strides = [1, 1]} : vector<2x96xf32> to vector<2x32xf32>
    %36 = vector.extract_strided_slice %24 {offsets = [0, 64], sizes = [2, 32], strides = [1, 1]} : vector<2x96xf32> to vector<2x32xf32>
    %37 = arith.addf %36, %12 : vector<2x32xf32>
    %38 = arith.mulf %33, %37 : vector<2x32xf32>
    %39 = arith.addf %35, %38 : vector<2x32xf32>
    %40 = math.tanh %39 : vector<2x32xf32>
    %cst_28 = arith.constant 1.000000e+00 : f32
    %41 = vector.broadcast %cst_28 : f32 to vector<2x32xf32>
    %42 = arith.subf %41, %34 : vector<2x32xf32>
    %43 = arith.mulf %42, %40 : vector<2x32xf32>
    %44 = arith.mulf %34, %20 : vector<2x32xf32>
    %45 = arith.addf %43, %44 : vector<2x32xf32>
    %c2 = arith.constant 2 : index
    %c0_29 = arith.constant 0 : index
    %46 = vector.load %arg28[%c2, %c0_29] : memref<16x96xf32, #tpu.memory_space<vmem>>, vector<2x96xf32>
    %cst_30 = arith.constant dense<0.000000e+00> : vector<2x96xf32>
    %47 = tpu.matmul %45, %7, %cst_30 {dimension_numbers = #tpu.dot_dimension_numbers<[1], [0], [0], [1], [0, 0, 1, 1], [], []>} : vector<2x32xf32>, vector<32x96xf32>, vector<2x96xf32> -> vector<2x96xf32>
    %48 = vector.extract_strided_slice %46 {offsets = [0, 0], sizes = [2, 64], strides = [1, 1]} : vector<2x96xf32> to vector<2x64xf32>
    %49 = vector.extract_strided_slice %47 {offsets = [0, 0], sizes = [2, 64], strides = [1, 1]} : vector<2x96xf32> to vector<2x64xf32>
    %50 = arith.addf %48, %49 : vector<2x64xf32>
    %51 = arith.negf %50 : vector<2x64xf32>
    %52 = math.exp %51 : vector<2x64xf32>
    %cst_31 = arith.constant 1.000000e+00 : f32
    %53 = vector.broadcast %cst_31 : f32 to vector<2x64xf32>
    %54 = arith.addf %53, %52 : vector<2x64xf32>
    %55 = arith.divf %53, %54 : vector<2x64xf32>
    %56 = vector.extract_strided_slice %55 {offsets = [0, 0], sizes = [2, 32], strides = [1, 1]} : vector<2x64xf32> to vector<2x32xf32>
    %57 = vector.extract_strided_slice %55 {offsets = [0, 32], sizes = [2, 32], strides = [1, 1]} : vector<2x64xf32> to vector<2x32xf32>
    %58 = vector.extract_strided_slice %46 {offsets = [0, 64], sizes = [2, 32], strides = [1, 1]} : vector<2x96xf32> to vector<2x32xf32>
    %59 = vector.extract_strided_slice %47 {offsets = [0, 64], sizes = [2, 32], strides = [1, 1]} : vector<2x96xf32> to vector<2x32xf32>
    %60 = arith.addf %59, %12 : vector<2x32xf32>
    %61 = arith.mulf %56, %60 : vector<2x32xf32>
    %62 = arith.addf %58, %61 : vector<2x32xf32>
    %63 = math.tanh %62 : vector<2x32xf32>
    %cst_32 = arith.constant 1.000000e+00 : f32
    %64 = vector.broadcast %cst_32 : f32 to vector<2x32xf32>
    %65 = arith.subf %64, %57 : vector<2x32xf32>
    %66 = arith.mulf %65, %63 : vector<2x32xf32>
    %67 = arith.mulf %57, %45 : vector<2x32xf32>
    %68 = arith.addf %66, %67 : vector<2x32xf32>
    %cst_33 = arith.constant dense<0.000000e+00> : vector<2x96xf32>
    %69 = tpu.matmul %45, %9, %cst_33 {dimension_numbers = #tpu.dot_dimension_numbers<[1], [0], [0], [1], [0, 0, 1, 1], [], []>} : vector<2x32xf32>, vector<32x96xf32>, vector<2x96xf32> -> vector<2x96xf32>
    %70 = arith.addf %69, %18 : vector<2x96xf32>
    %cst_34 = arith.constant dense<0.000000e+00> : vector<2x96xf32>
    %71 = tpu.matmul %22, %8, %cst_34 {dimension_numbers = #tpu.dot_dimension_numbers<[1], [0], [0], [1], [0, 0, 1, 1], [], []>} : vector<2x32xf32>, vector<32x96xf32>, vector<2x96xf32> -> vector<2x96xf32>
    %72 = vector.extract_strided_slice %70 {offsets = [0, 0], sizes = [2, 64], strides = [1, 1]} : vector<2x96xf32> to vector<2x64xf32>
    %73 = vector.extract_strided_slice %71 {offsets = [0, 0], sizes = [2, 64], strides = [1, 1]} : vector<2x96xf32> to vector<2x64xf32>
    %74 = arith.addf %72, %73 : vector<2x64xf32>
    %75 = arith.negf %74 : vector<2x64xf32>
    %76 = math.exp %75 : vector<2x64xf32>
    %cst_35 = arith.constant 1.000000e+00 : f32
    %77 = vector.broadcast %cst_35 : f32 to vector<2x64xf32>
    %78 = arith.addf %77, %76 : vector<2x64xf32>
    %79 = arith.divf %77, %78 : vector<2x64xf32>
    %80 = vector.extract_strided_slice %79 {offsets = [0, 0], sizes = [2, 32], strides = [1, 1]} : vector<2x64xf32> to vector<2x32xf32>
    %81 = vector.extract_strided_slice %79 {offsets = [0, 32], sizes = [2, 32], strides = [1, 1]} : vector<2x64xf32> to vector<2x32xf32>
    %82 = vector.extract_strided_slice %70 {offsets = [0, 64], sizes = [2, 32], strides = [1, 1]} : vector<2x96xf32> to vector<2x32xf32>
    %83 = vector.extract_strided_slice %71 {offsets = [0, 64], sizes = [2, 32], strides = [1, 1]} : vector<2x96xf32> to vector<2x32xf32>
    %84 = arith.addf %83, %15 : vector<2x32xf32>
    %85 = arith.mulf %80, %84 : vector<2x32xf32>
    %86 = arith.addf %82, %85 : vector<2x32xf32>
    %87 = math.tanh %86 : vector<2x32xf32>
    %cst_36 = arith.constant 1.000000e+00 : f32
    %88 = vector.broadcast %cst_36 : f32 to vector<2x32xf32>
    %89 = arith.subf %88, %81 : vector<2x32xf32>
    %90 = arith.mulf %89, %87 : vector<2x32xf32>
    %91 = arith.mulf %81, %22 : vector<2x32xf32>
    %92 = arith.addf %90, %91 : vector<2x32xf32>
    %c0_37 = arith.constant 0 : index
    %c0_38 = arith.constant 0 : index
    %93 = vector.load %arg1[%c0_37, %c0_38] : memref<16x1xf32, #tpu.memory_space<vmem>>, vector<2x1xf32>
    %94 = vector.broadcast %93 : vector<2x1xf32> to vector<2x32xf32>
    %95 = arith.mulf %92, %94 : vector<2x32xf32>
    %c0_39 = arith.constant 0 : index
    %c0_40 = arith.constant 0 : index
    %96 = vector.load %arg29[%c0_39, %c0_40] : memref<16x32xf32, #tpu.memory_space<vmem>>, vector<2x32xf32>
    tpu.vector_store %arg29[%c0_39, %c0_40], %95 {strides = array<i32>} : memref<16x32xf32, #tpu.memory_space<vmem>>, vector<2x32xf32>,
    %c4 = arith.constant 4 : index
    %c0_41 = arith.constant 0 : index
    %97 = vector.load %arg28[%c4, %c0_41] : memref<16x96xf32, #tpu.memory_space<vmem>>, vector<2x96xf32>
    %cst_42 = arith.constant dense<0.000000e+00> : vector<2x96xf32>
    %98 = tpu.matmul %68, %7, %cst_42 {dimension_numbers = #tpu.dot_dimension_numbers<[1], [0], [0], [1], [0, 0, 1, 1], [], []>} : vector<2x32xf32>, vector<32x96xf32>, vector<2x96xf32> -> vector<2x96xf32>
    %99 = vector.extract_strided_slice %97 {offsets = [0, 0], sizes = [2, 64], strides = [1, 1]} : vector<2x96xf32> to vector<2x64xf32>
    %100 = vector.extract_strided_slice %98 {offsets = [0, 0], sizes = [2, 64], strides = [1, 1]} : vector<2x96xf32> to vector<2x64xf32>
    %101 = arith.addf %99, %100 : vector<2x64xf32>
    %102 = arith.negf %101 : vector<2x64xf32>
    %103 = math.exp %102 : vector<2x64xf32>
    %cst_43 = arith.constant 1.000000e+00 : f32
    %104 = vector.broadcast %cst_43 : f32 to vector<2x64xf32>
    %105 = arith.addf %104, %103 : vector<2x64xf32>
    %106 = arith.divf %104, %105 : vector<2x64xf32>
    %107 = vector.extract_strided_slice %106 {offsets = [0, 0], sizes = [2, 32], strides = [1, 1]} : vector<2x64xf32> to vector<2x32xf32>
    %108 = vector.extract_strided_slice %106 {offsets = [0, 32], sizes = [2, 32], strides = [1, 1]} : vector<2x64xf32> to vector<2x32xf32>
    %109 = vector.extract_strided_slice %97 {offsets = [0, 64], sizes = [2, 32], strides = [1, 1]} : vector<2x96xf32> to vector<2x32xf32>
    %110 = vector.extract_strided_slice %98 {offsets = [0, 64], sizes = [2, 32], strides = [1, 1]} : vector<2x96xf32> to vector<2x32xf32>
    %111 = arith.addf %110, %12 : vector<2x32xf32>
    %112 = arith.mulf %107, %111 : vector<2x32xf32>
    %113 = arith.addf %109, %112 : vector<2x32xf32>
    %114 = math.tanh %113 : vector<2x32xf32>
    %cst_44 = arith.constant 1.000000e+00 : f32
    %115 = vector.broadcast %cst_44 : f32 to vector<2x32xf32>
    %116 = arith.subf %115, %108 : vector<2x32xf32>
    %117 = arith.mulf %116, %114 : vector<2x32xf32>
    %118 = arith.mulf %108, %68 : vector<2x32xf32>
    %119 = arith.addf %117, %118 : vector<2x32xf32>
    %cst_45 = arith.constant dense<0.000000e+00> : vector<2x96xf32>
    %120 = tpu.matmul %68, %9, %cst_45 {dimension_numbers = #tpu.dot_dimension_numbers<[1], [0], [0], [1], [0, 0, 1, 1], [], []>} : vector<2x32xf32>, vector<32x96xf32>, vector<2x96xf32> -> vector<2x96xf32>
    %121 = arith.addf %120, %18 : vector<2x96xf32>
    %cst_46 = arith.constant dense<0.000000e+00> : vector<2x96xf32>
    %122 = tpu.matmul %92, %8, %cst_46 {dimension_numbers = #tpu.dot_dimension_numbers<[1], [0], [0], [1], [0, 0, 1, 1], [], []>} : vector<2x32xf32>, vector<32x96xf32>, vector<2x96xf32> -> vector<2x96xf32>
    %123 = vector.extract_strided_slice %121 {offsets = [0, 0], sizes = [2, 64], strides = [1, 1]} : vector<2x96xf32> to vector<2x64xf32>
    %124 = vector.extract_strided_slice %122 {offsets = [0, 0], sizes = [2, 64], strides = [1, 1]} : vector<2x96xf32> to vector<2x64xf32>
    %125 = arith.addf %123, %124 : vector<2x64xf32>
    %126 = arith.negf %125 : vector<2x64xf32>
    %127 = math.exp %126 : vector<2x64xf32>
    %cst_47 = arith.constant 1.000000e+00 : f32
    %128 = vector.broadcast %cst_47 : f32 to vector<2x64xf32>
    %129 = arith.addf %128, %127 : vector<2x64xf32>
    %130 = arith.divf %128, %129 : vector<2x64xf32>
    %131 = vector.extract_strided_slice %130 {offsets = [0, 0], sizes = [2, 32], strides = [1, 1]} : vector<2x64xf32> to vector<2x32xf32>
    %132 = vector.extract_strided_slice %130 {offsets = [0, 32], sizes = [2, 32], strides = [1, 1]} : vector<2x64xf32> to vector<2x32xf32>
    %133 = vector.extract_strided_slice %121 {offsets = [0, 64], sizes = [2, 32], strides = [1, 1]} : vector<2x96xf32> to vector<2x32xf32>
    %134 = vector.extract_strided_slice %122 {offsets = [0, 64], sizes = [2, 32], strides = [1, 1]} : vector<2x96xf32> to vector<2x32xf32>
    %135 = arith.addf %134, %15 : vector<2x32xf32>
    %136 = arith.mulf %131, %135 : vector<2x32xf32>
    %137 = arith.addf %133, %136 : vector<2x32xf32>
    %138 = math.tanh %137 : vector<2x32xf32>
    %cst_48 = arith.constant 1.000000e+00 : f32
    %139 = vector.broadcast %cst_48 : f32 to vector<2x32xf32>
    %140 = arith.subf %139, %132 : vector<2x32xf32>
    %141 = arith.mulf %140, %138 : vector<2x32xf32>
    %142 = arith.mulf %132, %92 : vector<2x32xf32>
    %143 = arith.addf %141, %142 : vector<2x32xf32>
    %c2_49 = arith.constant 2 : index
    %c0_50 = arith.constant 0 : index
    %144 = vector.load %arg1[%c2_49, %c0_50] : memref<16x1xf32, #tpu.memory_space<vmem>>, vector<2x1xf32>
    %145 = vector.broadcast %144 : vector<2x1xf32> to vector<2x32xf32>
    %146 = arith.mulf %143, %145 : vector<2x32xf32>
    %c2_51 = arith.constant 2 : index
    %c0_52 = arith.constant 0 : index
    %147 = vector.load %arg29[%c2_51, %c0_52] : memref<16x32xf32, #tpu.memory_space<vmem>>, vector<2x32xf32>
    tpu.vector_store %arg29[%c2_51, %c0_52], %146 {strides = array<i32>} : memref<16x32xf32, #tpu.memory_space<vmem>>, vector<2x32xf32>,
    %c6 = arith.constant 6 : index
    %c0_53 = arith.constant 0 : index
    %148 = vector.load %arg28[%c6, %c0_53] : memref<16x96xf32, #tpu.memory_space<vmem>>, vector<2x96xf32>
    %cst_54 = arith.constant dense<0.000000e+00> : vector<2x96xf32>
    %149 = tpu.matmul %119, %7, %cst_54 {dimension_numbers = #tpu.dot_dimension_numbers<[1], [0], [0], [1], [0, 0, 1, 1], [], []>} : vector<2x32xf32>, vector<32x96xf32>, vector<2x96xf32> -> vector<2x96xf32>
    %150 = vector.extract_strided_slice %148 {offsets = [0, 0], sizes = [2, 64], strides = [1, 1]} : vector<2x96xf32> to vector<2x64xf32>
    %151 = vector.extract_strided_slice %149 {offsets = [0, 0], sizes = [2, 64], strides = [1, 1]} : vector<2x96xf32> to vector<2x64xf32>
    %152 = arith.addf %150, %151 : vector<2x64xf32>
    %153 = arith.negf %152 : vector<2x64xf32>
    %154 = math.exp %153 : vector<2x64xf32>
    %cst_55 = arith.constant 1.000000e+00 : f32
    %155 = vector.broadcast %cst_55 : f32 to vector<2x64xf32>
    %156 = arith.addf %155, %154 : vector<2x64xf32>
    %157 = arith.divf %155, %156 : vector<2x64xf32>
    %158 = vector.extract_strided_slice %157 {offsets = [0, 0], sizes = [2, 32], strides = [1, 1]} : vector<2x64xf32> to vector<2x32xf32>
    %159 = vector.extract_strided_slice %157 {offsets = [0, 32], sizes = [2, 32], strides = [1, 1]} : vector<2x64xf32> to vector<2x32xf32>
    %160 = vector.extract_strided_slice %148 {offsets = [0, 64], sizes = [2, 32], strides = [1, 1]} : vector<2x96xf32> to vector<2x32xf32>
    %161 = vector.extract_strided_slice %149 {offsets = [0, 64], sizes = [2, 32], strides = [1, 1]} : vector<2x96xf32> to vector<2x32xf32>
    %162 = arith.addf %161, %12 : vector<2x32xf32>
    %163 = arith.mulf %158, %162 : vector<2x32xf32>
    %164 = arith.addf %160, %163 : vector<2x32xf32>
    %165 = math.tanh %164 : vector<2x32xf32>
    %cst_56 = arith.constant 1.000000e+00 : f32
    %166 = vector.broadcast %cst_56 : f32 to vector<2x32xf32>
    %167 = arith.subf %166, %159 : vector<2x32xf32>
    %168 = arith.mulf %167, %165 : vector<2x32xf32>
    %169 = arith.mulf %159, %119 : vector<2x32xf32>
    %170 = arith.addf %168, %169 : vector<2x32xf32>
    %cst_57 = arith.constant dense<0.000000e+00> : vector<2x96xf32>
    %171 = tpu.matmul %119, %9, %cst_57 {dimension_numbers = #tpu.dot_dimension_numbers<[1], [0], [0], [1], [0, 0, 1, 1], [], []>} : vector<2x32xf32>, vector<32x96xf32>, vector<2x96xf32> -> vector<2x96xf32>
    %172 = arith.addf %171, %18 : vector<2x96xf32>
    %cst_58 = arith.constant dense<0.000000e+00> : vector<2x96xf32>
    %173 = tpu.matmul %143, %8, %cst_58 {dimension_numbers = #tpu.dot_dimension_numbers<[1], [0], [0], [1], [0, 0, 1, 1], [], []>} : vector<2x32xf32>, vector<32x96xf32>, vector<2x96xf32> -> vector<2x96xf32>
    %174 = vector.extract_strided_slice %172 {offsets = [0, 0], sizes = [2, 64], strides = [1, 1]} : vector<2x96xf32> to vector<2x64xf32>
    %175 = vector.extract_strided_slice %173 {offsets = [0, 0], sizes = [2, 64], strides = [1, 1]} : vector<2x96xf32> to vector<2x64xf32>
    %176 = arith.addf %174, %175 : vector<2x64xf32>
    %177 = arith.negf %176 : vector<2x64xf32>
    %178 = math.exp %177 : vector<2x64xf32>
    %cst_59 = arith.constant 1.000000e+00 : f32
    %179 = vector.broadcast %cst_59 : f32 to vector<2x64xf32>
    %180 = arith.addf %179, %178 : vector<2x64xf32>
    %181 = arith.divf %179, %180 : vector<2x64xf32>
    %182 = vector.extract_strided_slice %181 {offsets = [0, 0], sizes = [2, 32], strides = [1, 1]} : vector<2x64xf32> to vector<2x32xf32>
    %183 = vector.extract_strided_slice %181 {offsets = [0, 32], sizes = [2, 32], strides = [1, 1]} : vector<2x64xf32> to vector<2x32xf32>
    %184 = vector.extract_strided_slice %172 {offsets = [0, 64], sizes = [2, 32], strides = [1, 1]} : vector<2x96xf32> to vector<2x32xf32>
    %185 = vector.extract_strided_slice %173 {offsets = [0, 64], sizes = [2, 32], strides = [1, 1]} : vector<2x96xf32> to vector<2x32xf32>
    %186 = arith.addf %185, %15 : vector<2x32xf32>
    %187 = arith.mulf %182, %186 : vector<2x32xf32>
    %188 = arith.addf %184, %187 : vector<2x32xf32>
    %189 = math.tanh %188 : vector<2x32xf32>
    %cst_60 = arith.constant 1.000000e+00 : f32
    %190 = vector.broadcast %cst_60 : f32 to vector<2x32xf32>
    %191 = arith.subf %190, %183 : vector<2x32xf32>
    %192 = arith.mulf %191, %189 : vector<2x32xf32>
    %193 = arith.mulf %183, %143 : vector<2x32xf32>
    %194 = arith.addf %192, %193 : vector<2x32xf32>
    %c4_61 = arith.constant 4 : index
    %c0_62 = arith.constant 0 : index
    %195 = vector.load %arg1[%c4_61, %c0_62] : memref<16x1xf32, #tpu.memory_space<vmem>>, vector<2x1xf32>
    %196 = vector.broadcast %195 : vector<2x1xf32> to vector<2x32xf32>
    %197 = arith.mulf %194, %196 : vector<2x32xf32>
    %c4_63 = arith.constant 4 : index
    %c0_64 = arith.constant 0 : index
    %198 = vector.load %arg29[%c4_63, %c0_64] : memref<16x32xf32, #tpu.memory_space<vmem>>, vector<2x32xf32>
    tpu.vector_store %arg29[%c4_63, %c0_64], %197 {strides = array<i32>} : memref<16x32xf32, #tpu.memory_space<vmem>>, vector<2x32xf32>,
    %c8 = arith.constant 8 : index
    %c0_65 = arith.constant 0 : index
    %199 = vector.load %arg28[%c8, %c0_65] : memref<16x96xf32, #tpu.memory_space<vmem>>, vector<2x96xf32>
    %cst_66 = arith.constant dense<0.000000e+00> : vector<2x96xf32>
    %200 = tpu.matmul %170, %7, %cst_66 {dimension_numbers = #tpu.dot_dimension_numbers<[1], [0], [0], [1], [0, 0, 1, 1], [], []>} : vector<2x32xf32>, vector<32x96xf32>, vector<2x96xf32> -> vector<2x96xf32>
    %201 = vector.extract_strided_slice %199 {offsets = [0, 0], sizes = [2, 64], strides = [1, 1]} : vector<2x96xf32> to vector<2x64xf32>
    %202 = vector.extract_strided_slice %200 {offsets = [0, 0], sizes = [2, 64], strides = [1, 1]} : vector<2x96xf32> to vector<2x64xf32>
    %203 = arith.addf %201, %202 : vector<2x64xf32>
    %204 = arith.negf %203 : vector<2x64xf32>
    %205 = math.exp %204 : vector<2x64xf32>
    %cst_67 = arith.constant 1.000000e+00 : f32
    %206 = vector.broadcast %cst_67 : f32 to vector<2x64xf32>
    %207 = arith.addf %206, %205 : vector<2x64xf32>
    %208 = arith.divf %206, %207 : vector<2x64xf32>
    %209 = vector.extract_strided_slice %208 {offsets = [0, 0], sizes = [2, 32], strides = [1, 1]} : vector<2x64xf32> to vector<2x32xf32>
    %210 = vector.extract_strided_slice %208 {offsets = [0, 32], sizes = [2, 32], strides = [1, 1]} : vector<2x64xf32> to vector<2x32xf32>
    %211 = vector.extract_strided_slice %199 {offsets = [0, 64], sizes = [2, 32], strides = [1, 1]} : vector<2x96xf32> to vector<2x32xf32>
    %212 = vector.extract_strided_slice %200 {offsets = [0, 64], sizes = [2, 32], strides = [1, 1]} : vector<2x96xf32> to vector<2x32xf32>
    %213 = arith.addf %212, %12 : vector<2x32xf32>
    %214 = arith.mulf %209, %213 : vector<2x32xf32>
    %215 = arith.addf %211, %214 : vector<2x32xf32>
    %216 = math.tanh %215 : vector<2x32xf32>
    %cst_68 = arith.constant 1.000000e+00 : f32
    %217 = vector.broadcast %cst_68 : f32 to vector<2x32xf32>
    %218 = arith.subf %217, %210 : vector<2x32xf32>
    %219 = arith.mulf %218, %216 : vector<2x32xf32>
    %220 = arith.mulf %210, %170 : vector<2x32xf32>
    %221 = arith.addf %219, %220 : vector<2x32xf32>
    %cst_69 = arith.constant dense<0.000000e+00> : vector<2x96xf32>
    %222 = tpu.matmul %170, %9, %cst_69 {dimension_numbers = #tpu.dot_dimension_numbers<[1], [0], [0], [1], [0, 0, 1, 1], [], []>} : vector<2x32xf32>, vector<32x96xf32>, vector<2x96xf32> -> vector<2x96xf32>
    %223 = arith.addf %222, %18 : vector<2x96xf32>
    %cst_70 = arith.constant dense<0.000000e+00> : vector<2x96xf32>
    %224 = tpu.matmul %194, %8, %cst_70 {dimension_numbers = #tpu.dot_dimension_numbers<[1], [0], [0], [1], [0, 0, 1, 1], [], []>} : vector<2x32xf32>, vector<32x96xf32>, vector<2x96xf32> -> vector<2x96xf32>
    %225 = vector.extract_strided_slice %223 {offsets = [0, 0], sizes = [2, 64], strides = [1, 1]} : vector<2x96xf32> to vector<2x64xf32>
    %226 = vector.extract_strided_slice %224 {offsets = [0, 0], sizes = [2, 64], strides = [1, 1]} : vector<2x96xf32> to vector<2x64xf32>
    %227 = arith.addf %225, %226 : vector<2x64xf32>
    %228 = arith.negf %227 : vector<2x64xf32>
    %229 = math.exp %228 : vector<2x64xf32>
    %cst_71 = arith.constant 1.000000e+00 : f32
    %230 = vector.broadcast %cst_71 : f32 to vector<2x64xf32>
    %231 = arith.addf %230, %229 : vector<2x64xf32>
    %232 = arith.divf %230, %231 : vector<2x64xf32>
    %233 = vector.extract_strided_slice %232 {offsets = [0, 0], sizes = [2, 32], strides = [1, 1]} : vector<2x64xf32> to vector<2x32xf32>
    %234 = vector.extract_strided_slice %232 {offsets = [0, 32], sizes = [2, 32], strides = [1, 1]} : vector<2x64xf32> to vector<2x32xf32>
    %235 = vector.extract_strided_slice %223 {offsets = [0, 64], sizes = [2, 32], strides = [1, 1]} : vector<2x96xf32> to vector<2x32xf32>
    %236 = vector.extract_strided_slice %224 {offsets = [0, 64], sizes = [2, 32], strides = [1, 1]} : vector<2x96xf32> to vector<2x32xf32>
    %237 = arith.addf %236, %15 : vector<2x32xf32>
    %238 = arith.mulf %233, %237 : vector<2x32xf32>
    %239 = arith.addf %235, %238 : vector<2x32xf32>
    %240 = math.tanh %239 : vector<2x32xf32>
    %cst_72 = arith.constant 1.000000e+00 : f32
    %241 = vector.broadcast %cst_72 : f32 to vector<2x32xf32>
    %242 = arith.subf %241, %234 : vector<2x32xf32>
    %243 = arith.mulf %242, %240 : vector<2x32xf32>
    %244 = arith.mulf %234, %194 : vector<2x32xf32>
    %245 = arith.addf %243, %244 : vector<2x32xf32>
    %c6_73 = arith.constant 6 : index
    %c0_74 = arith.constant 0 : index
    %246 = vector.load %arg1[%c6_73, %c0_74] : memref<16x1xf32, #tpu.memory_space<vmem>>, vector<2x1xf32>
    %247 = vector.broadcast %246 : vector<2x1xf32> to vector<2x32xf32>
    %248 = arith.mulf %245, %247 : vector<2x32xf32>
    %c6_75 = arith.constant 6 : index
    %c0_76 = arith.constant 0 : index
    %249 = vector.load %arg29[%c6_75, %c0_76] : memref<16x32xf32, #tpu.memory_space<vmem>>, vector<2x32xf32>
    tpu.vector_store %arg29[%c6_75, %c0_76], %248 {strides = array<i32>} : memref<16x32xf32, #tpu.memory_space<vmem>>, vector<2x32xf32>,
    %c10 = arith.constant 10 : index
    %c0_77 = arith.constant 0 : index
    %250 = vector.load %arg28[%c10, %c0_77] : memref<16x96xf32, #tpu.memory_space<vmem>>, vector<2x96xf32>
    %cst_78 = arith.constant dense<0.000000e+00> : vector<2x96xf32>
    %251 = tpu.matmul %221, %7, %cst_78 {dimension_numbers = #tpu.dot_dimension_numbers<[1], [0], [0], [1], [0, 0, 1, 1], [], []>} : vector<2x32xf32>, vector<32x96xf32>, vector<2x96xf32> -> vector<2x96xf32>
    %252 = vector.extract_strided_slice %250 {offsets = [0, 0], sizes = [2, 64], strides = [1, 1]} : vector<2x96xf32> to vector<2x64xf32>
    %253 = vector.extract_strided_slice %251 {offsets = [0, 0], sizes = [2, 64], strides = [1, 1]} : vector<2x96xf32> to vector<2x64xf32>
    %254 = arith.addf %252, %253 : vector<2x64xf32>
    %255 = arith.negf %254 : vector<2x64xf32>
    %256 = math.exp %255 : vector<2x64xf32>
    %cst_79 = arith.constant 1.000000e+00 : f32
    %257 = vector.broadcast %cst_79 : f32 to vector<2x64xf32>
    %258 = arith.addf %257, %256 : vector<2x64xf32>
    %259 = arith.divf %257, %258 : vector<2x64xf32>
    %260 = vector.extract_strided_slice %259 {offsets = [0, 0], sizes = [2, 32], strides = [1, 1]} : vector<2x64xf32> to vector<2x32xf32>
    %261 = vector.extract_strided_slice %259 {offsets = [0, 32], sizes = [2, 32], strides = [1, 1]} : vector<2x64xf32> to vector<2x32xf32>
    %262 = vector.extract_strided_slice %250 {offsets = [0, 64], sizes = [2, 32], strides = [1, 1]} : vector<2x96xf32> to vector<2x32xf32>
    %263 = vector.extract_strided_slice %251 {offsets = [0, 64], sizes = [2, 32], strides = [1, 1]} : vector<2x96xf32> to vector<2x32xf32>
    %264 = arith.addf %263, %12 : vector<2x32xf32>
    %265 = arith.mulf %260, %264 : vector<2x32xf32>
    %266 = arith.addf %262, %265 : vector<2x32xf32>
    %267 = math.tanh %266 : vector<2x32xf32>
    %cst_80 = arith.constant 1.000000e+00 : f32
    %268 = vector.broadcast %cst_80 : f32 to vector<2x32xf32>
    %269 = arith.subf %268, %261 : vector<2x32xf32>
    %270 = arith.mulf %269, %267 : vector<2x32xf32>
    %271 = arith.mulf %261, %221 : vector<2x32xf32>
    %272 = arith.addf %270, %271 : vector<2x32xf32>
    %cst_81 = arith.constant dense<0.000000e+00> : vector<2x96xf32>
    %273 = tpu.matmul %221, %9, %cst_81 {dimension_numbers = #tpu.dot_dimension_numbers<[1], [0], [0], [1], [0, 0, 1, 1], [], []>} : vector<2x32xf32>, vector<32x96xf32>, vector<2x96xf32> -> vector<2x96xf32>
    %274 = arith.addf %273, %18 : vector<2x96xf32>
    %cst_82 = arith.constant dense<0.000000e+00> : vector<2x96xf32>
    %275 = tpu.matmul %245, %8, %cst_82 {dimension_numbers = #tpu.dot_dimension_numbers<[1], [0], [0], [1], [0, 0, 1, 1], [], []>} : vector<2x32xf32>, vector<32x96xf32>, vector<2x96xf32> -> vector<2x96xf32>
    %276 = vector.extract_strided_slice %274 {offsets = [0, 0], sizes = [2, 64], strides = [1, 1]} : vector<2x96xf32> to vector<2x64xf32>
    %277 = vector.extract_strided_slice %275 {offsets = [0, 0], sizes = [2, 64], strides = [1, 1]} : vector<2x96xf32> to vector<2x64xf32>
    %278 = arith.addf %276, %277 : vector<2x64xf32>
    %279 = arith.negf %278 : vector<2x64xf32>
    %280 = math.exp %279 : vector<2x64xf32>
    %cst_83 = arith.constant 1.000000e+00 : f32
    %281 = vector.broadcast %cst_83 : f32 to vector<2x64xf32>
    %282 = arith.addf %281, %280 : vector<2x64xf32>
    %283 = arith.divf %281, %282 : vector<2x64xf32>
    %284 = vector.extract_strided_slice %283 {offsets = [0, 0], sizes = [2, 32], strides = [1, 1]} : vector<2x64xf32> to vector<2x32xf32>
    %285 = vector.extract_strided_slice %283 {offsets = [0, 32], sizes = [2, 32], strides = [1, 1]} : vector<2x64xf32> to vector<2x32xf32>
    %286 = vector.extract_strided_slice %274 {offsets = [0, 64], sizes = [2, 32], strides = [1, 1]} : vector<2x96xf32> to vector<2x32xf32>
    %287 = vector.extract_strided_slice %275 {offsets = [0, 64], sizes = [2, 32], strides = [1, 1]} : vector<2x96xf32> to vector<2x32xf32>
    %288 = arith.addf %287, %15 : vector<2x32xf32>
    %289 = arith.mulf %284, %288 : vector<2x32xf32>
    %290 = arith.addf %286, %289 : vector<2x32xf32>
    %291 = math.tanh %290 : vector<2x32xf32>
    %cst_84 = arith.constant 1.000000e+00 : f32
    %292 = vector.broadcast %cst_84 : f32 to vector<2x32xf32>
    %293 = arith.subf %292, %285 : vector<2x32xf32>
    %294 = arith.mulf %293, %291 : vector<2x32xf32>
    %295 = arith.mulf %285, %245 : vector<2x32xf32>
    %296 = arith.addf %294, %295 : vector<2x32xf32>
    %c8_85 = arith.constant 8 : index
    %c0_86 = arith.constant 0 : index
    %297 = vector.load %arg1[%c8_85, %c0_86] : memref<16x1xf32, #tpu.memory_space<vmem>>, vector<2x1xf32>
    %298 = vector.broadcast %297 : vector<2x1xf32> to vector<2x32xf32>
    %299 = arith.mulf %296, %298 : vector<2x32xf32>
    %c8_87 = arith.constant 8 : index
    %c0_88 = arith.constant 0 : index
    %300 = vector.load %arg29[%c8_87, %c0_88] : memref<16x32xf32, #tpu.memory_space<vmem>>, vector<2x32xf32>
    tpu.vector_store %arg29[%c8_87, %c0_88], %299 {strides = array<i32>} : memref<16x32xf32, #tpu.memory_space<vmem>>, vector<2x32xf32>,
    %c12 = arith.constant 12 : index
    %c0_89 = arith.constant 0 : index
    %301 = vector.load %arg28[%c12, %c0_89] : memref<16x96xf32, #tpu.memory_space<vmem>>, vector<2x96xf32>
    %cst_90 = arith.constant dense<0.000000e+00> : vector<2x96xf32>
    %302 = tpu.matmul %272, %7, %cst_90 {dimension_numbers = #tpu.dot_dimension_numbers<[1], [0], [0], [1], [0, 0, 1, 1], [], []>} : vector<2x32xf32>, vector<32x96xf32>, vector<2x96xf32> -> vector<2x96xf32>
    %303 = vector.extract_strided_slice %301 {offsets = [0, 0], sizes = [2, 64], strides = [1, 1]} : vector<2x96xf32> to vector<2x64xf32>
    %304 = vector.extract_strided_slice %302 {offsets = [0, 0], sizes = [2, 64], strides = [1, 1]} : vector<2x96xf32> to vector<2x64xf32>
    %305 = arith.addf %303, %304 : vector<2x64xf32>
    %306 = arith.negf %305 : vector<2x64xf32>
    %307 = math.exp %306 : vector<2x64xf32>
    %cst_91 = arith.constant 1.000000e+00 : f32
    %308 = vector.broadcast %cst_91 : f32 to vector<2x64xf32>
    %309 = arith.addf %308, %307 : vector<2x64xf32>
    %310 = arith.divf %308, %309 : vector<2x64xf32>
    %311 = vector.extract_strided_slice %310 {offsets = [0, 0], sizes = [2, 32], strides = [1, 1]} : vector<2x64xf32> to vector<2x32xf32>
    %312 = vector.extract_strided_slice %310 {offsets = [0, 32], sizes = [2, 32], strides = [1, 1]} : vector<2x64xf32> to vector<2x32xf32>
    %313 = vector.extract_strided_slice %301 {offsets = [0, 64], sizes = [2, 32], strides = [1, 1]} : vector<2x96xf32> to vector<2x32xf32>
    %314 = vector.extract_strided_slice %302 {offsets = [0, 64], sizes = [2, 32], strides = [1, 1]} : vector<2x96xf32> to vector<2x32xf32>
    %315 = arith.addf %314, %12 : vector<2x32xf32>
    %316 = arith.mulf %311, %315 : vector<2x32xf32>
    %317 = arith.addf %313, %316 : vector<2x32xf32>
    %318 = math.tanh %317 : vector<2x32xf32>
    %cst_92 = arith.constant 1.000000e+00 : f32
    %319 = vector.broadcast %cst_92 : f32 to vector<2x32xf32>
    %320 = arith.subf %319, %312 : vector<2x32xf32>
    %321 = arith.mulf %320, %318 : vector<2x32xf32>
    %322 = arith.mulf %312, %272 : vector<2x32xf32>
    %323 = arith.addf %321, %322 : vector<2x32xf32>
    %cst_93 = arith.constant dense<0.000000e+00> : vector<2x96xf32>
    %324 = tpu.matmul %272, %9, %cst_93 {dimension_numbers = #tpu.dot_dimension_numbers<[1], [0], [0], [1], [0, 0, 1, 1], [], []>} : vector<2x32xf32>, vector<32x96xf32>, vector<2x96xf32> -> vector<2x96xf32>
    %325 = arith.addf %324, %18 : vector<2x96xf32>
    %cst_94 = arith.constant dense<0.000000e+00> : vector<2x96xf32>
    %326 = tpu.matmul %296, %8, %cst_94 {dimension_numbers = #tpu.dot_dimension_numbers<[1], [0], [0], [1], [0, 0, 1, 1], [], []>} : vector<2x32xf32>, vector<32x96xf32>, vector<2x96xf32> -> vector<2x96xf32>
    %327 = vector.extract_strided_slice %325 {offsets = [0, 0], sizes = [2, 64], strides = [1, 1]} : vector<2x96xf32> to vector<2x64xf32>
    %328 = vector.extract_strided_slice %326 {offsets = [0, 0], sizes = [2, 64], strides = [1, 1]} : vector<2x96xf32> to vector<2x64xf32>
    %329 = arith.addf %327, %328 : vector<2x64xf32>
    %330 = arith.negf %329 : vector<2x64xf32>
    %331 = math.exp %330 : vector<2x64xf32>
    %cst_95 = arith.constant 1.000000e+00 : f32
    %332 = vector.broadcast %cst_95 : f32 to vector<2x64xf32>
    %333 = arith.addf %332, %331 : vector<2x64xf32>
    %334 = arith.divf %332, %333 : vector<2x64xf32>
    %335 = vector.extract_strided_slice %334 {offsets = [0, 0], sizes = [2, 32], strides = [1, 1]} : vector<2x64xf32> to vector<2x32xf32>
    %336 = vector.extract_strided_slice %334 {offsets = [0, 32], sizes = [2, 32], strides = [1, 1]} : vector<2x64xf32> to vector<2x32xf32>
    %337 = vector.extract_strided_slice %325 {offsets = [0, 64], sizes = [2, 32], strides = [1, 1]} : vector<2x96xf32> to vector<2x32xf32>
    %338 = vector.extract_strided_slice %326 {offsets = [0, 64], sizes = [2, 32], strides = [1, 1]} : vector<2x96xf32> to vector<2x32xf32>
    %339 = arith.addf %338, %15 : vector<2x32xf32>
    %340 = arith.mulf %335, %339 : vector<2x32xf32>
    %341 = arith.addf %337, %340 : vector<2x32xf32>
    %342 = math.tanh %341 : vector<2x32xf32>
    %cst_96 = arith.constant 1.000000e+00 : f32
    %343 = vector.broadcast %cst_96 : f32 to vector<2x32xf32>
    %344 = arith.subf %343, %336 : vector<2x32xf32>
    %345 = arith.mulf %344, %342 : vector<2x32xf32>
    %346 = arith.mulf %336, %296 : vector<2x32xf32>
    %347 = arith.addf %345, %346 : vector<2x32xf32>
    %c10_97 = arith.constant 10 : index
    %c0_98 = arith.constant 0 : index
    %348 = vector.load %arg1[%c10_97, %c0_98] : memref<16x1xf32, #tpu.memory_space<vmem>>, vector<2x1xf32>
    %349 = vector.broadcast %348 : vector<2x1xf32> to vector<2x32xf32>
    %350 = arith.mulf %347, %349 : vector<2x32xf32>
    %c10_99 = arith.constant 10 : index
    %c0_100 = arith.constant 0 : index
    %351 = vector.load %arg29[%c10_99, %c0_100] : memref<16x32xf32, #tpu.memory_space<vmem>>, vector<2x32xf32>
    tpu.vector_store %arg29[%c10_99, %c0_100], %350 {strides = array<i32>} : memref<16x32xf32, #tpu.memory_space<vmem>>, vector<2x32xf32>,
    %c14 = arith.constant 14 : index
    %c0_101 = arith.constant 0 : index
    %352 = vector.load %arg28[%c14, %c0_101] : memref<16x96xf32, #tpu.memory_space<vmem>>, vector<2x96xf32>
    %cst_102 = arith.constant dense<0.000000e+00> : vector<2x96xf32>
    %353 = tpu.matmul %323, %7, %cst_102 {dimension_numbers = #tpu.dot_dimension_numbers<[1], [0], [0], [1], [0, 0, 1, 1], [], []>} : vector<2x32xf32>, vector<32x96xf32>, vector<2x96xf32> -> vector<2x96xf32>
    %354 = vector.extract_strided_slice %352 {offsets = [0, 0], sizes = [2, 64], strides = [1, 1]} : vector<2x96xf32> to vector<2x64xf32>
    %355 = vector.extract_strided_slice %353 {offsets = [0, 0], sizes = [2, 64], strides = [1, 1]} : vector<2x96xf32> to vector<2x64xf32>
    %356 = arith.addf %354, %355 : vector<2x64xf32>
    %357 = arith.negf %356 : vector<2x64xf32>
    %358 = math.exp %357 : vector<2x64xf32>
    %cst_103 = arith.constant 1.000000e+00 : f32
    %359 = vector.broadcast %cst_103 : f32 to vector<2x64xf32>
    %360 = arith.addf %359, %358 : vector<2x64xf32>
    %361 = arith.divf %359, %360 : vector<2x64xf32>
    %362 = vector.extract_strided_slice %361 {offsets = [0, 0], sizes = [2, 32], strides = [1, 1]} : vector<2x64xf32> to vector<2x32xf32>
    %363 = vector.extract_strided_slice %361 {offsets = [0, 32], sizes = [2, 32], strides = [1, 1]} : vector<2x64xf32> to vector<2x32xf32>
    %364 = vector.extract_strided_slice %352 {offsets = [0, 64], sizes = [2, 32], strides = [1, 1]} : vector<2x96xf32> to vector<2x32xf32>
    %365 = vector.extract_strided_slice %353 {offsets = [0, 64], sizes = [2, 32], strides = [1, 1]} : vector<2x96xf32> to vector<2x32xf32>
    %366 = arith.addf %365, %12 : vector<2x32xf32>
    %367 = arith.mulf %362, %366 : vector<2x32xf32>
    %368 = arith.addf %364, %367 : vector<2x32xf32>
    %369 = math.tanh %368 : vector<2x32xf32>
    %cst_104 = arith.constant 1.000000e+00 : f32
    %370 = vector.broadcast %cst_104 : f32 to vector<2x32xf32>
    %371 = arith.subf %370, %363 : vector<2x32xf32>
    %372 = arith.mulf %371, %369 : vector<2x32xf32>
    %373 = arith.mulf %363, %323 : vector<2x32xf32>
    %374 = arith.addf %372, %373 : vector<2x32xf32>
    %cst_105 = arith.constant dense<0.000000e+00> : vector<2x96xf32>
    %375 = tpu.matmul %323, %9, %cst_105 {dimension_numbers = #tpu.dot_dimension_numbers<[1], [0], [0], [1], [0, 0, 1, 1], [], []>} : vector<2x32xf32>, vector<32x96xf32>, vector<2x96xf32> -> vector<2x96xf32>
    %376 = arith.addf %375, %18 : vector<2x96xf32>
    %cst_106 = arith.constant dense<0.000000e+00> : vector<2x96xf32>
    %377 = tpu.matmul %347, %8, %cst_106 {dimension_numbers = #tpu.dot_dimension_numbers<[1], [0], [0], [1], [0, 0, 1, 1], [], []>} : vector<2x32xf32>, vector<32x96xf32>, vector<2x96xf32> -> vector<2x96xf32>
    %378 = vector.extract_strided_slice %376 {offsets = [0, 0], sizes = [2, 64], strides = [1, 1]} : vector<2x96xf32> to vector<2x64xf32>
    %379 = vector.extract_strided_slice %377 {offsets = [0, 0], sizes = [2, 64], strides = [1, 1]} : vector<2x96xf32> to vector<2x64xf32>
    %380 = arith.addf %378, %379 : vector<2x64xf32>
    %381 = arith.negf %380 : vector<2x64xf32>
    %382 = math.exp %381 : vector<2x64xf32>
    %cst_107 = arith.constant 1.000000e+00 : f32
    %383 = vector.broadcast %cst_107 : f32 to vector<2x64xf32>
    %384 = arith.addf %383, %382 : vector<2x64xf32>
    %385 = arith.divf %383, %384 : vector<2x64xf32>
    %386 = vector.extract_strided_slice %385 {offsets = [0, 0], sizes = [2, 32], strides = [1, 1]} : vector<2x64xf32> to vector<2x32xf32>
    %387 = vector.extract_strided_slice %385 {offsets = [0, 32], sizes = [2, 32], strides = [1, 1]} : vector<2x64xf32> to vector<2x32xf32>
    %388 = vector.extract_strided_slice %376 {offsets = [0, 64], sizes = [2, 32], strides = [1, 1]} : vector<2x96xf32> to vector<2x32xf32>
    %389 = vector.extract_strided_slice %377 {offsets = [0, 64], sizes = [2, 32], strides = [1, 1]} : vector<2x96xf32> to vector<2x32xf32>
    %390 = arith.addf %389, %15 : vector<2x32xf32>
    %391 = arith.mulf %386, %390 : vector<2x32xf32>
    %392 = arith.addf %388, %391 : vector<2x32xf32>
    %393 = math.tanh %392 : vector<2x32xf32>
    %cst_108 = arith.constant 1.000000e+00 : f32
    %394 = vector.broadcast %cst_108 : f32 to vector<2x32xf32>
    %395 = arith.subf %394, %387 : vector<2x32xf32>
    %396 = arith.mulf %395, %393 : vector<2x32xf32>
    %397 = arith.mulf %387, %347 : vector<2x32xf32>
    %398 = arith.addf %396, %397 : vector<2x32xf32>
    %c12_109 = arith.constant 12 : index
    %c0_110 = arith.constant 0 : index
    %399 = vector.load %arg1[%c12_109, %c0_110] : memref<16x1xf32, #tpu.memory_space<vmem>>, vector<2x1xf32>
    %400 = vector.broadcast %399 : vector<2x1xf32> to vector<2x32xf32>
    %401 = arith.mulf %398, %400 : vector<2x32xf32>
    %c12_111 = arith.constant 12 : index
    %c0_112 = arith.constant 0 : index
    %402 = vector.load %arg29[%c12_111, %c0_112] : memref<16x32xf32, #tpu.memory_space<vmem>>, vector<2x32xf32>
    tpu.vector_store %arg29[%c12_111, %c0_112], %401 {strides = array<i32>} : memref<16x32xf32, #tpu.memory_space<vmem>>, vector<2x32xf32>,
    %cst_113 = arith.constant dense<0.000000e+00> : vector<2x96xf32>
    %403 = tpu.matmul %374, %9, %cst_113 {dimension_numbers = #tpu.dot_dimension_numbers<[1], [0], [0], [1], [0, 0, 1, 1], [], []>} : vector<2x32xf32>, vector<32x96xf32>, vector<2x96xf32> -> vector<2x96xf32>
    %404 = arith.addf %403, %18 : vector<2x96xf32>
    %cst_114 = arith.constant dense<0.000000e+00> : vector<2x96xf32>
    %405 = tpu.matmul %398, %8, %cst_114 {dimension_numbers = #tpu.dot_dimension_numbers<[1], [0], [0], [1], [0, 0, 1, 1], [], []>} : vector<2x32xf32>, vector<32x96xf32>, vector<2x96xf32> -> vector<2x96xf32>
    %406 = vector.extract_strided_slice %404 {offsets = [0, 0], sizes = [2, 64], strides = [1, 1]} : vector<2x96xf32> to vector<2x64xf32>
    %407 = vector.extract_strided_slice %405 {offsets = [0, 0], sizes = [2, 64], strides = [1, 1]} : vector<2x96xf32> to vector<2x64xf32>
    %408 = arith.addf %406, %407 : vector<2x64xf32>
    %409 = arith.negf %408 : vector<2x64xf32>
    %410 = math.exp %409 : vector<2x64xf32>
    %cst_115 = arith.constant 1.000000e+00 : f32
    %411 = vector.broadcast %cst_115 : f32 to vector<2x64xf32>
    %412 = arith.addf %411, %410 : vector<2x64xf32>
    %413 = arith.divf %411, %412 : vector<2x64xf32>
    %414 = vector.extract_strided_slice %413 {offsets = [0, 0], sizes = [2, 32], strides = [1, 1]} : vector<2x64xf32> to vector<2x32xf32>
    %415 = vector.extract_strided_slice %413 {offsets = [0, 32], sizes = [2, 32], strides = [1, 1]} : vector<2x64xf32> to vector<2x32xf32>
    %416 = vector.extract_strided_slice %404 {offsets = [0, 64], sizes = [2, 32], strides = [1, 1]} : vector<2x96xf32> to vector<2x32xf32>
    %417 = vector.extract_strided_slice %405 {offsets = [0, 64], sizes = [2, 32], strides = [1, 1]} : vector<2x96xf32> to vector<2x32xf32>
    %418 = arith.addf %417, %15 : vector<2x32xf32>
    %419 = arith.mulf %414, %418 : vector<2x32xf32>
    %420 = arith.addf %416, %419 : vector<2x32xf32>
    %421 = math.tanh %420 : vector<2x32xf32>
    %cst_116 = arith.constant 1.000000e+00 : f32
    %422 = vector.broadcast %cst_116 : f32 to vector<2x32xf32>
    %423 = arith.subf %422, %415 : vector<2x32xf32>
    %424 = arith.mulf %423, %421 : vector<2x32xf32>
    %425 = arith.mulf %415, %398 : vector<2x32xf32>
    %426 = arith.addf %424, %425 : vector<2x32xf32>
    %c14_117 = arith.constant 14 : index
    %c0_118 = arith.constant 0 : index
    %427 = vector.load %arg1[%c14_117, %c0_118] : memref<16x1xf32, #tpu.memory_space<vmem>>, vector<2x1xf32>
    %428 = vector.broadcast %427 : vector<2x1xf32> to vector<2x32xf32>
    %429 = arith.mulf %426, %428 : vector<2x32xf32>
    %c14_119 = arith.constant 14 : index
    %c0_120 = arith.constant 0 : index
    %430 = vector.load %arg29[%c14_119, %c0_120] : memref<16x32xf32, #tpu.memory_space<vmem>>, vector<2x32xf32>
    tpu.vector_store %arg29[%c14_119, %c0_120], %429 {strides = array<i32>} : memref<16x32xf32, #tpu.memory_space<vmem>>, vector<2x32xf32>,
    %c0_121 = arith.constant 0 : index
    %c0_122 = arith.constant 0 : index
    %431 = vector.load %arg29[%c0_121, %c0_122] : memref<16x32xf32, #tpu.memory_space<vmem>>, vector<16x32xf32>
    %c0_123 = arith.constant 0 : index
    %c0_124 = arith.constant 0 : index
    %432 = vector.load %arg3[%c0_123, %c0_124] : memref<24x32xf32, #tpu.memory_space<vmem>>, vector<24x32xf32>
    %c0_125 = arith.constant 0 : index
    %c0_126 = arith.constant 0 : index
    %433 = vector.load %arg13[%c0_125, %c0_126] : memref<32x32xf32, #tpu.memory_space<vmem>>, vector<32x32xf32>
    %cst_127 = arith.constant dense<0.000000e+00> : vector<16x32xf32>
    %434 = tpu.matmul %431, %433, %cst_127 {dimension_numbers = #tpu.dot_dimension_numbers<[1], [0], [0], [1], [0, 0, 1, 1], [], []>} : vector<16x32xf32>, vector<32x32xf32>, vector<16x32xf32> -> vector<16x32xf32>
    %c0_128 = arith.constant 0 : index
    %c0_129 = arith.constant 0 : index
    %435 = vector.load %arg14[%c0_128, %c0_129] : memref<1x32xf32, #tpu.memory_space<vmem>>, vector<1x32xf32>
    %436 = vector.broadcast %435 : vector<1x32xf32> to vector<16x32xf32>
    %437 = arith.addf %434, %436 : vector<16x32xf32>
    %c0_130 = arith.constant 0 : index
    %c0_131 = arith.constant 0 : index
    %438 = vector.load %arg15[%c0_130, %c0_131] : memref<32x32xf32, #tpu.memory_space<vmem>>, vector<32x32xf32>
    %cst_132 = arith.constant dense<0.000000e+00> : vector<24x32xf32>
    %439 = tpu.matmul %432, %438, %cst_132 {dimension_numbers = #tpu.dot_dimension_numbers<[1], [0], [0], [1], [0, 0, 1, 1], [], []>} : vector<24x32xf32>, vector<32x32xf32>, vector<24x32xf32> -> vector<24x32xf32>
    %c0_133 = arith.constant 0 : index
    %c0_134 = arith.constant 0 : index
    %440 = vector.load %arg16[%c0_133, %c0_134] : memref<1x32xf32, #tpu.memory_space<vmem>>, vector<1x32xf32>
    %441 = vector.broadcast %440 : vector<1x32xf32> to vector<24x32xf32>
    %442 = arith.addf %439, %441 : vector<24x32xf32>
    %c0_135 = arith.constant 0 : index
    %c0_136 = arith.constant 0 : index
    %443 = vector.load %arg17[%c0_135, %c0_136] : memref<32x32xf32, #tpu.memory_space<vmem>>, vector<32x32xf32>
    %cst_137 = arith.constant dense<0.000000e+00> : vector<24x32xf32>
    %444 = tpu.matmul %432, %443, %cst_137 {dimension_numbers = #tpu.dot_dimension_numbers<[1], [0], [0], [1], [0, 0, 1, 1], [], []>} : vector<24x32xf32>, vector<32x32xf32>, vector<24x32xf32> -> vector<24x32xf32>
    %c0_138 = arith.constant 0 : index
    %c0_139 = arith.constant 0 : index
    %445 = vector.load %arg18[%c0_138, %c0_139] : memref<1x32xf32, #tpu.memory_space<vmem>>, vector<1x32xf32>
    %446 = vector.broadcast %445 : vector<1x32xf32> to vector<24x32xf32>
    %447 = arith.addf %444, %446 : vector<24x32xf32>
    %cst_140 = arith.constant dense<0.000000e+00> : vector<16x24xf32>
    %448 = tpu.matmul %437, %442, %cst_140 {dimension_numbers = #tpu.dot_dimension_numbers<[1], [1], [0], [0], [0, 0, 1, 0], [], []>} : vector<16x32xf32>, vector<24x32xf32>, vector<16x24xf32> -> vector<16x24xf32>
    %c0_141 = arith.constant 0 : index
    %c0_142 = arith.constant 0 : index
    %449 = vector.load %arg2[%c0_141, %c0_142] : memref<16x24xf32, #tpu.memory_space<vmem>>, vector<16x24xf32>
    %cst_143 = arith.constant 0.000000e+00 : f32
    %450 = vector.broadcast %cst_143 : f32 to vector<16x24xf32>
    %451 = arith.cmpf ogt, %449, %450 : vector<16x24xf32>
    %cst_144 = arith.constant -1.000000e+30 : f32
    %452 = vector.broadcast %cst_144 : f32 to vector<16x24xf32>
    %453 = arith.select %451, %448, %452 : vector<16x24xi1>, vector<16x24xf32>
    %cst_145 = arith.constant dense<0xFF800000> : vector<16xf32>
    %454 = vector.multi_reduction <maximumf>, %453, %cst_145 [1] : vector<16x24xf32> to vector<16xf32>
    %455 = vector.shape_cast %454 : vector<16xf32> to vector<16x1xf32>
    %456 = vector.broadcast %455 : vector<16x1xf32> to vector<16x24xf32>
    %457 = arith.subf %453, %456 : vector<16x24xf32>
    %458 = math.exp %457 : vector<16x24xf32>
    %cst_146 = arith.constant dense<0.000000e+00> : vector<16xf32>
    %459 = vector.multi_reduction <add>, %458, %cst_146 [1] : vector<16x24xf32> to vector<16xf32>
    %460 = vector.shape_cast %459 : vector<16xf32> to vector<16x1xf32>
    %461 = tpu.reciprocal %460 {approx = true} : vector<16x1xf32> -> vector<16x1xf32>
    %462 = vector.broadcast %461 : vector<16x1xf32> to vector<16x24xf32>
    %463 = arith.mulf %458, %462 : vector<16x24xf32>
    %c0_147 = arith.constant 0 : index
    %c0_148 = arith.constant 0 : index
    %464 = vector.load %arg27[%c0_147, %c0_148] : memref<16x24xf32, #tpu.memory_space<vmem>>, vector<16x24xf32>
    tpu.vector_store %arg27[%c0_147, %c0_148], %463 {strides = array<i32>} : memref<16x24xf32, #tpu.memory_space<vmem>>, vector<16x24xf32>,
    %cst_149 = arith.constant dense<0.000000e+00> : vector<16x32xf32>
    %465 = tpu.matmul %463, %447, %cst_149 {dimension_numbers = #tpu.dot_dimension_numbers<[1], [0], [0], [1], [0, 0, 1, 1], [], []>} : vector<16x24xf32>, vector<24x32xf32>, vector<16x32xf32> -> vector<16x32xf32>
    %c0_150 = arith.constant 0 : index
    %c0_151 = arith.constant 0 : index
    %466 = vector.load %arg19[%c0_150, %c0_151] : memref<32x96xf32, #tpu.memory_space<vmem>>, vector<32x96xf32>
    %cst_152 = arith.constant dense<0.000000e+00> : vector<16x96xf32>
    %467 = tpu.matmul %431, %466, %cst_152 {dimension_numbers = #tpu.dot_dimension_numbers<[1], [0], [0], [1], [0, 0, 1, 1], [], []>} : vector<16x32xf32>, vector<32x96xf32>, vector<16x96xf32> -> vector<16x96xf32>
    %c0_153 = arith.constant 0 : index
    %c0_154 = arith.constant 0 : index
    %468 = vector.load %arg20[%c0_153, %c0_154] : memref<32x96xf32, #tpu.memory_space<vmem>>, vector<32x96xf32>
    %cst_155 = arith.constant dense<0.000000e+00> : vector<16x96xf32>
    %469 = tpu.matmul %465, %468, %cst_155 {dimension_numbers = #tpu.dot_dimension_numbers<[1], [0], [0], [1], [0, 0, 1, 1], [], []>} : vector<16x32xf32>, vector<32x96xf32>, vector<16x96xf32> -> vector<16x96xf32>
    %470 = arith.addf %467, %469 : vector<16x96xf32>
    %c0_156 = arith.constant 0 : index
    %c0_157 = arith.constant 0 : index
    %471 = vector.load %arg22[%c0_156, %c0_157] : memref<1x96xf32, #tpu.memory_space<vmem>>, vector<1x96xf32>
    %472 = vector.broadcast %471 : vector<1x96xf32> to vector<16x96xf32>
    %473 = arith.addf %470, %472 : vector<16x96xf32>
    %c0_158 = arith.constant 0 : index
    %c0_159 = arith.constant 0 : index
    %474 = vector.load %arg28[%c0_158, %c0_159] : memref<16x96xf32, #tpu.memory_space<vmem>>, vector<16x96xf32>
    tpu.vector_store %arg28[%c0_158, %c0_159], %473 {strides = array<i32>} : memref<16x96xf32, #tpu.memory_space<vmem>>, vector<16x96xf32>,
    %c0_160 = arith.constant 0 : index
    %c0_161 = arith.constant 0 : index
    %475 = vector.load %arg21[%c0_160, %c0_161] : memref<32x96xf32, #tpu.memory_space<vmem>>, vector<32x96xf32>
    %c0_162 = arith.constant 0 : index
    %c0_163 = arith.constant 0 : index
    %476 = vector.load %arg23[%c0_162, %c0_163] : memref<1x32xf32, #tpu.memory_space<vmem>>, vector<1x32xf32>
    %477 = vector.shape_cast %476 : vector<1x32xf32> to vector<1x32xf32>
    %478 = vector.broadcast %477 : vector<1x32xf32> to vector<2x32xf32>
    %cst_164 = arith.constant 0.000000e+00 : f32
    %479 = vector.broadcast %cst_164 : f32 to vector<2x32xf32>
    %c0_165 = arith.constant 0 : index
    %c0_166 = arith.constant 0 : index
    %480 = vector.load %arg28[%c0_165, %c0_166] : memref<16x96xf32, #tpu.memory_space<vmem>>, vector<2x96xf32>
    %cst_167 = arith.constant dense<0.000000e+00> : vector<2x96xf32>
    %481 = tpu.matmul %479, %475, %cst_167 {dimension_numbers = #tpu.dot_dimension_numbers<[1], [0], [0], [1], [0, 0, 1, 1], [], []>} : vector<2x32xf32>, vector<32x96xf32>, vector<2x96xf32> -> vector<2x96xf32>
    %482 = vector.extract_strided_slice %480 {offsets = [0, 0], sizes = [2, 64], strides = [1, 1]} : vector<2x96xf32> to vector<2x64xf32>
    %483 = vector.extract_strided_slice %481 {offsets = [0, 0], sizes = [2, 64], strides = [1, 1]} : vector<2x96xf32> to vector<2x64xf32>
    %484 = arith.addf %482, %483 : vector<2x64xf32>
    %485 = arith.negf %484 : vector<2x64xf32>
    %486 = math.exp %485 : vector<2x64xf32>
    %cst_168 = arith.constant 1.000000e+00 : f32
    %487 = vector.broadcast %cst_168 : f32 to vector<2x64xf32>
    %488 = arith.addf %487, %486 : vector<2x64xf32>
    %489 = arith.divf %487, %488 : vector<2x64xf32>
    %490 = vector.extract_strided_slice %489 {offsets = [0, 0], sizes = [2, 32], strides = [1, 1]} : vector<2x64xf32> to vector<2x32xf32>
    %491 = vector.extract_strided_slice %489 {offsets = [0, 32], sizes = [2, 32], strides = [1, 1]} : vector<2x64xf32> to vector<2x32xf32>
    %492 = vector.extract_strided_slice %480 {offsets = [0, 64], sizes = [2, 32], strides = [1, 1]} : vector<2x96xf32> to vector<2x32xf32>
    %493 = vector.extract_strided_slice %481 {offsets = [0, 64], sizes = [2, 32], strides = [1, 1]} : vector<2x96xf32> to vector<2x32xf32>
    %494 = arith.addf %493, %478 : vector<2x32xf32>
    %495 = arith.mulf %490, %494 : vector<2x32xf32>
    %496 = arith.addf %492, %495 : vector<2x32xf32>
    %497 = math.tanh %496 : vector<2x32xf32>
    %cst_169 = arith.constant 1.000000e+00 : f32
    %498 = vector.broadcast %cst_169 : f32 to vector<2x32xf32>
    %499 = arith.subf %498, %491 : vector<2x32xf32>
    %500 = arith.mulf %499, %497 : vector<2x32xf32>
    %501 = arith.mulf %491, %479 : vector<2x32xf32>
    %502 = arith.addf %500, %501 : vector<2x32xf32>
    %c0_170 = arith.constant 0 : index
    %c0_171 = arith.constant 0 : index
    %503 = vector.load %arg30[%c0_170, %c0_171] : memref<16x32xf32, #tpu.memory_space<vmem>>, vector<2x32xf32>
    tpu.vector_store %arg30[%c0_170, %c0_171], %502 {strides = array<i32>} : memref<16x32xf32, #tpu.memory_space<vmem>>, vector<2x32xf32>,
    %c2_172 = arith.constant 2 : index
    %c0_173 = arith.constant 0 : index
    %504 = vector.load %arg28[%c2_172, %c0_173] : memref<16x96xf32, #tpu.memory_space<vmem>>, vector<2x96xf32>
    %cst_174 = arith.constant dense<0.000000e+00> : vector<2x96xf32>
    %505 = tpu.matmul %502, %475, %cst_174 {dimension_numbers = #tpu.dot_dimension_numbers<[1], [0], [0], [1], [0, 0, 1, 1], [], []>} : vector<2x32xf32>, vector<32x96xf32>, vector<2x96xf32> -> vector<2x96xf32>
    %506 = vector.extract_strided_slice %504 {offsets = [0, 0], sizes = [2, 64], strides = [1, 1]} : vector<2x96xf32> to vector<2x64xf32>
    %507 = vector.extract_strided_slice %505 {offsets = [0, 0], sizes = [2, 64], strides = [1, 1]} : vector<2x96xf32> to vector<2x64xf32>
    %508 = arith.addf %506, %507 : vector<2x64xf32>
    %509 = arith.negf %508 : vector<2x64xf32>
    %510 = math.exp %509 : vector<2x64xf32>
    %cst_175 = arith.constant 1.000000e+00 : f32
    %511 = vector.broadcast %cst_175 : f32 to vector<2x64xf32>
    %512 = arith.addf %511, %510 : vector<2x64xf32>
    %513 = arith.divf %511, %512 : vector<2x64xf32>
    %514 = vector.extract_strided_slice %513 {offsets = [0, 0], sizes = [2, 32], strides = [1, 1]} : vector<2x64xf32> to vector<2x32xf32>
    %515 = vector.extract_strided_slice %513 {offsets = [0, 32], sizes = [2, 32], strides = [1, 1]} : vector<2x64xf32> to vector<2x32xf32>
    %516 = vector.extract_strided_slice %504 {offsets = [0, 64], sizes = [2, 32], strides = [1, 1]} : vector<2x96xf32> to vector<2x32xf32>
    %517 = vector.extract_strided_slice %505 {offsets = [0, 64], sizes = [2, 32], strides = [1, 1]} : vector<2x96xf32> to vector<2x32xf32>
    %518 = arith.addf %517, %478 : vector<2x32xf32>
    %519 = arith.mulf %514, %518 : vector<2x32xf32>
    %520 = arith.addf %516, %519 : vector<2x32xf32>
    %521 = math.tanh %520 : vector<2x32xf32>
    %cst_176 = arith.constant 1.000000e+00 : f32
    %522 = vector.broadcast %cst_176 : f32 to vector<2x32xf32>
    %523 = arith.subf %522, %515 : vector<2x32xf32>
    %524 = arith.mulf %523, %521 : vector<2x32xf32>
    %525 = arith.mulf %515, %502 : vector<2x32xf32>
    %526 = arith.addf %524, %525 : vector<2x32xf32>
    %c2_177 = arith.constant 2 : index
    %c0_178 = arith.constant 0 : index
    %527 = vector.load %arg30[%c2_177, %c0_178] : memref<16x32xf32, #tpu.memory_space<vmem>>, vector<2x32xf32>
    tpu.vector_store %arg30[%c2_177, %c0_178], %526 {strides = array<i32>} : memref<16x32xf32, #tpu.memory_space<vmem>>, vector<2x32xf32>,
    %c4_179 = arith.constant 4 : index
    %c0_180 = arith.constant 0 : index
    %528 = vector.load %arg28[%c4_179, %c0_180] : memref<16x96xf32, #tpu.memory_space<vmem>>, vector<2x96xf32>
    %cst_181 = arith.constant dense<0.000000e+00> : vector<2x96xf32>
    %529 = tpu.matmul %526, %475, %cst_181 {dimension_numbers = #tpu.dot_dimension_numbers<[1], [0], [0], [1], [0, 0, 1, 1], [], []>} : vector<2x32xf32>, vector<32x96xf32>, vector<2x96xf32> -> vector<2x96xf32>
    %530 = vector.extract_strided_slice %528 {offsets = [0, 0], sizes = [2, 64], strides = [1, 1]} : vector<2x96xf32> to vector<2x64xf32>
    %531 = vector.extract_strided_slice %529 {offsets = [0, 0], sizes = [2, 64], strides = [1, 1]} : vector<2x96xf32> to vector<2x64xf32>
    %532 = arith.addf %530, %531 : vector<2x64xf32>
    %533 = arith.negf %532 : vector<2x64xf32>
    %534 = math.exp %533 : vector<2x64xf32>
    %cst_182 = arith.constant 1.000000e+00 : f32
    %535 = vector.broadcast %cst_182 : f32 to vector<2x64xf32>
    %536 = arith.addf %535, %534 : vector<2x64xf32>
    %537 = arith.divf %535, %536 : vector<2x64xf32>
    %538 = vector.extract_strided_slice %537 {offsets = [0, 0], sizes = [2, 32], strides = [1, 1]} : vector<2x64xf32> to vector<2x32xf32>
    %539 = vector.extract_strided_slice %537 {offsets = [0, 32], sizes = [2, 32], strides = [1, 1]} : vector<2x64xf32> to vector<2x32xf32>
    %540 = vector.extract_strided_slice %528 {offsets = [0, 64], sizes = [2, 32], strides = [1, 1]} : vector<2x96xf32> to vector<2x32xf32>
    %541 = vector.extract_strided_slice %529 {offsets = [0, 64], sizes = [2, 32], strides = [1, 1]} : vector<2x96xf32> to vector<2x32xf32>
    %542 = arith.addf %541, %478 : vector<2x32xf32>
    %543 = arith.mulf %538, %542 : vector<2x32xf32>
    %544 = arith.addf %540, %543 : vector<2x32xf32>
    %545 = math.tanh %544 : vector<2x32xf32>
    %cst_183 = arith.constant 1.000000e+00 : f32
    %546 = vector.broadcast %cst_183 : f32 to vector<2x32xf32>
    %547 = arith.subf %546, %539 : vector<2x32xf32>
    %548 = arith.mulf %547, %545 : vector<2x32xf32>
    %549 = arith.mulf %539, %526 : vector<2x32xf32>
    %550 = arith.addf %548, %549 : vector<2x32xf32>
    %c4_184 = arith.constant 4 : index
    %c0_185 = arith.constant 0 : index
    %551 = vector.load %arg30[%c4_184, %c0_185] : memref<16x32xf32, #tpu.memory_space<vmem>>, vector<2x32xf32>
    tpu.vector_store %arg30[%c4_184, %c0_185], %550 {strides = array<i32>} : memref<16x32xf32, #tpu.memory_space<vmem>>, vector<2x32xf32>,
    %c6_186 = arith.constant 6 : index
    %c0_187 = arith.constant 0 : index
    %552 = vector.load %arg28[%c6_186, %c0_187] : memref<16x96xf32, #tpu.memory_space<vmem>>, vector<2x96xf32>
    %cst_188 = arith.constant dense<0.000000e+00> : vector<2x96xf32>
    %553 = tpu.matmul %550, %475, %cst_188 {dimension_numbers = #tpu.dot_dimension_numbers<[1], [0], [0], [1], [0, 0, 1, 1], [], []>} : vector<2x32xf32>, vector<32x96xf32>, vector<2x96xf32> -> vector<2x96xf32>
    %554 = vector.extract_strided_slice %552 {offsets = [0, 0], sizes = [2, 64], strides = [1, 1]} : vector<2x96xf32> to vector<2x64xf32>
    %555 = vector.extract_strided_slice %553 {offsets = [0, 0], sizes = [2, 64], strides = [1, 1]} : vector<2x96xf32> to vector<2x64xf32>
    %556 = arith.addf %554, %555 : vector<2x64xf32>
    %557 = arith.negf %556 : vector<2x64xf32>
    %558 = math.exp %557 : vector<2x64xf32>
    %cst_189 = arith.constant 1.000000e+00 : f32
    %559 = vector.broadcast %cst_189 : f32 to vector<2x64xf32>
    %560 = arith.addf %559, %558 : vector<2x64xf32>
    %561 = arith.divf %559, %560 : vector<2x64xf32>
    %562 = vector.extract_strided_slice %561 {offsets = [0, 0], sizes = [2, 32], strides = [1, 1]} : vector<2x64xf32> to vector<2x32xf32>
    %563 = vector.extract_strided_slice %561 {offsets = [0, 32], sizes = [2, 32], strides = [1, 1]} : vector<2x64xf32> to vector<2x32xf32>
    %564 = vector.extract_strided_slice %552 {offsets = [0, 64], sizes = [2, 32], strides = [1, 1]} : vector<2x96xf32> to vector<2x32xf32>
    %565 = vector.extract_strided_slice %553 {offsets = [0, 64], sizes = [2, 32], strides = [1, 1]} : vector<2x96xf32> to vector<2x32xf32>
    %566 = arith.addf %565, %478 : vector<2x32xf32>
    %567 = arith.mulf %562, %566 : vector<2x32xf32>
    %568 = arith.addf %564, %567 : vector<2x32xf32>
    %569 = math.tanh %568 : vector<2x32xf32>
    %cst_190 = arith.constant 1.000000e+00 : f32
    %570 = vector.broadcast %cst_190 : f32 to vector<2x32xf32>
    %571 = arith.subf %570, %563 : vector<2x32xf32>
    %572 = arith.mulf %571, %569 : vector<2x32xf32>
    %573 = arith.mulf %563, %550 : vector<2x32xf32>
    %574 = arith.addf %572, %573 : vector<2x32xf32>
    %c6_191 = arith.constant 6 : index
    %c0_192 = arith.constant 0 : index
    %575 = vector.load %arg30[%c6_191, %c0_192] : memref<16x32xf32, #tpu.memory_space<vmem>>, vector<2x32xf32>
    tpu.vector_store %arg30[%c6_191, %c0_192], %574 {strides = array<i32>} : memref<16x32xf32, #tpu.memory_space<vmem>>, vector<2x32xf32>,
    %c8_193 = arith.constant 8 : index
    %c0_194 = arith.constant 0 : index
    %576 = vector.load %arg28[%c8_193, %c0_194] : memref<16x96xf32, #tpu.memory_space<vmem>>, vector<2x96xf32>
    %cst_195 = arith.constant dense<0.000000e+00> : vector<2x96xf32>
    %577 = tpu.matmul %574, %475, %cst_195 {dimension_numbers = #tpu.dot_dimension_numbers<[1], [0], [0], [1], [0, 0, 1, 1], [], []>} : vector<2x32xf32>, vector<32x96xf32>, vector<2x96xf32> -> vector<2x96xf32>
    %578 = vector.extract_strided_slice %576 {offsets = [0, 0], sizes = [2, 64], strides = [1, 1]} : vector<2x96xf32> to vector<2x64xf32>
    %579 = vector.extract_strided_slice %577 {offsets = [0, 0], sizes = [2, 64], strides = [1, 1]} : vector<2x96xf32> to vector<2x64xf32>
    %580 = arith.addf %578, %579 : vector<2x64xf32>
    %581 = arith.negf %580 : vector<2x64xf32>
    %582 = math.exp %581 : vector<2x64xf32>
    %cst_196 = arith.constant 1.000000e+00 : f32
    %583 = vector.broadcast %cst_196 : f32 to vector<2x64xf32>
    %584 = arith.addf %583, %582 : vector<2x64xf32>
    %585 = arith.divf %583, %584 : vector<2x64xf32>
    %586 = vector.extract_strided_slice %585 {offsets = [0, 0], sizes = [2, 32], strides = [1, 1]} : vector<2x64xf32> to vector<2x32xf32>
    %587 = vector.extract_strided_slice %585 {offsets = [0, 32], sizes = [2, 32], strides = [1, 1]} : vector<2x64xf32> to vector<2x32xf32>
    %588 = vector.extract_strided_slice %576 {offsets = [0, 64], sizes = [2, 32], strides = [1, 1]} : vector<2x96xf32> to vector<2x32xf32>
    %589 = vector.extract_strided_slice %577 {offsets = [0, 64], sizes = [2, 32], strides = [1, 1]} : vector<2x96xf32> to vector<2x32xf32>
    %590 = arith.addf %589, %478 : vector<2x32xf32>
    %591 = arith.mulf %586, %590 : vector<2x32xf32>
    %592 = arith.addf %588, %591 : vector<2x32xf32>
    %593 = math.tanh %592 : vector<2x32xf32>
    %cst_197 = arith.constant 1.000000e+00 : f32
    %594 = vector.broadcast %cst_197 : f32 to vector<2x32xf32>
    %595 = arith.subf %594, %587 : vector<2x32xf32>
    %596 = arith.mulf %595, %593 : vector<2x32xf32>
    %597 = arith.mulf %587, %574 : vector<2x32xf32>
    %598 = arith.addf %596, %597 : vector<2x32xf32>
    %c8_198 = arith.constant 8 : index
    %c0_199 = arith.constant 0 : index
    %599 = vector.load %arg30[%c8_198, %c0_199] : memref<16x32xf32, #tpu.memory_space<vmem>>, vector<2x32xf32>
    tpu.vector_store %arg30[%c8_198, %c0_199], %598 {strides = array<i32>} : memref<16x32xf32, #tpu.memory_space<vmem>>, vector<2x32xf32>,
    %c10_200 = arith.constant 10 : index
    %c0_201 = arith.constant 0 : index
    %600 = vector.load %arg28[%c10_200, %c0_201] : memref<16x96xf32, #tpu.memory_space<vmem>>, vector<2x96xf32>
    %cst_202 = arith.constant dense<0.000000e+00> : vector<2x96xf32>
    %601 = tpu.matmul %598, %475, %cst_202 {dimension_numbers = #tpu.dot_dimension_numbers<[1], [0], [0], [1], [0, 0, 1, 1], [], []>} : vector<2x32xf32>, vector<32x96xf32>, vector<2x96xf32> -> vector<2x96xf32>
    %602 = vector.extract_strided_slice %600 {offsets = [0, 0], sizes = [2, 64], strides = [1, 1]} : vector<2x96xf32> to vector<2x64xf32>
    %603 = vector.extract_strided_slice %601 {offsets = [0, 0], sizes = [2, 64], strides = [1, 1]} : vector<2x96xf32> to vector<2x64xf32>
    %604 = arith.addf %602, %603 : vector<2x64xf32>
    %605 = arith.negf %604 : vector<2x64xf32>
    %606 = math.exp %605 : vector<2x64xf32>
    %cst_203 = arith.constant 1.000000e+00 : f32
    %607 = vector.broadcast %cst_203 : f32 to vector<2x64xf32>
    %608 = arith.addf %607, %606 : vector<2x64xf32>
    %609 = arith.divf %607, %608 : vector<2x64xf32>
    %610 = vector.extract_strided_slice %609 {offsets = [0, 0], sizes = [2, 32], strides = [1, 1]} : vector<2x64xf32> to vector<2x32xf32>
    %611 = vector.extract_strided_slice %609 {offsets = [0, 32], sizes = [2, 32], strides = [1, 1]} : vector<2x64xf32> to vector<2x32xf32>
    %612 = vector.extract_strided_slice %600 {offsets = [0, 64], sizes = [2, 32], strides = [1, 1]} : vector<2x96xf32> to vector<2x32xf32>
    %613 = vector.extract_strided_slice %601 {offsets = [0, 64], sizes = [2, 32], strides = [1, 1]} : vector<2x96xf32> to vector<2x32xf32>
    %614 = arith.addf %613, %478 : vector<2x32xf32>
    %615 = arith.mulf %610, %614 : vector<2x32xf32>
    %616 = arith.addf %612, %615 : vector<2x32xf32>
    %617 = math.tanh %616 : vector<2x32xf32>
    %cst_204 = arith.constant 1.000000e+00 : f32
    %618 = vector.broadcast %cst_204 : f32 to vector<2x32xf32>
    %619 = arith.subf %618, %611 : vector<2x32xf32>
    %620 = arith.mulf %619, %617 : vector<2x32xf32>
    %621 = arith.mulf %611, %598 : vector<2x32xf32>
    %622 = arith.addf %620, %621 : vector<2x32xf32>
    %c10_205 = arith.constant 10 : index
    %c0_206 = arith.constant 0 : index
    %623 = vector.load %arg30[%c10_205, %c0_206] : memref<16x32xf32, #tpu.memory_space<vmem>>, vector<2x32xf32>
    tpu.vector_store %arg30[%c10_205, %c0_206], %622 {strides = array<i32>} : memref<16x32xf32, #tpu.memory_space<vmem>>, vector<2x32xf32>,
    %c12_207 = arith.constant 12 : index
    %c0_208 = arith.constant 0 : index
    %624 = vector.load %arg28[%c12_207, %c0_208] : memref<16x96xf32, #tpu.memory_space<vmem>>, vector<2x96xf32>
    %cst_209 = arith.constant dense<0.000000e+00> : vector<2x96xf32>
    %625 = tpu.matmul %622, %475, %cst_209 {dimension_numbers = #tpu.dot_dimension_numbers<[1], [0], [0], [1], [0, 0, 1, 1], [], []>} : vector<2x32xf32>, vector<32x96xf32>, vector<2x96xf32> -> vector<2x96xf32>
    %626 = vector.extract_strided_slice %624 {offsets = [0, 0], sizes = [2, 64], strides = [1, 1]} : vector<2x96xf32> to vector<2x64xf32>
    %627 = vector.extract_strided_slice %625 {offsets = [0, 0], sizes = [2, 64], strides = [1, 1]} : vector<2x96xf32> to vector<2x64xf32>
    %628 = arith.addf %626, %627 : vector<2x64xf32>
    %629 = arith.negf %628 : vector<2x64xf32>
    %630 = math.exp %629 : vector<2x64xf32>
    %cst_210 = arith.constant 1.000000e+00 : f32
    %631 = vector.broadcast %cst_210 : f32 to vector<2x64xf32>
    %632 = arith.addf %631, %630 : vector<2x64xf32>
    %633 = arith.divf %631, %632 : vector<2x64xf32>
    %634 = vector.extract_strided_slice %633 {offsets = [0, 0], sizes = [2, 32], strides = [1, 1]} : vector<2x64xf32> to vector<2x32xf32>
    %635 = vector.extract_strided_slice %633 {offsets = [0, 32], sizes = [2, 32], strides = [1, 1]} : vector<2x64xf32> to vector<2x32xf32>
    %636 = vector.extract_strided_slice %624 {offsets = [0, 64], sizes = [2, 32], strides = [1, 1]} : vector<2x96xf32> to vector<2x32xf32>
    %637 = vector.extract_strided_slice %625 {offsets = [0, 64], sizes = [2, 32], strides = [1, 1]} : vector<2x96xf32> to vector<2x32xf32>
    %638 = arith.addf %637, %478 : vector<2x32xf32>
    %639 = arith.mulf %634, %638 : vector<2x32xf32>
    %640 = arith.addf %636, %639 : vector<2x32xf32>
    %641 = math.tanh %640 : vector<2x32xf32>
    %cst_211 = arith.constant 1.000000e+00 : f32
    %642 = vector.broadcast %cst_211 : f32 to vector<2x32xf32>
    %643 = arith.subf %642, %635 : vector<2x32xf32>
    %644 = arith.mulf %643, %641 : vector<2x32xf32>
    %645 = arith.mulf %635, %622 : vector<2x32xf32>
    %646 = arith.addf %644, %645 : vector<2x32xf32>
    %c12_212 = arith.constant 12 : index
    %c0_213 = arith.constant 0 : index
    %647 = vector.load %arg30[%c12_212, %c0_213] : memref<16x32xf32, #tpu.memory_space<vmem>>, vector<2x32xf32>
    tpu.vector_store %arg30[%c12_212, %c0_213], %646 {strides = array<i32>} : memref<16x32xf32, #tpu.memory_space<vmem>>, vector<2x32xf32>,
    %c14_214 = arith.constant 14 : index
    %c0_215 = arith.constant 0 : index
    %648 = vector.load %arg28[%c14_214, %c0_215] : memref<16x96xf32, #tpu.memory_space<vmem>>, vector<2x96xf32>
    %cst_216 = arith.constant dense<0.000000e+00> : vector<2x96xf32>
    %649 = tpu.matmul %646, %475, %cst_216 {dimension_numbers = #tpu.dot_dimension_numbers<[1], [0], [0], [1], [0, 0, 1, 1], [], []>} : vector<2x32xf32>, vector<32x96xf32>, vector<2x96xf32> -> vector<2x96xf32>
    %650 = vector.extract_strided_slice %648 {offsets = [0, 0], sizes = [2, 64], strides = [1, 1]} : vector<2x96xf32> to vector<2x64xf32>
    %651 = vector.extract_strided_slice %649 {offsets = [0, 0], sizes = [2, 64], strides = [1, 1]} : vector<2x96xf32> to vector<2x64xf32>
    %652 = arith.addf %650, %651 : vector<2x64xf32>
    %653 = arith.negf %652 : vector<2x64xf32>
    %654 = math.exp %653 : vector<2x64xf32>
    %cst_217 = arith.constant 1.000000e+00 : f32
    %655 = vector.broadcast %cst_217 : f32 to vector<2x64xf32>
    %656 = arith.addf %655, %654 : vector<2x64xf32>
    %657 = arith.divf %655, %656 : vector<2x64xf32>
    %658 = vector.extract_strided_slice %657 {offsets = [0, 0], sizes = [2, 32], strides = [1, 1]} : vector<2x64xf32> to vector<2x32xf32>
    %659 = vector.extract_strided_slice %657 {offsets = [0, 32], sizes = [2, 32], strides = [1, 1]} : vector<2x64xf32> to vector<2x32xf32>
    %660 = vector.extract_strided_slice %648 {offsets = [0, 64], sizes = [2, 32], strides = [1, 1]} : vector<2x96xf32> to vector<2x32xf32>
    %661 = vector.extract_strided_slice %649 {offsets = [0, 64], sizes = [2, 32], strides = [1, 1]} : vector<2x96xf32> to vector<2x32xf32>
    %662 = arith.addf %661, %478 : vector<2x32xf32>
    %663 = arith.mulf %658, %662 : vector<2x32xf32>
    %664 = arith.addf %660, %663 : vector<2x32xf32>
    %665 = math.tanh %664 : vector<2x32xf32>
    %cst_218 = arith.constant 1.000000e+00 : f32
    %666 = vector.broadcast %cst_218 : f32 to vector<2x32xf32>
    %667 = arith.subf %666, %659 : vector<2x32xf32>
    %668 = arith.mulf %667, %665 : vector<2x32xf32>
    %669 = arith.mulf %659, %646 : vector<2x32xf32>
    %670 = arith.addf %668, %669 : vector<2x32xf32>
    %c14_219 = arith.constant 14 : index
    %c0_220 = arith.constant 0 : index
    %671 = vector.load %arg30[%c14_219, %c0_220] : memref<16x32xf32, #tpu.memory_space<vmem>>, vector<2x32xf32>
    tpu.vector_store %arg30[%c14_219, %c0_220], %670 {strides = array<i32>} : memref<16x32xf32, #tpu.memory_space<vmem>>, vector<2x32xf32>,
    %c0_221 = arith.constant 0 : index
    %c0_222 = arith.constant 0 : index
    %672 = vector.load %arg30[%c0_221, %c0_222] : memref<16x32xf32, #tpu.memory_space<vmem>>, vector<16x32xf32>
    %c0_223 = arith.constant 0 : index
    %c0_224 = arith.constant 0 : index
    %673 = vector.load %arg24[%c0_223, %c0_224] : memref<32x16xf32, #tpu.memory_space<vmem>>, vector<32x16xf32>
    %cst_225 = arith.constant dense<0.000000e+00> : vector<16x16xf32>
    %674 = tpu.matmul %672, %673, %cst_225 {dimension_numbers = #tpu.dot_dimension_numbers<[1], [0], [0], [1], [0, 0, 1, 1], [], []>} : vector<16x32xf32>, vector<32x16xf32>, vector<16x16xf32> -> vector<16x16xf32>
    %c0_226 = arith.constant 0 : index
    %c0_227 = arith.constant 0 : index
    %675 = vector.load %arg25[%c0_226, %c0_227] : memref<1x16xf32, #tpu.memory_space<vmem>>, vector<1x16xf32>
    %676 = vector.broadcast %675 : vector<1x16xf32> to vector<16x16xf32>
    %677 = arith.addf %674, %676 : vector<16x16xf32>
    %678 = vector.extract_strided_slice %677 {offsets = [0, 0], sizes = [16, 10], strides = [1, 1]} : vector<16x16xf32> to vector<16x10xf32>
    %679 = vector.extract_strided_slice %677 {offsets = [0, 10], sizes = [16, 6], strides = [1, 1]} : vector<16x16xf32> to vector<16x6xf32>
    %cst_228 = arith.constant dense<0xFF800000> : vector<16xf32>
    %680 = vector.multi_reduction <maximumf>, %678, %cst_228 [1] : vector<16x10xf32> to vector<16xf32>
    %681 = vector.shape_cast %680 : vector<16xf32> to vector<16x1xf32>
    %682 = vector.broadcast %681 : vector<16x1xf32> to vector<16x10xf32>
    %683 = arith.subf %678, %682 : vector<16x10xf32>
    %684 = math.exp %683 : vector<16x10xf32>
    %cst_229 = arith.constant dense<0.000000e+00> : vector<16xf32>
    %685 = vector.multi_reduction <add>, %684, %cst_229 [1] : vector<16x10xf32> to vector<16xf32>
    %686 = vector.shape_cast %685 : vector<16xf32> to vector<16x1xf32>
    %687 = tpu.reciprocal %686 {approx = true} : vector<16x1xf32> -> vector<16x1xf32>
    %688 = vector.broadcast %687 : vector<16x1xf32> to vector<16x10xf32>
    %689 = arith.mulf %684, %688 : vector<16x10xf32>
    %cst_230 = arith.constant dense<0xFF800000> : vector<16xf32>
    %690 = vector.multi_reduction <maximumf>, %679, %cst_230 [1] : vector<16x6xf32> to vector<16xf32>
    %691 = vector.shape_cast %690 : vector<16xf32> to vector<16x1xf32>
    %692 = vector.broadcast %691 : vector<16x1xf32> to vector<16x6xf32>
    %693 = arith.subf %679, %692 : vector<16x6xf32>
    %694 = math.exp %693 : vector<16x6xf32>
    %cst_231 = arith.constant dense<0.000000e+00> : vector<16xf32>
    %695 = vector.multi_reduction <add>, %694, %cst_231 [1] : vector<16x6xf32> to vector<16xf32>
    %696 = vector.shape_cast %695 : vector<16xf32> to vector<16x1xf32>
    %697 = tpu.reciprocal %696 {approx = true} : vector<16x1xf32> -> vector<16x1xf32>
    %698 = vector.broadcast %697 : vector<16x1xf32> to vector<16x6xf32>
    %699 = arith.mulf %694, %698 : vector<16x6xf32>
    %c0_232 = arith.constant 0 : index
    %c0_233 = arith.constant 0 : index
    %700 = vector.load %arg26[%c0_232, %c0_233] : memref<16x16xf32, #tpu.memory_space<vmem>>, vector<16x10xf32>
    tpu.vector_store %arg26[%c0_232, %c0_233], %689 {strides = array<i32>} : memref<16x16xf32, #tpu.memory_space<vmem>>, vector<16x10xf32>,
    %c0_234 = arith.constant 0 : index
    %c10_235 = arith.constant 10 : index
    %701 = vector.load %arg26[%c0_234, %c10_235] : memref<16x16xf32, #tpu.memory_space<vmem>>, vector<16x6xf32>
    tpu.vector_store %arg26[%c0_234, %c10_235], %699 {strides = array<i32>} : memref<16x16xf32, #tpu.memory_space<vmem>>, vector<16x6xf32>,
    return
  }
}

</mosaic_0001>

<llo_original>
// kernel: tpu_custom_call.1
$region0: #{tpu_custom_call.1}
  #allocation0 [shape = 'u32[]', space=smem, size = 0x4, offset = 0x4, fixed_abs, tag = 'smem constant byte address 0x4 - core index']
  #allocation1 [shape = 'u32[144,128]{1,0:T(1,128)}', space=vmem, size = 0x12000, scoped, tag = 'internal scratch']
  #allocation2 [shape = 'f32[16,96]{1,0:T(8,128)}', space=vmem, size = 0x2000, scoped, tag = 'scratch operand']
  #allocation3 [shape = 'f32[16,32]{1,0:T(8,128)}', space=vmem, size = 0x2000, scoped, tag = 'scratch operand']
  #allocation4 [shape = 'f32[16,32]{1,0:T(8,128)}', space=vmem, size = 0x2000, scoped, tag = 'scratch operand']
  %s0 = inlined_call_operand.hbm [shape: f32[16,24], index: 0, kind: input, shape index: {}]
  %s1 = inlined_call_operand.vmem [shape: f32[16,1], index: 1, kind: input, shape index: {}]
  %s2 = inlined_call_operand.hbm [shape: f32[16,24], index: 2, kind: input, shape index: {}]
  %s3 = inlined_call_operand.hbm [shape: f32[24,32], index: 3, kind: input, shape index: {}]
  %s4 = inlined_call_operand.hbm [shape: f32[2,2,32], index: 4, kind: input, shape index: {}]
  %s5 = inlined_call_operand.hbm [shape: f32[24,96], index: 5, kind: input, shape index: {}]
  %s6 = inlined_call_operand.vmem [shape: f32[32,96], index: 6, kind: input, shape index: {}]
  %s7 = inlined_call_operand.hbm [shape: f32[1,96], index: 7, kind: input, shape index: {}]
  %s8 = inlined_call_operand.hbm [shape: f32[1,32], index: 8, kind: input, shape index: {}]
  %s9 = inlined_call_operand.vmem [shape: f32[32,96], index: 9, kind: input, shape index: {}]
  %s10 = inlined_call_operand.vmem [shape: f32[32,96], index: 10, kind: input, shape index: {}]
  %s11 = inlined_call_operand.hbm [shape: f32[1,96], index: 11, kind: input, shape index: {}]
  %s12 = inlined_call_operand.hbm [shape: f32[1,32], index: 12, kind: input, shape index: {}]
  %s13 = inlined_call_operand.hbm [shape: f32[32,32], index: 13, kind: input, shape index: {}]
  %s14 = inlined_call_operand.hbm [shape: f32[1,32], index: 14, kind: input, shape index: {}]
  %s15 = inlined_call_operand.hbm [shape: f32[32,32], index: 15, kind: input, shape index: {}]
  %s16 = inlined_call_operand.hbm [shape: f32[1,32], index: 16, kind: input, shape index: {}]
  %s17 = inlined_call_operand.vmem [shape: f32[32,32], index: 17, kind: input, shape index: {}]
  %s18 = inlined_call_operand.hbm [shape: f32[1,32], index: 18, kind: input, shape index: {}]
  %s19 = inlined_call_operand.hbm [shape: f32[32,96], index: 19, kind: input, shape index: {}]
  %s20 = inlined_call_operand.hbm [shape: f32[32,96], index: 20, kind: input, shape index: {}]
  %s21 = inlined_call_operand.hbm [shape: f32[32,96], index: 21, kind: input, shape index: {}]
  %s22 = inlined_call_operand.vmem [shape: f32[1,96], index: 22, kind: input, shape index: {}]
  %s23 = inlined_call_operand.vmem [shape: f32[1,32], index: 23, kind: input, shape index: {}]
  %s24 = inlined_call_operand.vmem [shape: f32[32,16], index: 24, kind: input, shape index: {}]
  %s25 = inlined_call_operand.vmem [shape: f32[1,16], index: 25, kind: input, shape index: {}]
  %s26 = inlined_call_operand.hbm [shape: f32[16,16], index: 26, kind: output, shape index: {0}]
  %s27 = inlined_call_operand.hbm [shape: f32[16,24], index: 27, kind: output, shape index: {1}]
  %28 = xla_tuple %s26, %s27
  %s29 = sld [smem:[#allocation0]]
  $region190: #{tpu_custom_call.1} parent=0
    _
  %s31 = ssub.s32 1, %s29
  %s32 = scalar_select 0, %s31, %s29
  $region1: #{tpu_custom_call.1} parent=0
    #allocation5 [shape = 'u8[8192]{0}', space=vmem, size = 0x2000, scoped, tag = 'input window, operand 0, single buffered']
    #allocation6 [shape = 's32[1]{0}', space=sflag, size = 0x4, scoped, tag = 'scoped memory for tpu_custom_call.1']
    #allocation7 [shape = 's32[1]{0}', space=sflag, size = 0x4, scoped, tag = 'scoped memory for tpu_custom_call.1']
    #allocation8 [shape = 'u8[8192]{0}', space=vmem, size = 0x2000, scoped, tag = 'input window, operand 2, single buffered']
    #allocation9 [shape = 's32[1]{0}', space=sflag, size = 0x4, scoped, tag = 'scoped memory for tpu_custom_call.1']
    #allocation10 [shape = 'u8[12288]{0}', space=vmem, size = 0x3000, scoped, tag = 'input window, operand 3, single buffered']
    #allocation11 [shape = 'u8[2048]{0}', space=vmem, size = 0x800, scoped, tag = 'input window, operand 4, single buffered']
    #allocation12 [shape = 's32[1]{0}', space=sflag, size = 0x4, scoped, tag = 'scoped memory for tpu_custom_call.1']
    #allocation13 [shape = 'u8[12288]{0}', space=vmem, size = 0x3000, scoped, tag = 'input window, operand 5, single buffered']
    #allocation14 [shape = 'u8[512]{0}', space=vmem, size = 0x400, scoped, tag = 'input window, operand 7, single buffered']
    #allocation15 [shape = 's32[1]{0}', space=sflag, size = 0x4, scoped, tag = 'scoped memory for tpu_custom_call.1']
    #allocation16 [shape = 'u8[512]{0}', space=vmem, size = 0x400, scoped, tag = 'input window, operand 8, single buffered']
    #allocation17 [shape = 'u8[512]{0}', space=vmem, size = 0x400, scoped, tag = 'input window, operand 11, single buffered']
    #allocation18 [shape = 's32[1]{0}', space=sflag, size = 0x4, scoped, tag = 'scoped memory for tpu_custom_call.1']
    #allocation19 [shape = 'u8[512]{0}', space=vmem, size = 0x400, scoped, tag = 'input window, operand 12, single buffered']
    #allocation20 [shape = 'u8[16384]{0}', space=vmem, size = 0x4000, scoped, tag = 'input window, operand 13, single buffered']
    #allocation21 [shape = 's32[1]{0}', space=sflag, size = 0x4, scoped, tag = 'scoped memory for tpu_custom_call.1']
    #allocation22 [shape = 'u8[512]{0}', space=vmem, size = 0x400, scoped, tag = 'input window, operand 14, single buffered']
    #allocation23 [shape = 'u8[16384]{0}', space=vmem, size = 0x4000, scoped, tag = 'input window, operand 15, single buffered']
    #allocation24 [shape = 's32[1]{0}', space=sflag, size = 0x4, scoped, tag = 'scoped memory for tpu_custom_call.1']
    #allocation25 [shape = 'u8[512]{0}', space=vmem, size = 0x400, scoped, tag = 'input window, operand 16, single buffered']
    #allocation26 [shape = 'u8[512]{0}', space=vmem, size = 0x400, scoped, tag = 'input window, operand 18, single buffered']
    #allocation27 [shape = 's32[1]{0}', space=sflag, size = 0x4, scoped, tag = 'scoped memory for tpu_custom_call.1']
    #allocation28 [shape = 'u8[16384]{0}', space=vmem, size = 0x4000, scoped, tag = 'input window, operand 19, single buffered']
    #allocation29 [shape = 'u8[16384]{0}', space=vmem, size = 0x4000, scoped, tag = 'input window, operand 20, single buffered']
    #allocation30 [shape = 's32[1]{0}', space=sflag, size = 0x4, scoped, tag = 'scoped memory for tpu_custom_call.1']
    #allocation31 [shape = 'u8[16384]{0}', space=vmem, size = 0x4000, scoped, tag = 'input window, operand 21, single buffered']
    #allocation32 [shape = 'u8[8192]{0}', space=vmem, size = 0x2000, scoped, tag = 'output window, operand 0, single buffered']
    #allocation33 [shape = 'u8[8192]{0}', space=vmem, size = 0x2000, scoped, tag = 'output window, operand 1, single buffered']
    #allocation34 [shape = 's32[1]{0}', space=sflag, size = 0x4, scoped, tag = 'scoped memory for tpu_custom_call.1']
    %33 = vsyncpa [#allocation6], 0
    %34 = vsyncpa [#allocation9], 0
    %35 = vsyncpa [#allocation12], 0
    %36 = vsyncpa [#allocation15], 0
    %37 = vsyncpa [#allocation18], 0
    %38 = vsyncpa [#allocation21], 0
    %39 = vsyncpa [#allocation24], 0
    %40 = vsyncpa [#allocation27], 0
    %41 = vsyncpa [#allocation30], 0
    %42 = vsyncpa [#allocation7], 0
    %43 = vsyncpa [#allocation34], 0
    // Predicated region
    $region2: #{tpu_custom_call.1} parent=1 // pred_check
      _
    $region3: #{tpu_custom_call.1} parent=1 // pred_check_branch
      %45 = sbr.rel (0) target = $region5
    $region4: #{tpu_custom_call.1} parent=1 // pred_region
      %s47 = ssub.s32 256, 256
      %48 = vsyncadd [#allocation6], %s47
      %s49 = sshll.u32 [#allocation5], 4
      %s50 = int_to_ptr.vmem [resolvable:$true] %s49
      %55 = dma.hbm_to_vmem [thread:$0]  %s0, 256, %s50, [#allocation6], 128, 128, 8
    $region5: #{tpu_custom_call.1} parent=1 // pred_fallthru
      _
    // Predicated region
    $region6: #{tpu_custom_call.1} parent=1 // pred_check
      _
    $region7: #{tpu_custom_call.1} parent=1 // pred_check_branch
      %57 = sbr.rel (0) target = $region9
    $region8: #{tpu_custom_call.1} parent=1 // pred_region
      _
    $region9: #{tpu_custom_call.1} parent=1 // pred_fallthru
      _
    // Predicated region
    $region10: #{tpu_custom_call.1} parent=1 // pred_check
      _
    $region11: #{tpu_custom_call.1} parent=1 // pred_check_branch
      %59 = sbr.rel (0) target = $region13
    $region12: #{tpu_custom_call.1} parent=1 // pred_region
      %s61 = ssub.s32 256, 256
      %62 = vsyncadd [#allocation9], %s61
      %s63 = sshll.u32 [#allocation8], 4
      %s64 = int_to_ptr.vmem [resolvable:$true] %s63
      %69 = dma.hbm_to_vmem [thread:$0]  %s2, 256, %s64, [#allocation9], 128, 128, 8
    $region13: #{tpu_custom_call.1} parent=1 // pred_fallthru
      _
    // Predicated region
    $region14: #{tpu_custom_call.1} parent=1 // pred_check
      _
    $region15: #{tpu_custom_call.1} parent=1 // pred_check_branch
      %71 = sbr.rel (0) target = $region17
    $region16: #{tpu_custom_call.1} parent=1 // pred_region
      %s73 = ssub.s32 384, 384
      %74 = vsyncadd [#allocation9], %s73
      %s75 = sshll.u32 [#allocation10], 4
      %s76 = int_to_ptr.vmem [resolvable:$true] %s75
      %81 = dma.hbm_to_vmem [thread:$0]  %s3, 384, %s76, [#allocation9], 128, 128, 8
    $region17: #{tpu_custom_call.1} parent=1 // pred_fallthru
      _
    // Predicated region
    $region18: #{tpu_custom_call.1} parent=1 // pred_check
      _
    $region19: #{tpu_custom_call.1} parent=1 // pred_check_branch
      %83 = sbr.rel (0) target = $region21
    $region20: #{tpu_custom_call.1} parent=1 // pred_region
      %s85 = ssub.s32 64, 64
      %86 = vsyncadd [#allocation12], %s85
      %s87 = sshll.u32 [#allocation11], 4
      %s88 = int_to_ptr.vmem [resolvable:$true] %s87
      %93 = dma.hbm_to_vmem [thread:$0]  %s4, 64, %s88, [#allocation12], 32, 32, 2
    $region21: #{tpu_custom_call.1} parent=1 // pred_fallthru
      _
    // Predicated region
    $region22: #{tpu_custom_call.1} parent=1 // pred_check
      _
    $region23: #{tpu_custom_call.1} parent=1 // pred_check_branch
      %95 = sbr.rel (0) target = $region25
    $region24: #{tpu_custom_call.1} parent=1 // pred_region
      %s97 = ssub.s32 384, 384
      %98 = vsyncadd [#allocation12], %s97
      %s99 = sshll.u32 [#allocation13], 4
      %s100 = int_to_ptr.vmem [resolvable:$true] %s99
      %105 = dma.hbm_to_vmem [thread:$0]  %s5, 384, %s100, [#allocation12], 128, 128, 8
    $region25: #{tpu_custom_call.1} parent=1 // pred_fallthru
      _
    // Predicated region
    $region26: #{tpu_custom_call.1} parent=1 // pred_check
      _
    $region27: #{tpu_custom_call.1} parent=1 // pred_check_branch
      %107 = sbr.rel (0) target = $region29
    $region28: #{tpu_custom_call.1} parent=1 // pred_region
      _
    $region29: #{tpu_custom_call.1} parent=1 // pred_fallthru
      _
    // Predicated region
    $region30: #{tpu_custom_call.1} parent=1 // pred_check
      _
    $region31: #{tpu_custom_call.1} parent=1 // pred_check_branch
      %109 = sbr.rel (0) target = $region33
    $region32: #{tpu_custom_call.1} parent=1 // pred_region
      %s111 = ssub.s32 16, 16
      %112 = vsyncadd [#allocation15], %s111
      %s114 = sshll.u32 [#allocation14], 4
      %s115 = int_to_ptr.vmem [resolvable:$true] %s114
      %117 = dma.hbm_to_vmem [thread:$0]  %s7, 16, %s115, [#allocation15]
    $region33: #{tpu_custom_call.1} parent=1 // pred_fallthru
      _
    // Predicated region
    $region34: #{tpu_custom_call.1} parent=1 // pred_check
      _
    $region35: #{tpu_custom_call.1} parent=1 // pred_check_branch
      %119 = sbr.rel (0) target = $region37
    $region36: #{tpu_custom_call.1} parent=1 // pred_region
      %s121 = ssub.s32 16, 16
      %122 = vsyncadd [#allocation15], %s121
      %s124 = sshll.u32 [#allocation16], 4
      %s125 = int_to_ptr.vmem [resolvable:$true] %s124
      %127 = dma.hbm_to_vmem [thread:$0]  %s8, 16, %s125, [#allocation15]
    $region37: #{tpu_custom_call.1} parent=1 // pred_fallthru
      _
    // Predicated region
    $region38: #{tpu_custom_call.1} parent=1 // pred_check
      _
    $region39: #{tpu_custom_call.1} parent=1 // pred_check_branch
      %129 = sbr.rel (0) target = $region41
    $region40: #{tpu_custom_call.1} parent=1 // pred_region
      _
    $region41: #{tpu_custom_call.1} parent=1 // pred_fallthru
      _
    // Predicated region
    $region42: #{tpu_custom_call.1} parent=1 // pred_check
      _
    $region43: #{tpu_custom_call.1} parent=1 // pred_check_branch
      %131 = sbr.rel (0) target = $region45
    $region44: #{tpu_custom_call.1} parent=1 // pred_region
      _
    $region45: #{tpu_custom_call.1} parent=1 // pred_fallthru
      _
    // Predicated region
    $region46: #{tpu_custom_call.1} parent=1 // pred_check
      _
    $region47: #{tpu_custom_call.1} parent=1 // pred_check_branch
      %133 = sbr.rel (0) target = $region49
    $region48: #{tpu_custom_call.1} parent=1 // pred_region
      %s135 = ssub.s32 16, 16
      %136 = vsyncadd [#allocation18], %s135
      %s138 = sshll.u32 [#allocation17], 4
      %s139 = int_to_ptr.vmem [resolvable:$true] %s138
      %141 = dma.hbm_to_vmem [thread:$0]  %s11, 16, %s139, [#allocation18]
    $region49: #{tpu_custom_call.1} parent=1 // pred_fallthru
      _
    // Predicated region
    $region50: #{tpu_custom_call.1} parent=1 // pred_check
      _
    $region51: #{tpu_custom_call.1} parent=1 // pred_check_branch
      %143 = sbr.rel (0) target = $region53
    $region52: #{tpu_custom_call.1} parent=1 // pred_region
      %s145 = ssub.s32 16, 16
      %146 = vsyncadd [#allocation18], %s145
      %s148 = sshll.u32 [#allocation19], 4
      %s149 = int_to_ptr.vmem [resolvable:$true] %s148
      %151 = dma.hbm_to_vmem [thread:$0]  %s12, 16, %s149, [#allocation18]
    $region53: #{tpu_custom_call.1} parent=1 // pred_fallthru
      _
    // Predicated region
    $region54: #{tpu_custom_call.1} parent=1 // pred_check
      _
    $region55: #{tpu_custom_call.1} parent=1 // pred_check_branch
      %153 = sbr.rel (0) target = $region57
    $region56: #{tpu_custom_call.1} parent=1 // pred_region
      %s155 = ssub.s32 512, 512
      %156 = vsyncadd [#allocation21], %s155
      %s157 = sshll.u32 [#allocation20], 4
      %s158 = int_to_ptr.vmem [resolvable:$true] %s157
      %163 = dma.hbm_to_vmem [thread:$0]  %s13, 512, %s158, [#allocation21], 128, 128, 8
    $region57: #{tpu_custom_call.1} parent=1 // pred_fallthru
      _
    // Predicated region
    $region58: #{tpu_custom_call.1} parent=1 // pred_check
      _
    $region59: #{tpu_custom_call.1} parent=1 // pred_check_branch
      %165 = sbr.rel (0) target = $region61
    $region60: #{tpu_custom_call.1} parent=1 // pred_region
      %s167 = ssub.s32 16, 16
      %168 = vsyncadd [#allocation21], %s167
      %s170 = sshll.u32 [#allocation22], 4
      %s171 = int_to_ptr.vmem [resolvable:$true] %s170
      %173 = dma.hbm_to_vmem [thread:$0]  %s14, 16, %s171, [#allocation21]
    $region61: #{tpu_custom_call.1} parent=1 // pred_fallthru
      _
    // Predicated region
    $region62: #{tpu_custom_call.1} parent=1 // pred_check
      _
    $region63: #{tpu_custom_call.1} parent=1 // pred_check_branch
      %175 = sbr.rel (0) target = $region65
    $region64: #{tpu_custom_call.1} parent=1 // pred_region
      %s177 = ssub.s32 512, 512
      %178 = vsyncadd [#allocation24], %s177
      %s179 = sshll.u32 [#allocation23], 4
      %s180 = int_to_ptr.vmem [resolvable:$true] %s179
      %185 = dma.hbm_to_vmem [thread:$0]  %s15, 512, %s180, [#allocation24], 128, 128, 8
    $region65: #{tpu_custom_call.1} parent=1 // pred_fallthru
      _
    // Predicated region
    $region66: #{tpu_custom_call.1} parent=1 // pred_check
      _
    $region67: #{tpu_custom_call.1} parent=1 // pred_check_branch
      %187 = sbr.rel (0) target = $region69
    $region68: #{tpu_custom_call.1} parent=1 // pred_region
      %s189 = ssub.s32 16, 16
      %190 = vsyncadd [#allocation24], %s189
      %s192 = sshll.u32 [#allocation25], 4
      %s193 = int_to_ptr.vmem [resolvable:$true] %s192
      %195 = dma.hbm_to_vmem [thread:$0]  %s16, 16, %s193, [#allocation24]
    $region69: #{tpu_custom_call.1} parent=1 // pred_fallthru
      _
    // Predicated region
    $region70: #{tpu_custom_call.1} parent=1 // pred_check
      _
    $region71: #{tpu_custom_call.1} parent=1 // pred_check_branch
      %197 = sbr.rel (0) target = $region73
    $region72: #{tpu_custom_call.1} parent=1 // pred_region
      _
    $region73: #{tpu_custom_call.1} parent=1 // pred_fallthru
      _
    // Predicated region
    $region74: #{tpu_custom_call.1} parent=1 // pred_check
      _
    $region75: #{tpu_custom_call.1} parent=1 // pred_check_branch
      %199 = sbr.rel (0) target = $region77
    $region76: #{tpu_custom_call.1} parent=1 // pred_region
      %s201 = ssub.s32 16, 16
      %202 = vsyncadd [#allocation27], %s201
      %s204 = sshll.u32 [#allocation26], 4
      %s205 = int_to_ptr.vmem [resolvable:$true] %s204
      %207 = dma.hbm_to_vmem [thread:$0]  %s18, 16, %s205, [#allocation27]
    $region77: #{tpu_custom_call.1} parent=1 // pred_fallthru
      _
    // Predicated region
    $region78: #{tpu_custom_call.1} parent=1 // pred_check
      _
    $region79: #{tpu_custom_call.1} parent=1 // pred_check_branch
      %209 = sbr.rel (0) target = $region81
    $region80: #{tpu_custom_call.1} parent=1 // pred_region
      %s211 = ssub.s32 512, 512
      %212 = vsyncadd [#allocation27], %s211
      %s213 = sshll.u32 [#allocation28], 4
      %s214 = int_to_ptr.vmem [resolvable:$true] %s213
      %219 = dma.hbm_to_vmem [thread:$0]  %s19, 512, %s214, [#allocation27], 128, 128, 8
    $region81: #{tpu_custom_call.1} parent=1 // pred_fallthru
      _
    // Predicated region
    $region82: #{tpu_custom_call.1} parent=1 // pred_check
      _
    $region83: #{tpu_custom_call.1} parent=1 // pred_check_branch
      %221 = sbr.rel (0) target = $region85
    $region84: #{tpu_custom_call.1} parent=1 // pred_region
      %s223 = ssub.s32 512, 512
      %224 = vsyncadd [#allocation30], %s223
      %s225 = sshll.u32 [#allocation29], 4
      %s226 = int_to_ptr.vmem [resolvable:$true] %s225
      %231 = dma.hbm_to_vmem [thread:$0]  %s20, 512, %s226, [#allocation30], 128, 128, 8
    $region85: #{tpu_custom_call.1} parent=1 // pred_fallthru
      _
    // Predicated region
    $region86: #{tpu_custom_call.1} parent=1 // pred_check
      _
    $region87: #{tpu_custom_call.1} parent=1 // pred_check_branch
      %233 = sbr.rel (0) target = $region89
    $region88: #{tpu_custom_call.1} parent=1 // pred_region
      %s235 = ssub.s32 512, 512
      %236 = vsyncadd [#allocation30], %s235
      %s237 = sshll.u32 [#allocation31], 4
      %s238 = int_to_ptr.vmem [resolvable:$true] %s237
      %243 = dma.hbm_to_vmem [thread:$0]  %s21, 512, %s238, [#allocation30], 128, 128, 8
    $region89: #{tpu_custom_call.1} parent=1 // pred_fallthru
      _
    // Predicated region
    $region90: #{tpu_custom_call.1} parent=1 // pred_check
      _
    $region91: #{tpu_custom_call.1} parent=1 // pred_check_branch
      %245 = sbr.rel (0) target = $region93
    $region92: #{tpu_custom_call.1} parent=1 // pred_region
      _
    $region93: #{tpu_custom_call.1} parent=1 // pred_fallthru
      _
    // Predicated region
    $region94: #{tpu_custom_call.1} parent=1 // pred_check
      _
    $region95: #{tpu_custom_call.1} parent=1 // pred_check_branch
      %247 = sbr.rel (0) target = $region97
    $region96: #{tpu_custom_call.1} parent=1 // pred_region
      _
    $region97: #{tpu_custom_call.1} parent=1 // pred_fallthru
      _
    // Predicated region
    $region98: #{tpu_custom_call.1} parent=1 // pred_check
      _
    $region99: #{tpu_custom_call.1} parent=1 // pred_check_branch
      %249 = sbr.rel (0) target = $region101
    $region100: #{tpu_custom_call.1} parent=1 // pred_region
      _
    $region101: #{tpu_custom_call.1} parent=1 // pred_fallthru
      _
    // Predicated region
    $region102: #{tpu_custom_call.1} parent=1 // pred_check
      _
    $region103: #{tpu_custom_call.1} parent=1 // pred_check_branch
      %251 = sbr.rel (0) target = $region105
    $region104: #{tpu_custom_call.1} parent=1 // pred_region
      _
    $region105: #{tpu_custom_call.1} parent=1 // pred_fallthru
      _
    // Predicated region
    $region106: #{tpu_custom_call.1} parent=1 // pred_check
      _
    $region107: #{tpu_custom_call.1} parent=1 // pred_check_branch
      %253 = sbr.rel (0) target = $region109
    $region108: #{tpu_custom_call.1} parent=1 // pred_region
      %254 = dma.done [#allocation6], 256
    $region109: #{tpu_custom_call.1} parent=1 // pred_fallthru
      _
    // Predicated region
    $region110: #{tpu_custom_call.1} parent=1 // pred_check
      _
    $region111: #{tpu_custom_call.1} parent=1 // pred_check_branch
      %256 = sbr.rel (0) target = $region113
    $region112: #{tpu_custom_call.1} parent=1 // pred_region
      %257 = dma.done [#allocation9], 256
    $region113: #{tpu_custom_call.1} parent=1 // pred_fallthru
      _
    // Predicated region
    $region114: #{tpu_custom_call.1} parent=1 // pred_check
      _
    $region115: #{tpu_custom_call.1} parent=1 // pred_check_branch
      %259 = sbr.rel (0) target = $region117
    $region116: #{tpu_custom_call.1} parent=1 // pred_region
      %260 = dma.done [#allocation9], 384
    $region117: #{tpu_custom_call.1} parent=1 // pred_fallthru
      _
    // Predicated region
    $region118: #{tpu_custom_call.1} parent=1 // pred_check
      _
    $region119: #{tpu_custom_call.1} parent=1 // pred_check_branch
      %262 = sbr.rel (0) target = $region121
    $region120: #{tpu_custom_call.1} parent=1 // pred_region
      %263 = dma.done [#allocation12], 64
    $region121: #{tpu_custom_call.1} parent=1 // pred_fallthru
      _
    // Predicated region
    $region122: #{tpu_custom_call.1} parent=1 // pred_check
      _
    $region123: #{tpu_custom_call.1} parent=1 // pred_check_branch
      %265 = sbr.rel (0) target = $region125
    $region124: #{tpu_custom_call.1} parent=1 // pred_region
      %266 = dma.done [#allocation12], 384
    $region125: #{tpu_custom_call.1} parent=1 // pred_fallthru
      _
    // Predicated region
    $region126: #{tpu_custom_call.1} parent=1 // pred_check
      _
    $region127: #{tpu_custom_call.1} parent=1 // pred_check_branch
      %268 = sbr.rel (0) target = $region129
    $region128: #{tpu_custom_call.1} parent=1 // pred_region
      %269 = dma.done [#allocation15], 16
    $region129: #{tpu_custom_call.1} parent=1 // pred_fallthru
      _
    // Predicated region
    $region130: #{tpu_custom_call.1} parent=1 // pred_check
      _
    $region131: #{tpu_custom_call.1} parent=1 // pred_check_branch
      %271 = sbr.rel (0) target = $region133
    $region132: #{tpu_custom_call.1} parent=1 // pred_region
      %272 = dma.done [#allocation15], 16
    $region133: #{tpu_custom_call.1} parent=1 // pred_fallthru
      _
    // Predicated region
    $region134: #{tpu_custom_call.1} parent=1 // pred_check
      _
    $region135: #{tpu_custom_call.1} parent=1 // pred_check_branch
      %274 = sbr.rel (0) target = $region137
    $region136: #{tpu_custom_call.1} parent=1 // pred_region
      %275 = dma.done [#allocation18], 16
    $region137: #{tpu_custom_call.1} parent=1 // pred_fallthru
      _
    // Predicated region
    $region138: #{tpu_custom_call.1} parent=1 // pred_check
      _
    $region139: #{tpu_custom_call.1} parent=1 // pred_check_branch
      %277 = sbr.rel (0) target = $region141
    $region140: #{tpu_custom_call.1} parent=1 // pred_region
      %278 = dma.done [#allocation18], 16
    $region141: #{tpu_custom_call.1} parent=1 // pred_fallthru
      _
    // Predicated region
    $region142: #{tpu_custom_call.1} parent=1 // pred_check
      _
    $region143: #{tpu_custom_call.1} parent=1 // pred_check_branch
      %280 = sbr.rel (0) target = $region145
    $region144: #{tpu_custom_call.1} parent=1 // pred_region
      %281 = dma.done [#allocation21], 512
    $region145: #{tpu_custom_call.1} parent=1 // pred_fallthru
      _
    // Predicated region
    $region146: #{tpu_custom_call.1} parent=1 // pred_check
      _
    $region147: #{tpu_custom_call.1} parent=1 // pred_check_branch
      %283 = sbr.rel (0) target = $region149
    $region148: #{tpu_custom_call.1} parent=1 // pred_region
      %284 = dma.done [#allocation21], 16
    $region149: #{tpu_custom_call.1} parent=1 // pred_fallthru
      _
    // Predicated region
    $region150: #{tpu_custom_call.1} parent=1 // pred_check
      _
    $region151: #{tpu_custom_call.1} parent=1 // pred_check_branch
      %286 = sbr.rel (0) target = $region153
    $region152: #{tpu_custom_call.1} parent=1 // pred_region
      %287 = dma.done [#allocation24], 512
    $region153: #{tpu_custom_call.1} parent=1 // pred_fallthru
      _
    // Predicated region
    $region154: #{tpu_custom_call.1} parent=1 // pred_check
      _
    $region155: #{tpu_custom_call.1} parent=1 // pred_check_branch
      %289 = sbr.rel (0) target = $region157
    $region156: #{tpu_custom_call.1} parent=1 // pred_region
      %290 = dma.done [#allocation24], 16
    $region157: #{tpu_custom_call.1} parent=1 // pred_fallthru
      _
    // Predicated region
    $region158: #{tpu_custom_call.1} parent=1 // pred_check
      _
    $region159: #{tpu_custom_call.1} parent=1 // pred_check_branch
      %292 = sbr.rel (0) target = $region161
    $region160: #{tpu_custom_call.1} parent=1 // pred_region
      %293 = dma.done [#allocation27], 16
    $region161: #{tpu_custom_call.1} parent=1 // pred_fallthru
      _
    // Predicated region
    $region162: #{tpu_custom_call.1} parent=1 // pred_check
      _
    $region163: #{tpu_custom_call.1} parent=1 // pred_check_branch
      %295 = sbr.rel (0) target = $region165
    $region164: #{tpu_custom_call.1} parent=1 // pred_region
      %296 = dma.done [#allocation27], 512
    $region165: #{tpu_custom_call.1} parent=1 // pred_fallthru
      _
    // Predicated region
    $region166: #{tpu_custom_call.1} parent=1 // pred_check
      _
    $region167: #{tpu_custom_call.1} parent=1 // pred_check_branch
      %298 = sbr.rel (0) target = $region169
    $region168: #{tpu_custom_call.1} parent=1 // pred_region
      %299 = dma.done [#allocation30], 512
    $region169: #{tpu_custom_call.1} parent=1 // pred_fallthru
      _
    // Predicated region
    $region170: #{tpu_custom_call.1} parent=1 // pred_check
      _
    $region171: #{tpu_custom_call.1} parent=1 // pred_check_branch
      %301 = sbr.rel (0) target = $region173
    $region172: #{tpu_custom_call.1} parent=1 // pred_region
      %302 = dma.done [#allocation30], 512
    $region173: #{tpu_custom_call.1} parent=1 // pred_fallthru
      _
    %v303 = vld [vmem:[#allocation5] sm:$0xff]
    %v304 = vld [vmem:[#allocation5 + $0x8] sm:$0xff]
    %v305 = vld [vmem:[#allocation13] sm:$0xff]
    %v306 = vld [vmem:[#allocation13 + $0x8] sm:$0xff]
    %v307 = vld [vmem:[#allocation13 + $0x10] sm:$0xff]
    %v308 = vld [vmem:[#allocation14] sm:$0x1]
    %v310 = vlaneseq
    %v311 = vshrl.u32 %v310, 7
    %v312 = vsub.s32 0, %v311
    %v313 = vrot.slane %v308, %v312
    %vm315 = vcmask 195584
    %v317 = vsel %vm315, %v303, 0
    %v320 = vsel %vm315, %v304, 0
    %322 = vmatprep.subr.mxu0 0.0
    %323 = vmatpush1.msra.mxu0 %v305
    %324 = vmatprep.subr.mxu0 0.0
    %325 = vmatpush1.msra.mxu0 %v306
    %326 = vmatprep.subr.mxu0 0.0
    %327 = vmatpush1.msra.mxu0 %v307
    %328 = vmatprep.subr.mxu0 0.0
    %329 = vmatpush1.msra.mxu0 0.0
    %330 = vmatprep.subr.mxu0 0.0
    %331 = vmatpush1.msra.mxu0 0.0
    %332 = vmatprep.subr.mxu0 0.0
    %333 = vmatpush1.msra.mxu0 0.0
    %334 = vmatprep.subr.mxu0 0.0
    %335 = vmatpush1.msra.mxu0 0.0
    %336 = vmatprep.subr.mxu0 0.0
    %337 = vmatpush1.msra.mxu0 0.0
    %338 = vmatprep.subr.mxu0 0.0
    %339 = vmatpush1.msra.mxu0 0.0
    %340 = vmatprep.subr.mxu0 0.0
    %341 = vmatpush1.msra.mxu0 0.0
    %342 = vmatprep.subr.mxu0 0.0
    %343 = vmatpush1.msra.mxu0 0.0
    %344 = vmatprep.subr.mxu0 0.0
    %345 = vmatpush1.msra.mxu0 0.0
    %346 = vmatprep.subr.mxu0 0.0
    %347 = vmatpush1.msra.mxu0 0.0
    %348 = vmatprep.subr.mxu0 0.0
    %349 = vmatpush1.msra.mxu0 0.0
    %350 = vmatprep.subr.mxu0 0.0
    %351 = vmatpush1.msra.mxu0 0.0
    %352 = vmatprep.subr.mxu0 0.0
    %353 = vmatpush1.msra.mxu0 0.0
    %354 = vmatprep.subr.mxu0 0.0
    %355 = vmatpush1.msra.mxu0 0.0
    %356 = vmatprep.subr.mxu0 0.0
    %357 = vmatpush1.msra.mxu0 0.0
    %358 = vmatprep.subr.mxu0 0.0
    %359 = vmatpush1.msra.mxu0 0.0
    %360 = vmatprep.subr.mxu0 0.0
    %361 = vmatpush1.msra.mxu0 0.0
    %362 = vmatprep.subr.mxu0 0.0
    %363 = vmatpush1.msra.mxu0 0.0
    %364 = vmatprep.subr.mxu0 0.0
    %365 = vmatpush1.msra.mxu0 0.0
    %366 = vmatprep.subr.mxu0 0.0
    %367 = vmatpush1.msra.mxu0 0.0
    %368 = vmatprep.subr.mxu0 0.0
    %369 = vmatpush1.msra.mxu0 0.0
    %370 = vmatprep.subr.mxu0 0.0
    %371 = vmatpush1.msra.mxu0 0.0
    %372 = vmatprep.subr.mxu0 0.0
    %373 = vmatpush1.msra.mxu0 0.0
    %374 = vmatprep.subr.mxu0 0.0
    %375 = vmatpush1.msra.mxu0 0.0
    %376 = vmatprep.subr.mxu0 0.0
    %377 = vmatpush1.msra.mxu0 0.0
    %378 = vmatprep.subr.mxu0 0.0
    %379 = vmatpush1.msra.mxu0 0.0
    %380 = vmatprep.subr.mxu0 0.0
    %381 = vmatpush1.msra.mxu0 0.0
    %382 = vmatprep.subr.mxu0 0.0
    %383 = vmatpush1.msra.mxu0 0.0
    %384 = vmatprep.subr.mxu0 0.0
    %385 = vmatpush1.msra.mxu0 0.0
    %386 = vmatprep.mubr.f32.mxu0 0.0
    %387 = vmatmul.mubr.f32.gmra.mrb[0].mxu0 %v317
    %v388 = vpop.f32.mrb[0].mxu0
    %v389 = vadd.f32 %v313, %v388
    %v390 = vpop.f32.mrb[0].mxu0
    %391 = vmatprep.mubr.f32.mxu0 0.0
    %392 = vmatmul.mubr.f32.gmra.mrb[0].mxu0 %v320
    %v393 = vpop.f32.mrb[0].mxu0
    %v394 = vadd.f32 %v313, %v393
    %v395 = vpop.f32.mrb[0].mxu0
    %396 = vdwg.mxu0
    %vm397 = vcmask 785408
    %398 = vst.msk [vmem:[#allocation2] sm:$0xff] %vm397, %v389
    %399 = vst.msk [vmem:[#allocation2 + $0x8] sm:$0xff] %vm397, %v394
    %v400 = vld [vmem:[%s6] sm:$0xff]
    %v401 = vld [vmem:[%s6 + $0x8] sm:$0xff]
    %v402 = vld [vmem:[%s6 + $0x10] sm:$0xff]
    %v403 = vld [vmem:[%s6 + $0x18] sm:$0xff]
    %v404 = vld [vmem:[%s10] sm:$0xff]
    %v405 = vld [vmem:[%s10 + $0x8] sm:$0xff]
    %v406 = vld [vmem:[%s10 + $0x10] sm:$0xff]
    %v407 = vld [vmem:[%s10 + $0x18] sm:$0xff]
    %v408 = vld [vmem:[%s9] sm:$0xff]
    %v409 = vld [vmem:[%s9 + $0x8] sm:$0xff]
    %v410 = vld [vmem:[%s9 + $0x10] sm:$0xff]
    %v411 = vld [vmem:[%s9 + $0x18] sm:$0xff]
    %v412 = vld [vmem:[#allocation16] sm:$0x1]
    %v414 = vlaneseq
    %v415 = vshrl.u32 %v414, 7
    %v416 = vsub.s32 0, %v415
    %v417 = vrot.slane %v412, %v416
    %v418 = vld [vmem:[#allocation19] sm:$0x1]
    %v420 = vlaneseq
    %v421 = vshrl.u32 %v420, 7
    %v422 = vsub.s32 0, %v421
    %v423 = vrot.slane %v418, %v422
    %v424 = vld [vmem:[#allocation17] sm:$0x1]
    %v426 = vlaneseq
    %v427 = vshrl.u32 %v426, 7
    %v428 = vsub.s32 0, %v427
    %v429 = vrot.slane %v424, %v428
    %v431 = vld [vmem:[#allocation11] sm:$0x3]
    %s432 = scalar_lea.vmem [#allocation11], 2
    %v433 = vld [vmem:[%s432] sm:$0x3]
    %v434 = vld [vmem:[#allocation2] sm:$0x3]
    %vm435 = vcmask 261120
    %v437 = vsel %vm435, %v431, 0
    %439 = vmatprep.subr.mxu0 0.0
    %440 = vmatpush1.msra.mxu0 %v400
    %441 = vmatprep.subr.mxu0 0.0
    %442 = vmatpush1.msra.mxu0 %v401
    %443 = vmatprep.subr.mxu0 0.0
    %444 = vmatpush1.msra.mxu0 %v402
    %445 = vmatprep.subr.mxu0 0.0
    %446 = vmatpush1.msra.mxu0 %v403
    %447 = vmatprep.subr.mxu0 0.0
    %448 = vmatpush1.msra.mxu0 0.0
    %449 = vmatprep.subr.mxu0 0.0
    %450 = vmatpush1.msra.mxu0 0.0
    %451 = vmatprep.subr.mxu0 0.0
    %452 = vmatpush1.msra.mxu0 0.0
    %453 = vmatprep.subr.mxu0 0.0
    %454 = vmatpush1.msra.mxu0 0.0
    %455 = vmatprep.subr.mxu0 0.0
    %456 = vmatpush1.msra.mxu0 0.0
    %457 = vmatprep.subr.mxu0 0.0
    %458 = vmatpush1.msra.mxu0 0.0
    %459 = vmatprep.subr.mxu0 0.0
    %460 = vmatpush1.msra.mxu0 0.0
    %461 = vmatprep.subr.mxu0 0.0
    %462 = vmatpush1.msra.mxu0 0.0
    %463 = vmatprep.subr.mxu0 0.0
    %464 = vmatpush1.msra.mxu0 0.0
    %465 = vmatprep.subr.mxu0 0.0
    %466 = vmatpush1.msra.mxu0 0.0
    %467 = vmatprep.subr.mxu0 0.0
    %468 = vmatpush1.msra.mxu0 0.0
    %469 = vmatprep.subr.mxu0 0.0
    %470 = vmatpush1.msra.mxu0 0.0
    %471 = vmatprep.subr.mxu0 0.0
    %472 = vmatpush1.msra.mxu0 0.0
    %473 = vmatprep.subr.mxu0 0.0
    %474 = vmatpush1.msra.mxu0 0.0
    %475 = vmatprep.subr.mxu0 0.0
    %476 = vmatpush1.msra.mxu0 0.0
    %477 = vmatprep.subr.mxu0 0.0
    %478 = vmatpush1.msra.mxu0 0.0
    %479 = vmatprep.subr.mxu0 0.0
    %480 = vmatpush1.msra.mxu0 0.0
    %481 = vmatprep.subr.mxu0 0.0
    %482 = vmatpush1.msra.mxu0 0.0
    %483 = vmatprep.subr.mxu0 0.0
    %484 = vmatpush1.msra.mxu0 0.0
    %485 = vmatprep.subr.mxu0 0.0
    %486 = vmatpush1.msra.mxu0 0.0
    %487 = vmatprep.subr.mxu0 0.0
    %488 = vmatpush1.msra.mxu0 0.0
    %489 = vmatprep.subr.mxu0 0.0
    %490 = vmatpush1.msra.mxu0 0.0
    %491 = vmatprep.subr.mxu0 0.0
    %492 = vmatpush1.msra.mxu0 0.0
    %493 = vmatprep.subr.mxu0 0.0
    %494 = vmatpush1.msra.mxu0 0.0
    %495 = vmatprep.subr.mxu0 0.0
    %496 = vmatpush1.msra.mxu0 0.0
    %497 = vmatprep.subr.mxu0 0.0
    %498 = vmatpush1.msra.mxu0 0.0
    %499 = vmatprep.subr.mxu0 0.0
    %500 = vmatpush1.msra.mxu0 0.0
    %501 = vmatprep.subr.mxu0 0.0
    %502 = vmatpush1.msra.mxu0 0.0
    %503 = vmatprep.mubr.f32.mxu0 0.0
    %504 = vmatmul.mubr.f32.gmra.mrb[0].mxu0 %v437
    %v505 = vpop.f32.mrb[0].mxu0
    %v506 = vadd.f32 0.0, %v505
    %v507 = vpop.f32.mrb[0].mxu0
    %508 = vdwg.mxu0
    %v509 = vadd.f32 %v434, %v506
    %v510 = vxor.u32 %v509, 2147483648
    %v511 = vmul.f32 %v510, 1.442695
    %v512 = vpow.pop %v511
    %v513 = vadd.f32 %v512, 1.0
    %v514 = vrcp.pop %v513
    %v515 = vmul.f32 1.0, %v514
    %516 = vrot.lane.b32.xlu0 %v417, 64
    %v517 = vpop.permute.xlu0 %516
    %v519 = vadd.f32 %v506, %v517
    %521 = vrot.lane.b32.xlu0 %v519, 64
    %v522 = vpop.permute.xlu0 %521
    %v524 = vmul.f32 %v515, %v522
    %526 = vrot.lane.b32.xlu0 %v524, 64
    %v527 = vpop.permute.xlu0 %526
    %v529 = vadd.f32 %v434, %v527
    %v530 = vtanh.pop %v529
    %v531 = vsub.f32 1.0, %v515
    %533 = vrot.lane.b32.xlu0 %v530, 96
    %v534 = vpop.permute.xlu0 %533
    %v536 = vmul.f32 %v531, %v534
    %537 = vrot.lane.b32.xlu0 %v431, 32
    %v538 = vpop.permute.xlu0 %537
    %v540 = vmul.f32 %v515, %v538
    %v541 = vadd.f32 %v536, %v540
    %v542 = vld [vmem:[#allocation2 + $0x2] sm:$0x3]
    %544 = vrot.lane.b32.xlu0 %v541, 96
    %v545 = vpop.permute.xlu0 %544
    %v546 = vsel %vm435, %v545, 0
    %548 = vmatprep.subr.mxu0 0.0
    %549 = vmatpush1.msra.mxu0 %v400
    %550 = vmatprep.subr.mxu0 0.0
    %551 = vmatpush1.msra.mxu0 %v401
    %552 = vmatprep.subr.mxu0 0.0
    %553 = vmatpush1.msra.mxu0 %v402
    %554 = vmatprep.subr.mxu0 0.0
    %555 = vmatpush1.msra.mxu0 %v403
    %556 = vmatprep.subr.mxu0 0.0
    %557 = vmatpush1.msra.mxu0 0.0
    %558 = vmatprep.subr.mxu0 0.0
    %559 = vmatpush1.msra.mxu0 0.0
    %560 = vmatprep.subr.mxu0 0.0
    %561 = vmatpush1.msra.mxu0 0.0
    %562 = vmatprep.subr.mxu0 0.0
    %563 = vmatpush1.msra.mxu0 0.0
    %564 = vmatprep.subr.mxu0 0.0
    %565 = vmatpush1.msra.mxu0 0.0
    %566 = vmatprep.subr.mxu0 0.0
    %567 = vmatpush1.msra.mxu0 0.0
    %568 = vmatprep.subr.mxu0 0.0
    %569 = vmatpush1.msra.mxu0 0.0
    %570 = vmatprep.subr.mxu0 0.0
    %571 = vmatpush1.msra.mxu0 0.0
    %572 = vmatprep.subr.mxu0 0.0
    %573 = vmatpush1.msra.mxu0 0.0
    %574 = vmatprep.subr.mxu0 0.0
    %575 = vmatpush1.msra.mxu0 0.0
    %576 = vmatprep.subr.mxu0 0.0
    %577 = vmatpush1.msra.mxu0 0.0
    %578 = vmatprep.subr.mxu0 0.0
    %579 = vmatpush1.msra.mxu0 0.0
    %580 = vmatprep.subr.mxu0 0.0
    %581 = vmatpush1.msra.mxu0 0.0
    %582 = vmatprep.subr.mxu0 0.0
    %583 = vmatpush1.msra.mxu0 0.0
    %584 = vmatprep.subr.mxu0 0.0
    %585 = vmatpush1.msra.mxu0 0.0
    %586 = vmatprep.subr.mxu0 0.0
    %587 = vmatpush1.msra.mxu0 0.0
    %588 = vmatprep.subr.mxu0 0.0
    %589 = vmatpush1.msra.mxu0 0.0
    %590 = vmatprep.subr.mxu0 0.0
    %591 = vmatpush1.msra.mxu0 0.0
    %592 = vmatprep.subr.mxu0 0.0
    %593 = vmatpush1.msra.mxu0 0.0
    %594 = vmatprep.subr.mxu0 0.0
    %595 = vmatpush1.msra.mxu0 0.0
    %596 = vmatprep.subr.mxu0 0.0
    %597 = vmatpush1.msra.mxu0 0.0
    %598 = vmatprep.subr.mxu0 0.0
    %599 = vmatpush1.msra.mxu0 0.0
    %600 = vmatprep.subr.mxu0 0.0
    %601 = vmatpush1.msra.mxu0 0.0
    %602 = vmatprep.subr.mxu0 0.0
    %603 = vmatpush1.msra.mxu0 0.0
    %604 = vmatprep.subr.mxu0 0.0
    %605 = vmatpush1.msra.mxu0 0.0
    %606 = vmatprep.subr.mxu0 0.0
    %607 = vmatpush1.msra.mxu0 0.0
    %608 = vmatprep.subr.mxu0 0.0
    %609 = vmatpush1.msra.mxu0 0.0
    %610 = vmatprep.subr.mxu0 0.0
    %611 = vmatpush1.msra.mxu0 0.0
    %612 = vmatprep.mubr.f32.mxu0 0.0
    %613 = vmatmul.mubr.f32.gmra.mrb[0].mxu0 %v546
    %v614 = vpop.f32.mrb[0].mxu0
    %v615 = vadd.f32 0.0, %v614
    %v616 = vpop.f32.mrb[0].mxu0
    %617 = vdwg.mxu0
    %v618 = vadd.f32 %v542, %v615
    %v619 = vxor.u32 %v618, 2147483648
    %v620 = vmul.f32 %v619, 1.442695
    %v621 = vpow.pop %v620
    %v622 = vadd.f32 %v621, 1.0
    %v623 = vrcp.pop %v622
    %v624 = vmul.f32 1.0, %v623
    %v625 = vadd.f32 %v615, %v517
    %627 = vrot.lane.b32.xlu0 %v625, 64
    %v628 = vpop.permute.xlu0 %627
    %v630 = vmul.f32 %v624, %v628
    %632 = vrot.lane.b32.xlu0 %v630, 64
    %v633 = vpop.permute.xlu0 %632
    %v635 = vadd.f32 %v542, %v633
    %v636 = vtanh.pop %v635
    %v637 = vsub.f32 1.0, %v624
    %639 = vrot.lane.b32.xlu0 %v636, 96
    %v640 = vpop.permute.xlu0 %639
    %v642 = vmul.f32 %v637, %v640
    %v643 = vmul.f32 %v624, %v541
    %v644 = vadd.f32 %v642, %v643
    %645 = vmatprep.subr.mxu0 0.0
    %646 = vmatpush1.msra.mxu0 %v408
    %647 = vmatprep.subr.mxu0 0.0
    %648 = vmatpush1.msra.mxu0 %v409
    %649 = vmatprep.subr.mxu0 0.0
    %650 = vmatpush1.msra.mxu0 %v410
    %651 = vmatprep.subr.mxu0 0.0
    %652 = vmatpush1.msra.mxu0 %v411
    %653 = vmatprep.subr.mxu0 0.0
    %654 = vmatpush1.msra.mxu0 0.0
    %655 = vmatprep.subr.mxu0 0.0
    %656 = vmatpush1.msra.mxu0 0.0
    %657 = vmatprep.subr.mxu0 0.0
    %658 = vmatpush1.msra.mxu0 0.0
    %659 = vmatprep.subr.mxu0 0.0
    %660 = vmatpush1.msra.mxu0 0.0
    %661 = vmatprep.subr.mxu0 0.0
    %662 = vmatpush1.msra.mxu0 0.0
    %663 = vmatprep.subr.mxu0 0.0
    %664 = vmatpush1.msra.mxu0 0.0
    %665 = vmatprep.subr.mxu0 0.0
    %666 = vmatpush1.msra.mxu0 0.0
    %667 = vmatprep.subr.mxu0 0.0
    %668 = vmatpush1.msra.mxu0 0.0
    %669 = vmatprep.subr.mxu0 0.0
    %670 = vmatpush1.msra.mxu0 0.0
    %671 = vmatprep.subr.mxu0 0.0
    %672 = vmatpush1.msra.mxu0 0.0
    %673 = vmatprep.subr.mxu0 0.0
    %674 = vmatpush1.msra.mxu0 0.0
    %675 = vmatprep.subr.mxu0 0.0
    %676 = vmatpush1.msra.mxu0 0.0
    %677 = vmatprep.subr.mxu0 0.0
    %678 = vmatpush1.msra.mxu0 0.0
    %679 = vmatprep.subr.mxu0 0.0
    %680 = vmatpush1.msra.mxu0 0.0
    %681 = vmatprep.subr.mxu0 0.0
    %682 = vmatpush1.msra.mxu0 0.0
    %683 = vmatprep.subr.mxu0 0.0
    %684 = vmatpush1.msra.mxu0 0.0
    %685 = vmatprep.subr.mxu0 0.0
    %686 = vmatpush1.msra.mxu0 0.0
    %687 = vmatprep.subr.mxu0 0.0
    %688 = vmatpush1.msra.mxu0 0.0
    %689 = vmatprep.subr.mxu0 0.0
    %690 = vmatpush1.msra.mxu0 0.0
    %691 = vmatprep.subr.mxu0 0.0
    %692 = vmatpush1.msra.mxu0 0.0
    %693 = vmatprep.subr.mxu0 0.0
    %694 = vmatpush1.msra.mxu0 0.0
    %695 = vmatprep.subr.mxu0 0.0
    %696 = vmatpush1.msra.mxu0 0.0
    %697 = vmatprep.subr.mxu0 0.0
    %698 = vmatpush1.msra.mxu0 0.0
    %699 = vmatprep.subr.mxu0 0.0
    %700 = vmatpush1.msra.mxu0 0.0
    %701 = vmatprep.subr.mxu0 0.0
    %702 = vmatpush1.msra.mxu0 0.0
    %703 = vmatprep.subr.mxu0 0.0
    %704 = vmatpush1.msra.mxu0 0.0
    %705 = vmatprep.subr.mxu0 0.0
    %706 = vmatpush1.msra.mxu0 0.0
    %707 = vmatprep.subr.mxu0 0.0
    %708 = vmatpush1.msra.mxu0 0.0
    %709 = vmatprep.mubr.f32.mxu0 0.0
    %710 = vmatmul.mubr.f32.gmra.mrb[0].mxu0 %v546
    %v711 = vpop.f32.mrb[0].mxu0
    %v712 = vadd.f32 %v429, %v711
    %v713 = vpop.f32.mrb[0].mxu0
    %714 = vdwg.mxu0
    %v716 = vsel %vm435, %v433, 0
    %718 = vmatprep.subr.mxu0 0.0
    %719 = vmatpush1.msra.mxu0 %v404
    %720 = vmatprep.subr.mxu0 0.0
    %721 = vmatpush1.msra.mxu0 %v405
    %722 = vmatprep.subr.mxu0 0.0
    %723 = vmatpush1.msra.mxu0 %v406
    %724 = vmatprep.subr.mxu0 0.0
    %725 = vmatpush1.msra.mxu0 %v407
    %726 = vmatprep.subr.mxu0 0.0
    %727 = vmatpush1.msra.mxu0 0.0
    %728 = vmatprep.subr.mxu0 0.0
    %729 = vmatpush1.msra.mxu0 0.0
    %730 = vmatprep.subr.mxu0 0.0
    %731 = vmatpush1.msra.mxu0 0.0
    %732 = vmatprep.subr.mxu0 0.0
    %733 = vmatpush1.msra.mxu0 0.0
    %734 = vmatprep.subr.mxu0 0.0
    %735 = vmatpush1.msra.mxu0 0.0
    %736 = vmatprep.subr.mxu0 0.0
    %737 = vmatpush1.msra.mxu0 0.0
    %738 = vmatprep.subr.mxu0 0.0
    %739 = vmatpush1.msra.mxu0 0.0
    %740 = vmatprep.subr.mxu0 0.0
    %741 = vmatpush1.msra.mxu0 0.0
    %742 = vmatprep.subr.mxu0 0.0
    %743 = vmatpush1.msra.mxu0 0.0
    %744 = vmatprep.subr.mxu0 0.0
    %745 = vmatpush1.msra.mxu0 0.0
    %746 = vmatprep.subr.mxu0 0.0
    %747 = vmatpush1.msra.mxu0 0.0
    %748 = vmatprep.subr.mxu0 0.0
    %749 = vmatpush1.msra.mxu0 0.0
    %750 = vmatprep.subr.mxu0 0.0
    %751 = vmatpush1.msra.mxu0 0.0
    %752 = vmatprep.subr.mxu0 0.0
    %753 = vmatpush1.msra.mxu0 0.0
    %754 = vmatprep.subr.mxu0 0.0
    %755 = vmatpush1.msra.mxu0 0.0
    %756 = vmatprep.subr.mxu0 0.0
    %757 = vmatpush1.msra.mxu0 0.0
    %758 = vmatprep.subr.mxu0 0.0
    %759 = vmatpush1.msra.mxu0 0.0
    %760 = vmatprep.subr.mxu0 0.0
    %761 = vmatpush1.msra.mxu0 0.0
    %762 = vmatprep.subr.mxu0 0.0
    %763 = vmatpush1.msra.mxu0 0.0
    %764 = vmatprep.subr.mxu0 0.0
    %765 = vmatpush1.msra.mxu0 0.0
    %766 = vmatprep.subr.mxu0 0.0
    %767 = vmatpush1.msra.mxu0 0.0
    %768 = vmatprep.subr.mxu0 0.0
    %769 = vmatpush1.msra.mxu0 0.0
    %770 = vmatprep.subr.mxu0 0.0
    %771 = vmatpush1.msra.mxu0 0.0
    %772 = vmatprep.subr.mxu0 0.0
    %773 = vmatpush1.msra.mxu0 0.0
    %774 = vmatprep.subr.mxu0 0.0
    %775 = vmatpush1.msra.mxu0 0.0
    %776 = vmatprep.subr.mxu0 0.0
    %777 = vmatpush1.msra.mxu0 0.0
    %778 = vmatprep.subr.mxu0 0.0
    %779 = vmatpush1.msra.mxu0 0.0
    %780 = vmatprep.subr.mxu0 0.0
    %781 = vmatpush1.msra.mxu0 0.0
    %782 = vmatprep.mubr.f32.mxu0 0.0
    %783 = vmatmul.mubr.f32.gmra.mrb[0].mxu0 %v716
    %v784 = vpop.f32.mrb[0].mxu0
    %v785 = vadd.f32 0.0, %v784
    %v786 = vpop.f32.mrb[0].mxu0
    %787 = vdwg.mxu0
    %v788 = vadd.f32 %v712, %v785
    %v789 = vxor.u32 %v788, 2147483648
    %v790 = vmul.f32 %v789, 1.442695
    %v791 = vpow.pop %v790
    %v792 = vadd.f32 %v791, 1.0
    %v793 = vrcp.pop %v792
    %v794 = vmul.f32 1.0, %v793
    %795 = vrot.lane.b32.xlu0 %v423, 64
    %v796 = vpop.permute.xlu0 %795
    %v798 = vadd.f32 %v785, %v796
    %800 = vrot.lane.b32.xlu0 %v798, 64
    %v801 = vpop.permute.xlu0 %800
    %v803 = vmul.f32 %v794, %v801
    %805 = vrot.lane.b32.xlu0 %v803, 64
    %v806 = vpop.permute.xlu0 %805
    %v808 = vadd.f32 %v712, %v806
    %v809 = vtanh.pop %v808
    %v810 = vsub.f32 1.0, %v794
    %812 = vrot.lane.b32.xlu0 %v809, 96
    %v813 = vpop.permute.xlu0 %812
    %v815 = vmul.f32 %v810, %v813
    %816 = vrot.lane.b32.xlu0 %v433, 32
    %v817 = vpop.permute.xlu0 %816
    %v819 = vmul.f32 %v794, %v817
    %v820 = vadd.f32 %v815, %v819
    %v821 = vld [vmem:[%s1] sm:$0x3]
    %823 = vset.pattern.permute.xlu0 0
    %824 = vperm.xlu0 %823, %v821
    %v825 = vpop.permute.xlu0 %824
    %v827 = vmul.f32 %v820, %v825
    %829 = vrot.lane.b32.xlu0 %v827, 96
    %v830 = vpop.permute.xlu0 %829
    %vm832 = vcmask 254976
    %833 = vst.msk [vmem:[#allocation3] sm:$0x3] %vm832, %v830
    %v834 = vld [vmem:[#allocation2 + $0x4] sm:$0x3]
    %836 = vrot.lane.b32.xlu0 %v644, 96
    %v837 = vpop.permute.xlu0 %836
    %v838 = vsel %vm435, %v837, 0
    %840 = vmatprep.subr.mxu0 0.0
    %841 = vmatpush1.msra.mxu0 %v400
    %842 = vmatprep.subr.mxu0 0.0
    %843 = vmatpush1.msra.mxu0 %v401
    %844 = vmatprep.subr.mxu0 0.0
    %845 = vmatpush1.msra.mxu0 %v402
    %846 = vmatprep.subr.mxu0 0.0
    %847 = vmatpush1.msra.mxu0 %v403
    %848 = vmatprep.subr.mxu0 0.0
    %849 = vmatpush1.msra.mxu0 0.0
    %850 = vmatprep.subr.mxu0 0.0
    %851 = vmatpush1.msra.mxu0 0.0
    %852 = vmatprep.subr.mxu0 0.0
    %853 = vmatpush1.msra.mxu0 0.0
    %854 = vmatprep.subr.mxu0 0.0
    %855 = vmatpush1.msra.mxu0 0.0
    %856 = vmatprep.subr.mxu0 0.0
    %857 = vmatpush1.msra.mxu0 0.0
    %858 = vmatprep.subr.mxu0 0.0
    %859 = vmatpush1.msra.mxu0 0.0
    %860 = vmatprep.subr.mxu0 0.0
    %861 = vmatpush1.msra.mxu0 0.0
    %862 = vmatprep.subr.mxu0 0.0
    %863 = vmatpush1.msra.mxu0 0.0
    %864 = vmatprep.subr.mxu0 0.0
    %865 = vmatpush1.msra.mxu0 0.0
    %866 = vmatprep.subr.mxu0 0.0
    %867 = vmatpush1.msra.mxu0 0.0
    %868 = vmatprep.subr.mxu0 0.0
    %869 = vmatpush1.msra.mxu0 0.0
    %870 = vmatprep.subr.mxu0 0.0
    %871 = vmatpush1.msra.mxu0 0.0
    %872 = vmatprep.subr.mxu0 0.0
    %873 = vmatpush1.msra.mxu0 0.0
    %874 = vmatprep.subr.mxu0 0.0
    %875 = vmatpush1.msra.mxu0 0.0
    %876 = vmatprep.subr.mxu0 0.0
    %877 = vmatpush1.msra.mxu0 0.0
    %878 = vmatprep.subr.mxu0 0.0
    %879 = vmatpush1.msra.mxu0 0.0
    %880 = vmatprep.subr.mxu0 0.0
    %881 = vmatpush1.msra.mxu0 0.0
    %882 = vmatprep.subr.mxu0 0.0
    %883 = vmatpush1.msra.mxu0 0.0
    %884 = vmatprep.subr.mxu0 0.0
    %885 = vmatpush1.msra.mxu0 0.0
    %886 = vmatprep.subr.mxu0 0.0
    %887 = vmatpush1.msra.mxu0 0.0
    %888 = vmatprep.subr.mxu0 0.0
    %889 = vmatpush1.msra.mxu0 0.0
    %890 = vmatprep.subr.mxu0 0.0
    %891 = vmatpush1.msra.mxu0 0.0
    %892 = vmatprep.subr.mxu0 0.0
    %893 = vmatpush1.msra.mxu0 0.0
    %894 = vmatprep.subr.mxu0 0.0
    %895 = vmatpush1.msra.mxu0 0.0
    %896 = vmatprep.subr.mxu0 0.0
    %897 = vmatpush1.msra.mxu0 0.0
    %898 = vmatprep.subr.mxu0 0.0
    %899 = vmatpush1.msra.mxu0 0.0
    %900 = vmatprep.subr.mxu0 0.0
    %901 = vmatpush1.msra.mxu0 0.0
    %902 = vmatprep.subr.mxu0 0.0
    %903 = vmatpush1.msra.mxu0 0.0
    %904 = vmatprep.mubr.f32.mxu0 0.0
    %905 = vmatmul.mubr.f32.gmra.mrb[0].mxu0 %v838
    %v906 = vpop.f32.mrb[0].mxu0
    %v907 = vadd.f32 0.0, %v906
    %v908 = vpop.f32.mrb[0].mxu0
    %909 = vdwg.mxu0
    %v910 = vadd.f32 %v834, %v907
    %v911 = vxor.u32 %v910, 2147483648
    %v912 = vmul.f32 %v911, 1.442695
    %v913 = vpow.pop %v912
    %v914 = vadd.f32 %v913, 1.0
    %v915 = vrcp.pop %v914
    %v916 = vmul.f32 1.0, %v915
    %v917 = vadd.f32 %v907, %v517
    %919 = vrot.lane.b32.xlu0 %v917, 64
    %v920 = vpop.permute.xlu0 %919
    %v922 = vmul.f32 %v916, %v920
    %924 = vrot.lane.b32.xlu0 %v922, 64
    %v925 = vpop.permute.xlu0 %924
    %v927 = vadd.f32 %v834, %v925
    %v928 = vtanh.pop %v927
    %v929 = vsub.f32 1.0, %v916
    %931 = vrot.lane.b32.xlu0 %v928, 96
    %v932 = vpop.permute.xlu0 %931
    %v934 = vmul.f32 %v929, %v932
    %v935 = vmul.f32 %v916, %v644
    %v936 = vadd.f32 %v934, %v935
    %937 = vmatprep.subr.mxu0 0.0
    %938 = vmatpush1.msra.mxu0 %v408
    %939 = vmatprep.subr.mxu0 0.0
    %940 = vmatpush1.msra.mxu0 %v409
    %941 = vmatprep.subr.mxu0 0.0
    %942 = vmatpush1.msra.mxu0 %v410
    %943 = vmatprep.subr.mxu0 0.0
    %944 = vmatpush1.msra.mxu0 %v411
    %945 = vmatprep.subr.mxu0 0.0
    %946 = vmatpush1.msra.mxu0 0.0
    %947 = vmatprep.subr.mxu0 0.0
    %948 = vmatpush1.msra.mxu0 0.0
    %949 = vmatprep.subr.mxu0 0.0
    %950 = vmatpush1.msra.mxu0 0.0
    %951 = vmatprep.subr.mxu0 0.0
    %952 = vmatpush1.msra.mxu0 0.0
    %953 = vmatprep.subr.mxu0 0.0
    %954 = vmatpush1.msra.mxu0 0.0
    %955 = vmatprep.subr.mxu0 0.0
    %956 = vmatpush1.msra.mxu0 0.0
    %957 = vmatprep.subr.mxu0 0.0
    %958 = vmatpush1.msra.mxu0 0.0
    %959 = vmatprep.subr.mxu0 0.0
    %960 = vmatpush1.msra.mxu0 0.0
    %961 = vmatprep.subr.mxu0 0.0
    %962 = vmatpush1.msra.mxu0 0.0
    %963 = vmatprep.subr.mxu0 0.0
    %964 = vmatpush1.msra.mxu0 0.0
    %965 = vmatprep.subr.mxu0 0.0
    %966 = vmatpush1.msra.mxu0 0.0
    %967 = vmatprep.subr.mxu0 0.0
    %968 = vmatpush1.msra.mxu0 0.0
    %969 = vmatprep.subr.mxu0 0.0
    %970 = vmatpush1.msra.mxu0 0.0
    %971 = vmatprep.subr.mxu0 0.0
    %972 = vmatpush1.msra.mxu0 0.0
    %973 = vmatprep.subr.mxu0 0.0
    %974 = vmatpush1.msra.mxu0 0.0
    %975 = vmatprep.subr.mxu0 0.0
    %976 = vmatpush1.msra.mxu0 0.0
    %977 = vmatprep.subr.mxu0 0.0
    %978 = vmatpush1.msra.mxu0 0.0
    %979 = vmatprep.subr.mxu0 0.0
    %980 = vmatpush1.msra.mxu0 0.0
    %981 = vmatprep.subr.mxu0 0.0
    %982 = vmatpush1.msra.mxu0 0.0
    %983 = vmatprep.subr.mxu0 0.0
    %984 = vmatpush1.msra.mxu0 0.0
    %985 = vmatprep.subr.mxu0 0.0
    %986 = vmatpush1.msra.mxu0 0.0
    %987 = vmatprep.subr.mxu0 0.0
    %988 = vmatpush1.msra.mxu0 0.0
    %989 = vmatprep.subr.mxu0 0.0
    %990 = vmatpush1.msra.mxu0 0.0
    %991 = vmatprep.subr.mxu0 0.0
    %992 = vmatpush1.msra.mxu0 0.0
    %993 = vmatprep.subr.mxu0 0.0
    %994 = vmatpush1.msra.mxu0 0.0
    %995 = vmatprep.subr.mxu0 0.0
    %996 = vmatpush1.msra.mxu0 0.0
    %997 = vmatprep.subr.mxu0 0.0
    %998 = vmatpush1.msra.mxu0 0.0
    %999 = vmatprep.subr.mxu0 0.0
    %1000 = vmatpush1.msra.mxu0 0.0
    %1001 = vmatprep.mubr.f32.mxu0 0.0
    %1002 = vmatmul.mubr.f32.gmra.mrb[0].mxu0 %v838
    %v1003 = vpop.f32.mrb[0].mxu0
    %v1004 = vadd.f32 %v429, %v1003
    %v1005 = vpop.f32.mrb[0].mxu0
    %1006 = vdwg.mxu0
    %1008 = vrot.lane.b32.xlu0 %v820, 96
    %v1009 = vpop.permute.xlu0 %1008
    %v1010 = vsel %vm435, %v1009, 0
    %1012 = vmatprep.subr.mxu0 0.0
    %1013 = vmatpush1.msra.mxu0 %v404
    %1014 = vmatprep.subr.mxu0 0.0
    %1015 = vmatpush1.msra.mxu0 %v405
    %1016 = vmatprep.subr.mxu0 0.0
    %1017 = vmatpush1.msra.mxu0 %v406
    %1018 = vmatprep.subr.mxu0 0.0
    %1019 = vmatpush1.msra.mxu0 %v407
    %1020 = vmatprep.subr.mxu0 0.0
    %1021 = vmatpush1.msra.mxu0 0.0
    %1022 = vmatprep.subr.mxu0 0.0
    %1023 = vmatpush1.msra.mxu0 0.0
    %1024 = vmatprep.subr.mxu0 0.0
    %1025 = vmatpush1.msra.mxu0 0.0
    %1026 = vmatprep.subr.mxu0 0.0
    %1027 = vmatpush1.msra.mxu0 0.0
    %1028 = vmatprep.subr.mxu0 0.0
    %1029 = vmatpush1.msra.mxu0 0.0
    %1030 = vmatprep.subr.mxu0 0.0
    %1031 = vmatpush1.msra.mxu0 0.0
    %1032 = vmatprep.subr.mxu0 0.0
    %1033 = vmatpush1.msra.mxu0 0.0
    %1034 = vmatprep.subr.mxu0 0.0
    %1035 = vmatpush1.msra.mxu0 0.0
    %1036 = vmatprep.subr.mxu0 0.0
    %1037 = vmatpush1.msra.mxu0 0.0
    %1038 = vmatprep.subr.mxu0 0.0
    %1039 = vmatpush1.msra.mxu0 0.0
    %1040 = vmatprep.subr.mxu0 0.0
    %1041 = vmatpush1.msra.mxu0 0.0
    %1042 = vmatprep.subr.mxu0 0.0
    %1043 = vmatpush1.msra.mxu0 0.0
    %1044 = vmatprep.subr.mxu0 0.0
    %1045 = vmatpush1.msra.mxu0 0.0
    %1046 = vmatprep.subr.mxu0 0.0
    %1047 = vmatpush1.msra.mxu0 0.0
    %1048 = vmatprep.subr.mxu0 0.0
    %1049 = vmatpush1.msra.mxu0 0.0
    %1050 = vmatprep.subr.mxu0 0.0
    %1051 = vmatpush1.msra.mxu0 0.0
    %1052 = vmatprep.subr.mxu0 0.0
    %1053 = vmatpush1.msra.mxu0 0.0
    %1054 = vmatprep.subr.mxu0 0.0
    %1055 = vmatpush1.msra.mxu0 0.0
    %1056 = vmatprep.subr.mxu0 0.0
    %1057 = vmatpush1.msra.mxu0 0.0
    %1058 = vmatprep.subr.mxu0 0.0
    %1059 = vmatpush1.msra.mxu0 0.0
    %1060 = vmatprep.subr.mxu0 0.0
    %1061 = vmatpush1.msra.mxu0 0.0
    %1062 = vmatprep.subr.mxu0 0.0
    %1063 = vmatpush1.msra.mxu0 0.0
    %1064 = vmatprep.subr.mxu0 0.0
    %1065 = vmatpush1.msra.mxu0 0.0
    %1066 = vmatprep.subr.mxu0 0.0
    %1067 = vmatpush1.msra.mxu0 0.0
    %1068 = vmatprep.subr.mxu0 0.0
    %1069 = vmatpush1.msra.mxu0 0.0
    %1070 = vmatprep.subr.mxu0 0.0
    %1071 = vmatpush1.msra.mxu0 0.0
    %1072 = vmatprep.subr.mxu0 0.0
    %1073 = vmatpush1.msra.mxu0 0.0
    %1074 = vmatprep.subr.mxu0 0.0
    %1075 = vmatpush1.msra.mxu0 0.0
    %1076 = vmatprep.mubr.f32.mxu0 0.0
    %1077 = vmatmul.mubr.f32.gmra.mrb[0].mxu0 %v1010
    %v1078 = vpop.f32.mrb[0].mxu0
    %v1079 = vadd.f32 0.0, %v1078
    %v1080 = vpop.f32.mrb[0].mxu0
    %1081 = vdwg.mxu0
    %v1082 = vadd.f32 %v1004, %v1079
    %v1083 = vxor.u32 %v1082, 2147483648
    %v1084 = vmul.f32 %v1083, 1.442695
    %v1085 = vpow.pop %v1084
    %v1086 = vadd.f32 %v1085, 1.0
    %v1087 = vrcp.pop %v1086
    %v1088 = vmul.f32 1.0, %v1087
    %v1089 = vadd.f32 %v1079, %v796
    %1091 = vrot.lane.b32.xlu0 %v1089, 64
    %v1092 = vpop.permute.xlu0 %1091
    %v1094 = vmul.f32 %v1088, %v1092
    %1096 = vrot.lane.b32.xlu0 %v1094, 64
    %v1097 = vpop.permute.xlu0 %1096
    %v1099 = vadd.f32 %v1004, %v1097
    %v1100 = vtanh.pop %v1099
    %v1101 = vsub.f32 1.0, %v1088
    %1103 = vrot.lane.b32.xlu0 %v1100, 96
    %v1104 = vpop.permute.xlu0 %1103
    %v1106 = vmul.f32 %v1101, %v1104
    %v1107 = vmul.f32 %v1088, %v820
    %v1108 = vadd.f32 %v1106, %v1107
    %v1109 = vld [vmem:[%s1 + $0x2] sm:$0x3]
    %1111 = vset.pattern.permute.xlu0 0
    %1112 = vperm.xlu0 %1111, %v1109
    %v1113 = vpop.permute.xlu0 %1112
    %v1115 = vmul.f32 %v1108, %v1113
    %1117 = vrot.lane.b32.xlu0 %v1115, 96
    %v1118 = vpop.permute.xlu0 %1117
    %1120 = vst.msk [vmem:[#allocation3 + $0x2] sm:$0x3] %vm832, %v1118
    %v1121 = vld [vmem:[#allocation2 + $0x6] sm:$0x3]
    %1123 = vrot.lane.b32.xlu0 %v936, 96
    %v1124 = vpop.permute.xlu0 %1123
    %v1125 = vsel %vm435, %v1124, 0
    %1127 = vmatprep.subr.mxu0 0.0
    %1128 = vmatpush1.msra.mxu0 %v400
    %1129 = vmatprep.subr.mxu0 0.0
    %1130 = vmatpush1.msra.mxu0 %v401
    %1131 = vmatprep.subr.mxu0 0.0
    %1132 = vmatpush1.msra.mxu0 %v402
    %1133 = vmatprep.subr.mxu0 0.0
    %1134 = vmatpush1.msra.mxu0 %v403
    %1135 = vmatprep.subr.mxu0 0.0
    %1136 = vmatpush1.msra.mxu0 0.0
    %1137 = vmatprep.subr.mxu0 0.0
    %1138 = vmatpush1.msra.mxu0 0.0
    %1139 = vmatprep.subr.mxu0 0.0
    %1140 = vmatpush1.msra.mxu0 0.0
    %1141 = vmatprep.subr.mxu0 0.0
    %1142 = vmatpush1.msra.mxu0 0.0
    %1143 = vmatprep.subr.mxu0 0.0
    %1144 = vmatpush1.msra.mxu0 0.0
    %1145 = vmatprep.subr.mxu0 0.0
    %1146 = vmatpush1.msra.mxu0 0.0
    %1147 = vmatprep.subr.mxu0 0.0
    %1148 = vmatpush1.msra.mxu0 0.0
    %1149 = vmatprep.subr.mxu0 0.0
    %1150 = vmatpush1.msra.mxu0 0.0
    %1151 = vmatprep.subr.mxu0 0.0
    %1152 = vmatpush1.msra.mxu0 0.0
    %1153 = vmatprep.subr.mxu0 0.0
    %1154 = vmatpush1.msra.mxu0 0.0
    %1155 = vmatprep.subr.mxu0 0.0
    %1156 = vmatpush1.msra.mxu0 0.0
    %1157 = vmatprep.subr.mxu0 0.0
    %1158 = vmatpush1.msra.mxu0 0.0
    %1159 = vmatprep.subr.mxu0 0.0
    %1160 = vmatpush1.msra.mxu0 0.0
    %1161 = vmatprep.subr.mxu0 0.0
    %1162 = vmatpush1.msra.mxu0 0.0
    %1163 = vmatprep.subr.mxu0 0.0
    %1164 = vmatpush1.msra.mxu0 0.0
    %1165 = vmatprep.subr.mxu0 0.0
    %1166 = vmatpush1.msra.mxu0 0.0
    %1167 = vmatprep.subr.mxu0 0.0
    %1168 = vmatpush1.msra.mxu0 0.0
    %1169 = vmatprep.subr.mxu0 0.0
    %1170 = vmatpush1.msra.mxu0 0.0
    %1171 = vmatprep.subr.mxu0 0.0
    %1172 = vmatpush1.msra.mxu0 0.0
    %1173 = vmatprep.subr.mxu0 0.0
    %1174 = vmatpush1.msra.mxu0 0.0
    %1175 = vmatprep.subr.mxu0 0.0
    %1176 = vmatpush1.msra.mxu0 0.0
    %1177 = vmatprep.subr.mxu0 0.0
    %1178 = vmatpush1.msra.mxu0 0.0
    %1179 = vmatprep.subr.mxu0 0.0
    %1180 = vmatpush1.msra.mxu0 0.0
    %1181 = vmatprep.subr.mxu0 0.0
    %1182 = vmatpush1.msra.mxu0 0.0
    %1183 = vmatprep.subr.mxu0 0.0
    %1184 = vmatpush1.msra.mxu0 0.0
    %1185 = vmatprep.subr.mxu0 0.0
    %1186 = vmatpush1.msra.mxu0 0.0
    %1187 = vmatprep.subr.mxu0 0.0
    %1188 = vmatpush1.msra.mxu0 0.0
    %1189 = vmatprep.subr.mxu0 0.0
    %1190 = vmatpush1.msra.mxu0 0.0
    %1191 = vmatprep.mubr.f32.mxu0 0.0
    %1192 = vmatmul.mubr.f32.gmra.mrb[0].mxu0 %v1125
    %v1193 = vpop.f32.mrb[0].mxu0
    %v1194 = vadd.f32 0.0, %v1193
    %v1195 = vpop.f32.mrb[0].mxu0
    %1196 = vdwg.mxu0
    %v1197 = vadd.f32 %v1121, %v1194
    %v1198 = vxor.u32 %v1197, 2147483648
    %v1199 = vmul.f32 %v1198, 1.442695
    %v1200 = vpow.pop %v1199
    %v1201 = vadd.f32 %v1200, 1.0
    %v1202 = vrcp.pop %v1201
    %v1203 = vmul.f32 1.0, %v1202
    %v1204 = vadd.f32 %v1194, %v517
    %1206 = vrot.lane.b32.xlu0 %v1204, 64
    %v1207 = vpop.permute.xlu0 %1206
    %v1209 = vmul.f32 %v1203, %v1207
    %1211 = vrot.lane.b32.xlu0 %v1209, 64
    %v1212 = vpop.permute.xlu0 %1211
    %v1214 = vadd.f32 %v1121, %v1212
    %v1215 = vtanh.pop %v1214
    %v1216 = vsub.f32 1.0, %v1203
    %1218 = vrot.lane.b32.xlu0 %v1215, 96
    %v1219 = vpop.permute.xlu0 %1218
    %v1221 = vmul.f32 %v1216, %v1219
    %v1222 = vmul.f32 %v1203, %v936
    %v1223 = vadd.f32 %v1221, %v1222
    %1224 = vmatprep.subr.mxu0 0.0
    %1225 = vmatpush1.msra.mxu0 %v408
    %1226 = vmatprep.subr.mxu0 0.0
    %1227 = vmatpush1.msra.mxu0 %v409
    %1228 = vmatprep.subr.mxu0 0.0
    %1229 = vmatpush1.msra.mxu0 %v410
    %1230 = vmatprep.subr.mxu0 0.0
    %1231 = vmatpush1.msra.mxu0 %v411
    %1232 = vmatprep.subr.mxu0 0.0
    %1233 = vmatpush1.msra.mxu0 0.0
    %1234 = vmatprep.subr.mxu0 0.0
    %1235 = vmatpush1.msra.mxu0 0.0
    %1236 = vmatprep.subr.mxu0 0.0
    %1237 = vmatpush1.msra.mxu0 0.0
    %1238 = vmatprep.subr.mxu0 0.0
    %1239 = vmatpush1.msra.mxu0 0.0
    %1240 = vmatprep.subr.mxu0 0.0
    %1241 = vmatpush1.msra.mxu0 0.0
    %1242 = vmatprep.subr.mxu0 0.0
    %1243 = vmatpush1.msra.mxu0 0.0
    %1244 = vmatprep.subr.mxu0 0.0
    %1245 = vmatpush1.msra.mxu0 0.0
    %1246 = vmatprep.subr.mxu0 0.0
    %1247 = vmatpush1.msra.mxu0 0.0
    %1248 = vmatprep.subr.mxu0 0.0
    %1249 = vmatpush1.msra.mxu0 0.0
    %1250 = vmatprep.subr.mxu0 0.0
    %1251 = vmatpush1.msra.mxu0 0.0
    %1252 = vmatprep.subr.mxu0 0.0
    %1253 = vmatpush1.msra.mxu0 0.0
    %1254 = vmatprep.subr.mxu0 0.0
    %1255 = vmatpush1.msra.mxu0 0.0
    %1256 = vmatprep.subr.mxu0 0.0
    %1257 = vmatpush1.msra.mxu0 0.0
    %1258 = vmatprep.subr.mxu0 0.0
    %1259 = vmatpush1.msra.mxu0 0.0
    %1260 = vmatprep.subr.mxu0 0.0
    %1261 = vmatpush1.msra.mxu0 0.0
    %1262 = vmatprep.subr.mxu0 0.0
    %1263 = vmatpush1.msra.mxu0 0.0
    %1264 = vmatprep.subr.mxu0 0.0
    %1265 = vmatpush1.msra.mxu0 0.0
    %1266 = vmatprep.subr.mxu0 0.0
    %1267 = vmatpush1.msra.mxu0 0.0
    %1268 = vmatprep.subr.mxu0 0.0
    %1269 = vmatpush1.msra.mxu0 0.0
    %1270 = vmatprep.subr.mxu0 0.0
    %1271 = vmatpush1.msra.mxu0 0.0
    %1272 = vmatprep.subr.mxu0 0.0
    %1273 = vmatpush1.msra.mxu0 0.0
    %1274 = vmatprep.subr.mxu0 0.0
    %1275 = vmatpush1.msra.mxu0 0.0
    %1276 = vmatprep.subr.mxu0 0.0
    %1277 = vmatpush1.msra.mxu0 0.0
    %1278 = vmatprep.subr.mxu0 0.0
    %1279 = vmatpush1.msra.mxu0 0.0
    %1280 = vmatprep.subr.mxu0 0.0
    %1281 = vmatpush1.msra.mxu0 0.0
    %1282 = vmatprep.subr.mxu0 0.0
    %1283 = vmatpush1.msra.mxu0 0.0
    %1284 = vmatprep.subr.mxu0 0.0
    %1285 = vmatpush1.msra.mxu0 0.0
    %1286 = vmatprep.subr.mxu0 0.0
    %1287 = vmatpush1.msra.mxu0 0.0
    %1288 = vmatprep.mubr.f32.mxu0 0.0
    %1289 = vmatmul.mubr.f32.gmra.mrb[0].mxu0 %v1125
    %v1290 = vpop.f32.mrb[0].mxu0
    %v1291 = vadd.f32 %v429, %v1290
    %v1292 = vpop.f32.mrb[0].mxu0
    %1293 = vdwg.mxu0
    %1295 = vrot.lane.b32.xlu0 %v1108, 96
    %v1296 = vpop.permute.xlu0 %1295
    %v1297 = vsel %vm435, %v1296, 0
    %1299 = vmatprep.subr.mxu0 0.0
    %1300 = vmatpush1.msra.mxu0 %v404
    %1301 = vmatprep.subr.mxu0 0.0
    %1302 = vmatpush1.msra.mxu0 %v405
    %1303 = vmatprep.subr.mxu0 0.0
    %1304 = vmatpush1.msra.mxu0 %v406
    %1305 = vmatprep.subr.mxu0 0.0
    %1306 = vmatpush1.msra.mxu0 %v407
    %1307 = vmatprep.subr.mxu0 0.0
    %1308 = vmatpush1.msra.mxu0 0.0
    %1309 = vmatprep.subr.mxu0 0.0
    %1310 = vmatpush1.msra.mxu0 0.0
    %1311 = vmatprep.subr.mxu0 0.0
    %1312 = vmatpush1.msra.mxu0 0.0
    %1313 = vmatprep.subr.mxu0 0.0
    %1314 = vmatpush1.msra.mxu0 0.0
    %1315 = vmatprep.subr.mxu0 0.0
    %1316 = vmatpush1.msra.mxu0 0.0
    %1317 = vmatprep.subr.mxu0 0.0
    %1318 = vmatpush1.msra.mxu0 0.0
    %1319 = vmatprep.subr.mxu0 0.0
    %1320 = vmatpush1.msra.mxu0 0.0
    %1321 = vmatprep.subr.mxu0 0.0
    %1322 = vmatpush1.msra.mxu0 0.0
    %1323 = vmatprep.subr.mxu0 0.0
    %1324 = vmatpush1.msra.mxu0 0.0
    %1325 = vmatprep.subr.mxu0 0.0
    %1326 = vmatpush1.msra.mxu0 0.0
    %1327 = vmatprep.subr.mxu0 0.0
    %1328 = vmatpush1.msra.mxu0 0.0
    %1329 = vmatprep.subr.mxu0 0.0
    %1330 = vmatpush1.msra.mxu0 0.0
    %1331 = vmatprep.subr.mxu0 0.0
    %1332 = vmatpush1.msra.mxu0 0.0
    %1333 = vmatprep.subr.mxu0 0.0
    %1334 = vmatpush1.msra.mxu0 0.0
    %1335 = vmatprep.subr.mxu0 0.0
    %1336 = vmatpush1.msra.mxu0 0.0
    %1337 = vmatprep.subr.mxu0 0.0
    %1338 = vmatpush1.msra.mxu0 0.0
    %1339 = vmatprep.subr.mxu0 0.0
    %1340 = vmatpush1.msra.mxu0 0.0
    %1341 = vmatprep.subr.mxu0 0.0
    %1342 = vmatpush1.msra.mxu0 0.0
    %1343 = vmatprep.subr.mxu0 0.0
    %1344 = vmatpush1.msra.mxu0 0.0
    %1345 = vmatprep.subr.mxu0 0.0
    %1346 = vmatpush1.msra.mxu0 0.0
    %1347 = vmatprep.subr.mxu0 0.0
    %1348 = vmatpush1.msra.mxu0 0.0
    %1349 = vmatprep.subr.mxu0 0.0
    %1350 = vmatpush1.msra.mxu0 0.0
    %1351 = vmatprep.subr.mxu0 0.0
    %1352 = vmatpush1.msra.mxu0 0.0
    %1353 = vmatprep.subr.mxu0 0.0
    %1354 = vmatpush1.msra.mxu0 0.0
    %1355 = vmatprep.subr.mxu0 0.0
    %1356 = vmatpush1.msra.mxu0 0.0
    %1357 = vmatprep.subr.mxu0 0.0
    %1358 = vmatpush1.msra.mxu0 0.0
    %1359 = vmatprep.subr.mxu0 0.0
    %1360 = vmatpush1.msra.mxu0 0.0
    %1361 = vmatprep.subr.mxu0 0.0
    %1362 = vmatpush1.msra.mxu0 0.0
    %1363 = vmatprep.mubr.f32.mxu0 0.0
    %1364 = vmatmul.mubr.f32.gmra.mrb[0].mxu0 %v1297
    %v1365 = vpop.f32.mrb[0].mxu0
    %v1366 = vadd.f32 0.0, %v1365
    %v1367 = vpop.f32.mrb[0].mxu0
    %1368 = vdwg.mxu0
    %v1369 = vadd.f32 %v1291, %v1366
    %v1370 = vxor.u32 %v1369, 2147483648
    %v1371 = vmul.f32 %v1370, 1.442695
    %v1372 = vpow.pop %v1371
    %v1373 = vadd.f32 %v1372, 1.0
    %v1374 = vrcp.pop %v1373
    %v1375 = vmul.f32 1.0, %v1374
    %v1376 = vadd.f32 %v1366, %v796
    %1378 = vrot.lane.b32.xlu0 %v1376, 64
    %v1379 = vpop.permute.xlu0 %1378
    %v1381 = vmul.f32 %v1375, %v1379
    %1383 = vrot.lane.b32.xlu0 %v1381, 64
    %v1384 = vpop.permute.xlu0 %1383
    %v1386 = vadd.f32 %v1291, %v1384
    %v1387 = vtanh.pop %v1386
    %v1388 = vsub.f32 1.0, %v1375
    %1390 = vrot.lane.b32.xlu0 %v1387, 96
    %v1391 = vpop.permute.xlu0 %1390
    %v1393 = vmul.f32 %v1388, %v1391
    %v1394 = vmul.f32 %v1375, %v1108
    %v1395 = vadd.f32 %v1393, %v1394
    %v1396 = vld [vmem:[%s1 + $0x4] sm:$0x3]
    %1398 = vset.pattern.permute.xlu0 0
    %1399 = vperm.xlu0 %1398, %v1396
    %v1400 = vpop.permute.xlu0 %1399
    %v1402 = vmul.f32 %v1395, %v1400
    %1404 = vrot.lane.b32.xlu0 %v1402, 96
    %v1405 = vpop.permute.xlu0 %1404
    %1407 = vst.msk [vmem:[#allocation3 + $0x4] sm:$0x3] %vm832, %v1405
    %v1408 = vld [vmem:[#allocation2 + $0x8] sm:$0x3]
    %1410 = vrot.lane.b32.xlu0 %v1223, 96
    %v1411 = vpop.permute.xlu0 %1410
    %v1412 = vsel %vm435, %v1411, 0
    %1414 = vmatprep.subr.mxu0 0.0
    %1415 = vmatpush1.msra.mxu0 %v400
    %1416 = vmatprep.subr.mxu0 0.0
    %1417 = vmatpush1.msra.mxu0 %v401
    %1418 = vmatprep.subr.mxu0 0.0
    %1419 = vmatpush1.msra.mxu0 %v402
    %1420 = vmatprep.subr.mxu0 0.0
    %1421 = vmatpush1.msra.mxu0 %v403
    %1422 = vmatprep.subr.mxu0 0.0
    %1423 = vmatpush1.msra.mxu0 0.0
    %1424 = vmatprep.subr.mxu0 0.0
    %1425 = vmatpush1.msra.mxu0 0.0
    %1426 = vmatprep.subr.mxu0 0.0
    %1427 = vmatpush1.msra.mxu0 0.0
    %1428 = vmatprep.subr.mxu0 0.0
    %1429 = vmatpush1.msra.mxu0 0.0
    %1430 = vmatprep.subr.mxu0 0.0
    %1431 = vmatpush1.msra.mxu0 0.0
    %1432 = vmatprep.subr.mxu0 0.0
    %1433 = vmatpush1.msra.mxu0 0.0
    %1434 = vmatprep.subr.mxu0 0.0
    %1435 = vmatpush1.msra.mxu0 0.0
    %1436 = vmatprep.subr.mxu0 0.0
    %1437 = vmatpush1.msra.mxu0 0.0
    %1438 = vmatprep.subr.mxu0 0.0
    %1439 = vmatpush1.msra.mxu0 0.0
    %1440 = vmatprep.subr.mxu0 0.0
    %1441 = vmatpush1.msra.mxu0 0.0
    %1442 = vmatprep.subr.mxu0 0.0
    %1443 = vmatpush1.msra.mxu0 0.0
    %1444 = vmatprep.subr.mxu0 0.0
    %1445 = vmatpush1.msra.mxu0 0.0
    %1446 = vmatprep.subr.mxu0 0.0
    %1447 = vmatpush1.msra.mxu0 0.0
    %1448 = vmatprep.subr.mxu0 0.0
    %1449 = vmatpush1.msra.mxu0 0.0
    %1450 = vmatprep.subr.mxu0 0.0
    %1451 = vmatpush1.msra.mxu0 0.0
    %1452 = vmatprep.subr.mxu0 0.0
    %1453 = vmatpush1.msra.mxu0 0.0
    %1454 = vmatprep.subr.mxu0 0.0
    %1455 = vmatpush1.msra.mxu0 0.0
    %1456 = vmatprep.subr.mxu0 0.0
    %1457 = vmatpush1.msra.mxu0 0.0
    %1458 = vmatprep.subr.mxu0 0.0
    %1459 = vmatpush1.msra.mxu0 0.0
    %1460 = vmatprep.subr.mxu0 0.0
    %1461 = vmatpush1.msra.mxu0 0.0
    %1462 = vmatprep.subr.mxu0 0.0
    %1463 = vmatpush1.msra.mxu0 0.0
    %1464 = vmatprep.subr.mxu0 0.0
    %1465 = vmatpush1.msra.mxu0 0.0
    %1466 = vmatprep.subr.mxu0 0.0
    %1467 = vmatpush1.msra.mxu0 0.0
    %1468 = vmatprep.subr.mxu0 0.0
    %1469 = vmatpush1.msra.mxu0 0.0
    %1470 = vmatprep.subr.mxu0 0.0
    %1471 = vmatpush1.msra.mxu0 0.0
    %1472 = vmatprep.subr.mxu0 0.0
    %1473 = vmatpush1.msra.mxu0 0.0
    %1474 = vmatprep.subr.mxu0 0.0
    %1475 = vmatpush1.msra.mxu0 0.0
    %1476 = vmatprep.subr.mxu0 0.0
    %1477 = vmatpush1.msra.mxu0 0.0
    %1478 = vmatprep.mubr.f32.mxu0 0.0
    %1479 = vmatmul.mubr.f32.gmra.mrb[0].mxu0 %v1412
    %v1480 = vpop.f32.mrb[0].mxu0
    %v1481 = vadd.f32 0.0, %v1480
    %v1482 = vpop.f32.mrb[0].mxu0
    %1483 = vdwg.mxu0
    %v1484 = vadd.f32 %v1408, %v1481
    %v1485 = vxor.u32 %v1484, 2147483648
    %v1486 = vmul.f32 %v1485, 1.442695
    %v1487 = vpow.pop %v1486
    %v1488 = vadd.f32 %v1487, 1.0
    %v1489 = vrcp.pop %v1488
    %v1490 = vmul.f32 1.0, %v1489
    %v1491 = vadd.f32 %v1481, %v517
    %1493 = vrot.lane.b32.xlu0 %v1491, 64
    %v1494 = vpop.permute.xlu0 %1493
    %v1496 = vmul.f32 %v1490, %v1494
    %1498 = vrot.lane.b32.xlu0 %v1496, 64
    %v1499 = vpop.permute.xlu0 %1498
    %v1501 = vadd.f32 %v1408, %v1499
    %v1502 = vtanh.pop %v1501
    %v1503 = vsub.f32 1.0, %v1490
    %1505 = vrot.lane.b32.xlu0 %v1502, 96
    %v1506 = vpop.permute.xlu0 %1505
    %v1508 = vmul.f32 %v1503, %v1506
    %v1509 = vmul.f32 %v1490, %v1223
    %v1510 = vadd.f32 %v1508, %v1509
    %1511 = vmatprep.subr.mxu0 0.0
    %1512 = vmatpush1.msra.mxu0 %v408
    %1513 = vmatprep.subr.mxu0 0.0
    %1514 = vmatpush1.msra.mxu0 %v409
    %1515 = vmatprep.subr.mxu0 0.0
    %1516 = vmatpush1.msra.mxu0 %v410
    %1517 = vmatprep.subr.mxu0 0.0
    %1518 = vmatpush1.msra.mxu0 %v411
    %1519 = vmatprep.subr.mxu0 0.0
    %1520 = vmatpush1.msra.mxu0 0.0
    %1521 = vmatprep.subr.mxu0 0.0
    %1522 = vmatpush1.msra.mxu0 0.0
    %1523 = vmatprep.subr.mxu0 0.0
    %1524 = vmatpush1.msra.mxu0 0.0
    %1525 = vmatprep.subr.mxu0 0.0
    %1526 = vmatpush1.msra.mxu0 0.0
    %1527 = vmatprep.subr.mxu0 0.0
    %1528 = vmatpush1.msra.mxu0 0.0
    %1529 = vmatprep.subr.mxu0 0.0
    %1530 = vmatpush1.msra.mxu0 0.0
    %1531 = vmatprep.subr.mxu0 0.0
    %1532 = vmatpush1.msra.mxu0 0.0
    %1533 = vmatprep.subr.mxu0 0.0
    %1534 = vmatpush1.msra.mxu0 0.0
    %1535 = vmatprep.subr.mxu0 0.0
    %1536 = vmatpush1.msra.mxu0 0.0
    %1537 = vmatprep.subr.mxu0 0.0
    %1538 = vmatpush1.msra.mxu0 0.0
    %1539 = vmatprep.subr.mxu0 0.0
    %1540 = vmatpush1.msra.mxu0 0.0
    %1541 = vmatprep.subr.mxu0 0.0
    %1542 = vmatpush1.msra.mxu0 0.0
    %1543 = vmatprep.subr.mxu0 0.0
    %1544 = vmatpush1.msra.mxu0 0.0
    %1545 = vmatprep.subr.mxu0 0.0
    %1546 = vmatpush1.msra.mxu0 0.0
    %1547 = vmatprep.subr.mxu0 0.0
    %1548 = vmatpush1.msra.mxu0 0.0
    %1549 = vmatprep.subr.mxu0 0.0
    %1550 = vmatpush1.msra.mxu0 0.0
    %1551 = vmatprep.subr.mxu0 0.0
    %1552 = vmatpush1.msra.mxu0 0.0
    %1553 = vmatprep.subr.mxu0 0.0
    %1554 = vmatpush1.msra.mxu0 0.0
    %1555 = vmatprep.subr.mxu0 0.0
    %1556 = vmatpush1.msra.mxu0 0.0
    %1557 = vmatprep.subr.mxu0 0.0
    %1558 = vmatpush1.msra.mxu0 0.0
    %1559 = vmatprep.subr.mxu0 0.0
    %1560 = vmatpush1.msra.mxu0 0.0
    %1561 = vmatprep.subr.mxu0 0.0
    %1562 = vmatpush1.msra.mxu0 0.0
    %1563 = vmatprep.subr.mxu0 0.0
    %1564 = vmatpush1.msra.mxu0 0.0
    %1565 = vmatprep.subr.mxu0 0.0
    %1566 = vmatpush1.msra.mxu0 0.0
    %1567 = vmatprep.subr.mxu0 0.0
    %1568 = vmatpush1.msra.mxu0 0.0
    %1569 = vmatprep.subr.mxu0 0.0
    %1570 = vmatpush1.msra.mxu0 0.0
    %1571 = vmatprep.subr.mxu0 0.0
    %1572 = vmatpush1.msra.mxu0 0.0
    %1573 = vmatprep.subr.mxu0 0.0
    %1574 = vmatpush1.msra.mxu0 0.0
    %1575 = vmatprep.mubr.f32.mxu0 0.0
    %1576 = vmatmul.mubr.f32.gmra.mrb[0].mxu0 %v1412
    %v1577 = vpop.f32.mrb[0].mxu0
    %v1578 = vadd.f32 %v429, %v1577
    %v1579 = vpop.f32.mrb[0].mxu0
    %1580 = vdwg.mxu0
    %1582 = vrot.lane.b32.xlu0 %v1395, 96
    %v1583 = vpop.permute.xlu0 %1582
    %v1584 = vsel %vm435, %v1583, 0
    %1586 = vmatprep.subr.mxu0 0.0
    %1587 = vmatpush1.msra.mxu0 %v404
    %1588 = vmatprep.subr.mxu0 0.0
    %1589 = vmatpush1.msra.mxu0 %v405
    %1590 = vmatprep.subr.mxu0 0.0
    %1591 = vmatpush1.msra.mxu0 %v406
    %1592 = vmatprep.subr.mxu0 0.0
    %1593 = vmatpush1.msra.mxu0 %v407
    %1594 = vmatprep.subr.mxu0 0.0
    %1595 = vmatpush1.msra.mxu0 0.0
    %1596 = vmatprep.subr.mxu0 0.0
    %1597 = vmatpush1.msra.mxu0 0.0
    %1598 = vmatprep.subr.mxu0 0.0
    %1599 = vmatpush1.msra.mxu0 0.0
    %1600 = vmatprep.subr.mxu0 0.0
    %1601 = vmatpush1.msra.mxu0 0.0
    %1602 = vmatprep.subr.mxu0 0.0
    %1603 = vmatpush1.msra.mxu0 0.0
    %1604 = vmatprep.subr.mxu0 0.0
    %1605 = vmatpush1.msra.mxu0 0.0
    %1606 = vmatprep.subr.mxu0 0.0
    %1607 = vmatpush1.msra.mxu0 0.0
    %1608 = vmatprep.subr.mxu0 0.0
    %1609 = vmatpush1.msra.mxu0 0.0
    %1610 = vmatprep.subr.mxu0 0.0
    %1611 = vmatpush1.msra.mxu0 0.0
    %1612 = vmatprep.subr.mxu0 0.0
    %1613 = vmatpush1.msra.mxu0 0.0
    %1614 = vmatprep.subr.mxu0 0.0
    %1615 = vmatpush1.msra.mxu0 0.0
    %1616 = vmatprep.subr.mxu0 0.0
    %1617 = vmatpush1.msra.mxu0 0.0
    %1618 = vmatprep.subr.mxu0 0.0
    %1619 = vmatpush1.msra.mxu0 0.0
    %1620 = vmatprep.subr.mxu0 0.0
    %1621 = vmatpush1.msra.mxu0 0.0
    %1622 = vmatprep.subr.mxu0 0.0
    %1623 = vmatpush1.msra.mxu0 0.0
    %1624 = vmatprep.subr.mxu0 0.0
    %1625 = vmatpush1.msra.mxu0 0.0
    %1626 = vmatprep.subr.mxu0 0.0
    %1627 = vmatpush1.msra.mxu0 0.0
    %1628 = vmatprep.subr.mxu0 0.0
    %1629 = vmatpush1.msra.mxu0 0.0
    %1630 = vmatprep.subr.mxu0 0.0
    %1631 = vmatpush1.msra.mxu0 0.0
    %1632 = vmatprep.subr.mxu0 0.0
    %1633 = vmatpush1.msra.mxu0 0.0
    %1634 = vmatprep.subr.mxu0 0.0
    %1635 = vmatpush1.msra.mxu0 0.0
    %1636 = vmatprep.subr.mxu0 0.0
    %1637 = vmatpush1.msra.mxu0 0.0
    %1638 = vmatprep.subr.mxu0 0.0
    %1639 = vmatpush1.msra.mxu0 0.0
    %1640 = vmatprep.subr.mxu0 0.0
    %1641 = vmatpush1.msra.mxu0 0.0
    %1642 = vmatprep.subr.mxu0 0.0
    %1643 = vmatpush1.msra.mxu0 0.0
    %1644 = vmatprep.subr.mxu0 0.0
    %1645 = vmatpush1.msra.mxu0 0.0
    %1646 = vmatprep.subr.mxu0 0.0
    %1647 = vmatpush1.msra.mxu0 0.0
    %1648 = vmatprep.subr.mxu0 0.0
    %1649 = vmatpush1.msra.mxu0 0.0
    %1650 = vmatprep.mubr.f32.mxu0 0.0
    %1651 = vmatmul.mubr.f32.gmra.mrb[0].mxu0 %v1584
    %v1652 = vpop.f32.mrb[0].mxu0
    %v1653 = vadd.f32 0.0, %v1652
    %v1654 = vpop.f32.mrb[0].mxu0
    %1655 = vdwg.mxu0
    %v1656 = vadd.f32 %v1578, %v1653
    %v1657 = vxor.u32 %v1656, 2147483648
    %v1658 = vmul.f32 %v1657, 1.442695
    %v1659 = vpow.pop %v1658
    %v1660 = vadd.f32 %v1659, 1.0
    %v1661 = vrcp.pop %v1660
    %v1662 = vmul.f32 1.0, %v1661
    %v1663 = vadd.f32 %v1653, %v796
    %1665 = vrot.lane.b32.xlu0 %v1663, 64
    %v1666 = vpop.permute.xlu0 %1665
    %v1668 = vmul.f32 %v1662, %v1666
    %1670 = vrot.lane.b32.xlu0 %v1668, 64
    %v1671 = vpop.permute.xlu0 %1670
    %v1673 = vadd.f32 %v1578, %v1671
    %v1674 = vtanh.pop %v1673
    %v1675 = vsub.f32 1.0, %v1662
    %1677 = vrot.lane.b32.xlu0 %v1674, 96
    %v1678 = vpop.permute.xlu0 %1677
    %v1680 = vmul.f32 %v1675, %v1678
    %v1681 = vmul.f32 %v1662, %v1395
    %v1682 = vadd.f32 %v1680, %v1681
    %v1683 = vld [vmem:[%s1 + $0x6] sm:$0x3]
    %1685 = vset.pattern.permute.xlu0 0
    %1686 = vperm.xlu0 %1685, %v1683
    %v1687 = vpop.permute.xlu0 %1686
    %v1689 = vmul.f32 %v1682, %v1687
    %1691 = vrot.lane.b32.xlu0 %v1689, 96
    %v1692 = vpop.permute.xlu0 %1691
    %1694 = vst.msk [vmem:[#allocation3 + $0x6] sm:$0x3] %vm832, %v1692
    %v1695 = vld [vmem:[#allocation2 + $0xa] sm:$0x3]
    %1697 = vrot.lane.b32.xlu0 %v1510, 96
    %v1698 = vpop.permute.xlu0 %1697
    %v1699 = vsel %vm435, %v1698, 0
    %1701 = vmatprep.subr.mxu0 0.0
    %1702 = vmatpush1.msra.mxu0 %v400
    %1703 = vmatprep.subr.mxu0 0.0
    %1704 = vmatpush1.msra.mxu0 %v401
    %1705 = vmatprep.subr.mxu0 0.0
    %1706 = vmatpush1.msra.mxu0 %v402
    %1707 = vmatprep.subr.mxu0 0.0
    %1708 = vmatpush1.msra.mxu0 %v403
    %1709 = vmatprep.subr.mxu0 0.0
    %1710 = vmatpush1.msra.mxu0 0.0
    %1711 = vmatprep.subr.mxu0 0.0
    %1712 = vmatpush1.msra.mxu0 0.0
    %1713 = vmatprep.subr.mxu0 0.0
    %1714 = vmatpush1.msra.mxu0 0.0
    %1715 = vmatprep.subr.mxu0 0.0
    %1716 = vmatpush1.msra.mxu0 0.0
    %1717 = vmatprep.subr.mxu0 0.0
    %1718 = vmatpush1.msra.mxu0 0.0
    %1719 = vmatprep.subr.mxu0 0.0
    %1720 = vmatpush1.msra.mxu0 0.0
    %1721 = vmatprep.subr.mxu0 0.0
    %1722 = vmatpush1.msra.mxu0 0.0
    %1723 = vmatprep.subr.mxu0 0.0
    %1724 = vmatpush1.msra.mxu0 0.0
    %1725 = vmatprep.subr.mxu0 0.0
    %1726 = vmatpush1.msra.mxu0 0.0
    %1727 = vmatprep.subr.mxu0 0.0
    %1728 = vmatpush1.msra.mxu0 0.0
    %1729 = vmatprep.subr.mxu0 0.0
    %1730 = vmatpush1.msra.mxu0 0.0
    %1731 = vmatprep.subr.mxu0 0.0
    %1732 = vmatpush1.msra.mxu0 0.0
    %1733 = vmatprep.subr.mxu0 0.0
    %1734 = vmatpush1.msra.mxu0 0.0
    %1735 = vmatprep.subr.mxu0 0.0
    %1736 = vmatpush1.msra.mxu0 0.0
    %1737 = vmatprep.subr.mxu0 0.0
    %1738 = vmatpush1.msra.mxu0 0.0
    %1739 = vmatprep.subr.mxu0 0.0
    %1740 = vmatpush1.msra.mxu0 0.0
    %1741 = vmatprep.subr.mxu0 0.0
    %1742 = vmatpush1.msra.mxu0 0.0
    %1743 = vmatprep.subr.mxu0 0.0
    %1744 = vmatpush1.msra.mxu0 0.0
    %1745 = vmatprep.subr.mxu0 0.0
    %1746 = vmatpush1.msra.mxu0 0.0
    %1747 = vmatprep.subr.mxu0 0.0
    %1748 = vmatpush1.msra.mxu0 0.0
    %1749 = vmatprep.subr.mxu0 0.0
    %1750 = vmatpush1.msra.mxu0 0.0
    %1751 = vmatprep.subr.mxu0 0.0
    %1752 = vmatpush1.msra.mxu0 0.0
    %1753 = vmatprep.subr.mxu0 0.0
    %1754 = vmatpush1.msra.mxu0 0.0
    %1755 = vmatprep.subr.mxu0 0.0
    %1756 = vmatpush1.msra.mxu0 0.0
    %1757 = vmatprep.subr.mxu0 0.0
    %1758 = vmatpush1.msra.mxu0 0.0
    %1759 = vmatprep.subr.mxu0 0.0
    %1760 = vmatpush1.msra.mxu0 0.0
    %1761 = vmatprep.subr.mxu0 0.0
    %1762 = vmatpush1.msra.mxu0 0.0
    %1763 = vmatprep.subr.mxu0 0.0
    %1764 = vmatpush1.msra.mxu0 0.0
    %1765 = vmatprep.mubr.f32.mxu0 0.0
    %1766 = vmatmul.mubr.f32.gmra.mrb[0].mxu0 %v1699
    %v1767 = vpop.f32.mrb[0].mxu0
    %v1768 = vadd.f32 0.0, %v1767
    %v1769 = vpop.f32.mrb[0].mxu0
    %1770 = vdwg.mxu0
    %v1771 = vadd.f32 %v1695, %v1768
    %v1772 = vxor.u32 %v1771, 2147483648
    %v1773 = vmul.f32 %v1772, 1.442695
    %v1774 = vpow.pop %v1773
    %v1775 = vadd.f32 %v1774, 1.0
    %v1776 = vrcp.pop %v1775
    %v1777 = vmul.f32 1.0, %v1776
    %v1778 = vadd.f32 %v1768, %v517
    %1780 = vrot.lane.b32.xlu0 %v1778, 64
    %v1781 = vpop.permute.xlu0 %1780
    %v1783 = vmul.f32 %v1777, %v1781
    %1785 = vrot.lane.b32.xlu0 %v1783, 64
    %v1786 = vpop.permute.xlu0 %1785
    %v1788 = vadd.f32 %v1695, %v1786
    %v1789 = vtanh.pop %v1788
    %v1790 = vsub.f32 1.0, %v1777
    %1792 = vrot.lane.b32.xlu0 %v1789, 96
    %v1793 = vpop.permute.xlu0 %1792
    %v1795 = vmul.f32 %v1790, %v1793
    %v1796 = vmul.f32 %v1777, %v1510
    %v1797 = vadd.f32 %v1795, %v1796
    %1798 = vmatprep.subr.mxu0 0.0
    %1799 = vmatpush1.msra.mxu0 %v408
    %1800 = vmatprep.subr.mxu0 0.0
    %1801 = vmatpush1.msra.mxu0 %v409
    %1802 = vmatprep.subr.mxu0 0.0
    %1803 = vmatpush1.msra.mxu0 %v410
    %1804 = vmatprep.subr.mxu0 0.0
    %1805 = vmatpush1.msra.mxu0 %v411
    %1806 = vmatprep.subr.mxu0 0.0
    %1807 = vmatpush1.msra.mxu0 0.0
    %1808 = vmatprep.subr.mxu0 0.0
    %1809 = vmatpush1.msra.mxu0 0.0
    %1810 = vmatprep.subr.mxu0 0.0
    %1811 = vmatpush1.msra.mxu0 0.0
    %1812 = vmatprep.subr.mxu0 0.0
    %1813 = vmatpush1.msra.mxu0 0.0
    %1814 = vmatprep.subr.mxu0 0.0
    %1815 = vmatpush1.msra.mxu0 0.0
    %1816 = vmatprep.subr.mxu0 0.0
    %1817 = vmatpush1.msra.mxu0 0.0
    %1818 = vmatprep.subr.mxu0 0.0
    %1819 = vmatpush1.msra.mxu0 0.0
    %1820 = vmatprep.subr.mxu0 0.0
    %1821 = vmatpush1.msra.mxu0 0.0
    %1822 = vmatprep.subr.mxu0 0.0
    %1823 = vmatpush1.msra.mxu0 0.0
    %1824 = vmatprep.subr.mxu0 0.0
    %1825 = vmatpush1.msra.mxu0 0.0
    %1826 = vmatprep.subr.mxu0 0.0
    %1827 = vmatpush1.msra.mxu0 0.0
    %1828 = vmatprep.subr.mxu0 0.0
    %1829 = vmatpush1.msra.mxu0 0.0
    %1830 = vmatprep.subr.mxu0 0.0
    %1831 = vmatpush1.msra.mxu0 0.0
    %1832 = vmatprep.subr.mxu0 0.0
    %1833 = vmatpush1.msra.mxu0 0.0
    %1834 = vmatprep.subr.mxu0 0.0
    %1835 = vmatpush1.msra.mxu0 0.0
    %1836 = vmatprep.subr.mxu0 0.0
    %1837 = vmatpush1.msra.mxu0 0.0
    %1838 = vmatprep.subr.mxu0 0.0
    %1839 = vmatpush1.msra.mxu0 0.0
    %1840 = vmatprep.subr.mxu0 0.0
    %1841 = vmatpush1.msra.mxu0 0.0
    %1842 = vmatprep.subr.mxu0 0.0
    %1843 = vmatpush1.msra.mxu0 0.0
    %1844 = vmatprep.subr.mxu0 0.0
    %1845 = vmatpush1.msra.mxu0 0.0
    %1846 = vmatprep.subr.mxu0 0.0
    %1847 = vmatpush1.msra.mxu0 0.0
    %1848 = vmatprep.subr.mxu0 0.0
    %1849 = vmatpush1.msra.mxu0 0.0
    %1850 = vmatprep.subr.mxu0 0.0
    %1851 = vmatpush1.msra.mxu0 0.0
    %1852 = vmatprep.subr.mxu0 0.0
    %1853 = vmatpush1.msra.mxu0 0.0
    %1854 = vmatprep.subr.mxu0 0.0
    %1855 = vmatpush1.msra.mxu0 0.0
    %1856 = vmatprep.subr.mxu0 0.0
    %1857 = vmatpush1.msra.mxu0 0.0
    %1858 = vmatprep.subr.mxu0 0.0
    %1859 = vmatpush1.msra.mxu0 0.0
    %1860 = vmatprep.subr.mxu0 0.0
    %1861 = vmatpush1.msra.mxu0 0.0
    %1862 = vmatprep.mubr.f32.mxu0 0.0
    %1863 = vmatmul.mubr.f32.gmra.mrb[0].mxu0 %v1699
    %v1864 = vpop.f32.mrb[0].mxu0
    %v1865 = vadd.f32 %v429, %v1864
    %v1866 = vpop.f32.mrb[0].mxu0
    %1867 = vdwg.mxu0
    %1869 = vrot.lane.b32.xlu0 %v1682, 96
    %v1870 = vpop.permute.xlu0 %1869
    %v1871 = vsel %vm435, %v1870, 0
    %1873 = vmatprep.subr.mxu0 0.0
    %1874 = vmatpush1.msra.mxu0 %v404
    %1875 = vmatprep.subr.mxu0 0.0
    %1876 = vmatpush1.msra.mxu0 %v405
    %1877 = vmatprep.subr.mxu0 0.0
    %1878 = vmatpush1.msra.mxu0 %v406
    %1879 = vmatprep.subr.mxu0 0.0
    %1880 = vmatpush1.msra.mxu0 %v407
    %1881 = vmatprep.subr.mxu0 0.0
    %1882 = vmatpush1.msra.mxu0 0.0
    %1883 = vmatprep.subr.mxu0 0.0
    %1884 = vmatpush1.msra.mxu0 0.0
    %1885 = vmatprep.subr.mxu0 0.0
    %1886 = vmatpush1.msra.mxu0 0.0
    %1887 = vmatprep.subr.mxu0 0.0
    %1888 = vmatpush1.msra.mxu0 0.0
    %1889 = vmatprep.subr.mxu0 0.0
    %1890 = vmatpush1.msra.mxu0 0.0
    %1891 = vmatprep.subr.mxu0 0.0
    %1892 = vmatpush1.msra.mxu0 0.0
    %1893 = vmatprep.subr.mxu0 0.0
    %1894 = vmatpush1.msra.mxu0 0.0
    %1895 = vmatprep.subr.mxu0 0.0
    %1896 = vmatpush1.msra.mxu0 0.0
    %1897 = vmatprep.subr.mxu0 0.0
    %1898 = vmatpush1.msra.mxu0 0.0
    %1899 = vmatprep.subr.mxu0 0.0
    %1900 = vmatpush1.msra.mxu0 0.0
    %1901 = vmatprep.subr.mxu0 0.0
    %1902 = vmatpush1.msra.mxu0 0.0
    %1903 = vmatprep.subr.mxu0 0.0
    %1904 = vmatpush1.msra.mxu0 0.0
    %1905 = vmatprep.subr.mxu0 0.0
    %1906 = vmatpush1.msra.mxu0 0.0
    %1907 = vmatprep.subr.mxu0 0.0
    %1908 = vmatpush1.msra.mxu0 0.0
    %1909 = vmatprep.subr.mxu0 0.0
    %1910 = vmatpush1.msra.mxu0 0.0
    %1911 = vmatprep.subr.mxu0 0.0
    %1912 = vmatpush1.msra.mxu0 0.0
    %1913 = vmatprep.subr.mxu0 0.0
    %1914 = vmatpush1.msra.mxu0 0.0
    %1915 = vmatprep.subr.mxu0 0.0
    %1916 = vmatpush1.msra.mxu0 0.0
    %1917 = vmatprep.subr.mxu0 0.0
    %1918 = vmatpush1.msra.mxu0 0.0
    %1919 = vmatprep.subr.mxu0 0.0
    %1920 = vmatpush1.msra.mxu0 0.0
    %1921 = vmatprep.subr.mxu0 0.0
    %1922 = vmatpush1.msra.mxu0 0.0
    %1923 = vmatprep.subr.mxu0 0.0
    %1924 = vmatpush1.msra.mxu0 0.0
    %1925 = vmatprep.subr.mxu0 0.0
    %1926 = vmatpush1.msra.mxu0 0.0
    %1927 = vmatprep.subr.mxu0 0.0
    %1928 = vmatpush1.msra.mxu0 0.0
    %1929 = vmatprep.subr.mxu0 0.0
    %1930 = vmatpush1.msra.mxu0 0.0
    %1931 = vmatprep.subr.mxu0 0.0
    %1932 = vmatpush1.msra.mxu0 0.0
    %1933 = vmatprep.subr.mxu0 0.0
    %1934 = vmatpush1.msra.mxu0 0.0
    %1935 = vmatprep.subr.mxu0 0.0
    %1936 = vmatpush1.msra.mxu0 0.0
    %1937 = vmatprep.mubr.f32.mxu0 0.0
    %1938 = vmatmul.mubr.f32.gmra.mrb[0].mxu0 %v1871
    %v1939 = vpop.f32.mrb[0].mxu0
    %v1940 = vadd.f32 0.0, %v1939
    %v1941 = vpop.f32.mrb[0].mxu0
    %1942 = vdwg.mxu0
    %v1943 = vadd.f32 %v1865, %v1940
    %v1944 = vxor.u32 %v1943, 2147483648
    %v1945 = vmul.f32 %v1944, 1.442695
    %v1946 = vpow.pop %v1945
    %v1947 = vadd.f32 %v1946, 1.0
    %v1948 = vrcp.pop %v1947
    %v1949 = vmul.f32 1.0, %v1948
    %v1950 = vadd.f32 %v1940, %v796
    %1952 = vrot.lane.b32.xlu0 %v1950, 64
    %v1953 = vpop.permute.xlu0 %1952
    %v1955 = vmul.f32 %v1949, %v1953
    %1957 = vrot.lane.b32.xlu0 %v1955, 64
    %v1958 = vpop.permute.xlu0 %1957
    %v1960 = vadd.f32 %v1865, %v1958
    %v1961 = vtanh.pop %v1960
    %v1962 = vsub.f32 1.0, %v1949
    %1964 = vrot.lane.b32.xlu0 %v1961, 96
    %v1965 = vpop.permute.xlu0 %1964
    %v1967 = vmul.f32 %v1962, %v1965
    %v1968 = vmul.f32 %v1949, %v1682
    %v1969 = vadd.f32 %v1967, %v1968
    %v1970 = vld [vmem:[%s1 + $0x8] sm:$0x3]
    %1972 = vset.pattern.permute.xlu0 0
    %1973 = vperm.xlu0 %1972, %v1970
    %v1974 = vpop.permute.xlu0 %1973
    %v1976 = vmul.f32 %v1969, %v1974
    %1978 = vrot.lane.b32.xlu0 %v1976, 96
    %v1979 = vpop.permute.xlu0 %1978
    %1981 = vst.msk [vmem:[#allocation3 + $0x8] sm:$0x3] %vm832, %v1979
    %v1982 = vld [vmem:[#allocation2 + $0xc] sm:$0x3]
    %1984 = vrot.lane.b32.xlu0 %v1797, 96
    %v1985 = vpop.permute.xlu0 %1984
    %v1986 = vsel %vm435, %v1985, 0
    %1988 = vmatprep.subr.mxu0 0.0
    %1989 = vmatpush1.msra.mxu0 %v400
    %1990 = vmatprep.subr.mxu0 0.0
    %1991 = vmatpush1.msra.mxu0 %v401
    %1992 = vmatprep.subr.mxu0 0.0
    %1993 = vmatpush1.msra.mxu0 %v402
    %1994 = vmatprep.subr.mxu0 0.0
    %1995 = vmatpush1.msra.mxu0 %v403
    %1996 = vmatprep.subr.mxu0 0.0
    %1997 = vmatpush1.msra.mxu0 0.0
    %1998 = vmatprep.subr.mxu0 0.0
    %1999 = vmatpush1.msra.mxu0 0.0
    %2000 = vmatprep.subr.mxu0 0.0
    %2001 = vmatpush1.msra.mxu0 0.0
    %2002 = vmatprep.subr.mxu0 0.0
    %2003 = vmatpush1.msra.mxu0 0.0
    %2004 = vmatprep.subr.mxu0 0.0
    %2005 = vmatpush1.msra.mxu0 0.0
    %2006 = vmatprep.subr.mxu0 0.0
    %2007 = vmatpush1.msra.mxu0 0.0
    %2008 = vmatprep.subr.mxu0 0.0
    %2009 = vmatpush1.msra.mxu0 0.0
    %2010 = vmatprep.subr.mxu0 0.0
    %2011 = vmatpush1.msra.mxu0 0.0
    %2012 = vmatprep.subr.mxu0 0.0
    %2013 = vmatpush1.msra.mxu0 0.0
    %2014 = vmatprep.subr.mxu0 0.0
    %2015 = vmatpush1.msra.mxu0 0.0
    %2016 = vmatprep.subr.mxu0 0.0
    %2017 = vmatpush1.msra.mxu0 0.0
    %2018 = vmatprep.subr.mxu0 0.0
    %2019 = vmatpush1.msra.mxu0 0.0
    %2020 = vmatprep.subr.mxu0 0.0
    %2021 = vmatpush1.msra.mxu0 0.0
    %2022 = vmatprep.subr.mxu0 0.0
    %2023 = vmatpush1.msra.mxu0 0.0
    %2024 = vmatprep.subr.mxu0 0.0
    %2025 = vmatpush1.msra.mxu0 0.0
    %2026 = vmatprep.subr.mxu0 0.0
    %2027 = vmatpush1.msra.mxu0 0.0
    %2028 = vmatprep.subr.mxu0 0.0
    %2029 = vmatpush1.msra.mxu0 0.0
    %2030 = vmatprep.subr.mxu0 0.0
    %2031 = vmatpush1.msra.mxu0 0.0
    %2032 = vmatprep.subr.mxu0 0.0
    %2033 = vmatpush1.msra.mxu0 0.0
    %2034 = vmatprep.subr.mxu0 0.0
    %2035 = vmatpush1.msra.mxu0 0.0
    %2036 = vmatprep.subr.mxu0 0.0
    %2037 = vmatpush1.msra.mxu0 0.0
    %2038 = vmatprep.subr.mxu0 0.0
    %2039 = vmatpush1.msra.mxu0 0.0
    %2040 = vmatprep.subr.mxu0 0.0
    %2041 = vmatpush1.msra.mxu0 0.0
    %2042 = vmatprep.subr.mxu0 0.0
    %2043 = vmatpush1.msra.mxu0 0.0
    %2044 = vmatprep.subr.mxu0 0.0
    %2045 = vmatpush1.msra.mxu0 0.0
    %2046 = vmatprep.subr.mxu0 0.0
    %2047 = vmatpush1.msra.mxu0 0.0
    %2048 = vmatprep.subr.mxu0 0.0
    %2049 = vmatpush1.msra.mxu0 0.0
    %2050 = vmatprep.subr.mxu0 0.0
    %2051 = vmatpush1.msra.mxu0 0.0
    %2052 = vmatprep.mubr.f32.mxu0 0.0
    %2053 = vmatmul.mubr.f32.gmra.mrb[0].mxu0 %v1986
    %v2054 = vpop.f32.mrb[0].mxu0
    %v2055 = vadd.f32 0.0, %v2054
    %v2056 = vpop.f32.mrb[0].mxu0
    %2057 = vdwg.mxu0
    %v2058 = vadd.f32 %v1982, %v2055
    %v2059 = vxor.u32 %v2058, 2147483648
    %v2060 = vmul.f32 %v2059, 1.442695
    %v2061 = vpow.pop %v2060
    %v2062 = vadd.f32 %v2061, 1.0
    %v2063 = vrcp.pop %v2062
    %v2064 = vmul.f32 1.0, %v2063
    %v2065 = vadd.f32 %v2055, %v517
    %2067 = vrot.lane.b32.xlu0 %v2065, 64
    %v2068 = vpop.permute.xlu0 %2067
    %v2070 = vmul.f32 %v2064, %v2068
    %2072 = vrot.lane.b32.xlu0 %v2070, 64
    %v2073 = vpop.permute.xlu0 %2072
    %v2075 = vadd.f32 %v1982, %v2073
    %v2076 = vtanh.pop %v2075
    %v2077 = vsub.f32 1.0, %v2064
    %2079 = vrot.lane.b32.xlu0 %v2076, 96
    %v2080 = vpop.permute.xlu0 %2079
    %v2082 = vmul.f32 %v2077, %v2080
    %v2083 = vmul.f32 %v2064, %v1797
    %v2084 = vadd.f32 %v2082, %v2083
    %2085 = vmatprep.subr.mxu0 0.0
    %2086 = vmatpush1.msra.mxu0 %v408
    %2087 = vmatprep.subr.mxu0 0.0
    %2088 = vmatpush1.msra.mxu0 %v409
    %2089 = vmatprep.subr.mxu0 0.0
    %2090 = vmatpush1.msra.mxu0 %v410
    %2091 = vmatprep.subr.mxu0 0.0
    %2092 = vmatpush1.msra.mxu0 %v411
    %2093 = vmatprep.subr.mxu0 0.0
    %2094 = vmatpush1.msra.mxu0 0.0
    %2095 = vmatprep.subr.mxu0 0.0
    %2096 = vmatpush1.msra.mxu0 0.0
    %2097 = vmatprep.subr.mxu0 0.0
    %2098 = vmatpush1.msra.mxu0 0.0
    %2099 = vmatprep.subr.mxu0 0.0
    %2100 = vmatpush1.msra.mxu0 0.0
    %2101 = vmatprep.subr.mxu0 0.0
    %2102 = vmatpush1.msra.mxu0 0.0
    %2103 = vmatprep.subr.mxu0 0.0
    %2104 = vmatpush1.msra.mxu0 0.0
    %2105 = vmatprep.subr.mxu0 0.0
    %2106 = vmatpush1.msra.mxu0 0.0
    %2107 = vmatprep.subr.mxu0 0.0
    %2108 = vmatpush1.msra.mxu0 0.0
    %2109 = vmatprep.subr.mxu0 0.0
    %2110 = vmatpush1.msra.mxu0 0.0
    %2111 = vmatprep.subr.mxu0 0.0
    %2112 = vmatpush1.msra.mxu0 0.0
    %2113 = vmatprep.subr.mxu0 0.0
    %2114 = vmatpush1.msra.mxu0 0.0
    %2115 = vmatprep.subr.mxu0 0.0
    %2116 = vmatpush1.msra.mxu0 0.0
    %2117 = vmatprep.subr.mxu0 0.0
    %2118 = vmatpush1.msra.mxu0 0.0
    %2119 = vmatprep.subr.mxu0 0.0
    %2120 = vmatpush1.msra.mxu0 0.0
    %2121 = vmatprep.subr.mxu0 0.0
    %2122 = vmatpush1.msra.mxu0 0.0
    %2123 = vmatprep.subr.mxu0 0.0
    %2124 = vmatpush1.msra.mxu0 0.0
    %2125 = vmatprep.subr.mxu0 0.0
    %2126 = vmatpush1.msra.mxu0 0.0
    %2127 = vmatprep.subr.mxu0 0.0
    %2128 = vmatpush1.msra.mxu0 0.0
    %2129 = vmatprep.subr.mxu0 0.0
    %2130 = vmatpush1.msra.mxu0 0.0
    %2131 = vmatprep.subr.mxu0 0.0
    %2132 = vmatpush1.msra.mxu0 0.0
    %2133 = vmatprep.subr.mxu0 0.0
    %2134 = vmatpush1.msra.mxu0 0.0
    %2135 = vmatprep.subr.mxu0 0.0
    %2136 = vmatpush1.msra.mxu0 0.0
    %2137 = vmatprep.subr.mxu0 0.0
    %2138 = vmatpush1.msra.mxu0 0.0
    %2139 = vmatprep.subr.mxu0 0.0
    %2140 = vmatpush1.msra.mxu0 0.0
    %2141 = vmatprep.subr.mxu0 0.0
    %2142 = vmatpush1.msra.mxu0 0.0
    %2143 = vmatprep.subr.mxu0 0.0
    %2144 = vmatpush1.msra.mxu0 0.0
    %2145 = vmatprep.subr.mxu0 0.0
    %2146 = vmatpush1.msra.mxu0 0.0
    %2147 = vmatprep.subr.mxu0 0.0
    %2148 = vmatpush1.msra.mxu0 0.0
    %2149 = vmatprep.mubr.f32.mxu0 0.0
    %2150 = vmatmul.mubr.f32.gmra.mrb[0].mxu0 %v1986
    %v2151 = vpop.f32.mrb[0].mxu0
    %v2152 = vadd.f32 %v429, %v2151
    %v2153 = vpop.f32.mrb[0].mxu0
    %2154 = vdwg.mxu0
    %2156 = vrot.lane.b32.xlu0 %v1969, 96
    %v2157 = vpop.permute.xlu0 %2156
    %v2158 = vsel %vm435, %v2157, 0
    %2160 = vmatprep.subr.mxu0 0.0
    %2161 = vmatpush1.msra.mxu0 %v404
    %2162 = vmatprep.subr.mxu0 0.0
    %2163 = vmatpush1.msra.mxu0 %v405
    %2164 = vmatprep.subr.mxu0 0.0
    %2165 = vmatpush1.msra.mxu0 %v406
    %2166 = vmatprep.subr.mxu0 0.0
    %2167 = vmatpush1.msra.mxu0 %v407
    %2168 = vmatprep.subr.mxu0 0.0
    %2169 = vmatpush1.msra.mxu0 0.0
    %2170 = vmatprep.subr.mxu0 0.0
    %2171 = vmatpush1.msra.mxu0 0.0
    %2172 = vmatprep.subr.mxu0 0.0
    %2173 = vmatpush1.msra.mxu0 0.0
    %2174 = vmatprep.subr.mxu0 0.0
    %2175 = vmatpush1.msra.mxu0 0.0
    %2176 = vmatprep.subr.mxu0 0.0
    %2177 = vmatpush1.msra.mxu0 0.0
    %2178 = vmatprep.subr.mxu0 0.0
    %2179 = vmatpush1.msra.mxu0 0.0
    %2180 = vmatprep.subr.mxu0 0.0
    %2181 = vmatpush1.msra.mxu0 0.0
    %2182 = vmatprep.subr.mxu0 0.0
    %2183 = vmatpush1.msra.mxu0 0.0
    %2184 = vmatprep.subr.mxu0 0.0
    %2185 = vmatpush1.msra.mxu0 0.0
    %2186 = vmatprep.subr.mxu0 0.0
    %2187 = vmatpush1.msra.mxu0 0.0
    %2188 = vmatprep.subr.mxu0 0.0
    %2189 = vmatpush1.msra.mxu0 0.0
    %2190 = vmatprep.subr.mxu0 0.0
    %2191 = vmatpush1.msra.mxu0 0.0
    %2192 = vmatprep.subr.mxu0 0.0
    %2193 = vmatpush1.msra.mxu0 0.0
    %2194 = vmatprep.subr.mxu0 0.0
    %2195 = vmatpush1.msra.mxu0 0.0
    %2196 = vmatprep.subr.mxu0 0.0
    %2197 = vmatpush1.msra.mxu0 0.0
    %2198 = vmatprep.subr.mxu0 0.0
    %2199 = vmatpush1.msra.mxu0 0.0
    %2200 = vmatprep.subr.mxu0 0.0
    %2201 = vmatpush1.msra.mxu0 0.0
    %2202 = vmatprep.subr.mxu0 0.0
    %2203 = vmatpush1.msra.mxu0 0.0
    %2204 = vmatprep.subr.mxu0 0.0
    %2205 = vmatpush1.msra.mxu0 0.0
    %2206 = vmatprep.subr.mxu0 0.0
    %2207 = vmatpush1.msra.mxu0 0.0
    %2208 = vmatprep.subr.mxu0 0.0
    %2209 = vmatpush1.msra.mxu0 0.0
    %2210 = vmatprep.subr.mxu0 0.0
    %2211 = vmatpush1.msra.mxu0 0.0
    %2212 = vmatprep.subr.mxu0 0.0
    %2213 = vmatpush1.msra.mxu0 0.0
    %2214 = vmatprep.subr.mxu0 0.0
    %2215 = vmatpush1.msra.mxu0 0.0
    %2216 = vmatprep.subr.mxu0 0.0
    %2217 = vmatpush1.msra.mxu0 0.0
    %2218 = vmatprep.subr.mxu0 0.0
    %2219 = vmatpush1.msra.mxu0 0.0
    %2220 = vmatprep.subr.mxu0 0.0
    %2221 = vmatpush1.msra.mxu0 0.0
    %2222 = vmatprep.subr.mxu0 0.0
    %2223 = vmatpush1.msra.mxu0 0.0
    %2224 = vmatprep.mubr.f32.mxu0 0.0
    %2225 = vmatmul.mubr.f32.gmra.mrb[0].mxu0 %v2158
    %v2226 = vpop.f32.mrb[0].mxu0
    %v2227 = vadd.f32 0.0, %v2226
    %v2228 = vpop.f32.mrb[0].mxu0
    %2229 = vdwg.mxu0
    %v2230 = vadd.f32 %v2152, %v2227
    %v2231 = vxor.u32 %v2230, 2147483648
    %v2232 = vmul.f32 %v2231, 1.442695
    %v2233 = vpow.pop %v2232
    %v2234 = vadd.f32 %v2233, 1.0
    %v2235 = vrcp.pop %v2234
    %v2236 = vmul.f32 1.0, %v2235
    %v2237 = vadd.f32 %v2227, %v796
    %2239 = vrot.lane.b32.xlu0 %v2237, 64
    %v2240 = vpop.permute.xlu0 %2239
    %v2242 = vmul.f32 %v2236, %v2240
    %2244 = vrot.lane.b32.xlu0 %v2242, 64
    %v2245 = vpop.permute.xlu0 %2244
    %v2247 = vadd.f32 %v2152, %v2245
    %v2248 = vtanh.pop %v2247
    %v2249 = vsub.f32 1.0, %v2236
    %2251 = vrot.lane.b32.xlu0 %v2248, 96
    %v2252 = vpop.permute.xlu0 %2251
    %v2254 = vmul.f32 %v2249, %v2252
    %v2255 = vmul.f32 %v2236, %v1969
    %v2256 = vadd.f32 %v2254, %v2255
    %v2257 = vld [vmem:[%s1 + $0xa] sm:$0x3]
    %2259 = vset.pattern.permute.xlu0 0
    %2260 = vperm.xlu0 %2259, %v2257
    %v2261 = vpop.permute.xlu0 %2260
    %v2263 = vmul.f32 %v2256, %v2261
    %2265 = vrot.lane.b32.xlu0 %v2263, 96
    %v2266 = vpop.permute.xlu0 %2265
    %2268 = vst.msk [vmem:[#allocation3 + $0xa] sm:$0x3] %vm832, %v2266
    %v2269 = vld [vmem:[#allocation2 + $0xe] sm:$0x3]
    %2271 = vrot.lane.b32.xlu0 %v2084, 96
    %v2272 = vpop.permute.xlu0 %2271
    %v2273 = vsel %vm435, %v2272, 0
    %2275 = vmatprep.subr.mxu0 0.0
    %2276 = vmatpush1.msra.mxu0 %v400
    %2277 = vmatprep.subr.mxu0 0.0
    %2278 = vmatpush1.msra.mxu0 %v401
    %2279 = vmatprep.subr.mxu0 0.0
    %2280 = vmatpush1.msra.mxu0 %v402
    %2281 = vmatprep.subr.mxu0 0.0
    %2282 = vmatpush1.msra.mxu0 %v403
    %2283 = vmatprep.subr.mxu0 0.0
    %2284 = vmatpush1.msra.mxu0 0.0
    %2285 = vmatprep.subr.mxu0 0.0
    %2286 = vmatpush1.msra.mxu0 0.0
    %2287 = vmatprep.subr.mxu0 0.0
    %2288 = vmatpush1.msra.mxu0 0.0
    %2289 = vmatprep.subr.mxu0 0.0
    %2290 = vmatpush1.msra.mxu0 0.0
    %2291 = vmatprep.subr.mxu0 0.0
    %2292 = vmatpush1.msra.mxu0 0.0
    %2293 = vmatprep.subr.mxu0 0.0
    %2294 = vmatpush1.msra.mxu0 0.0
    %2295 = vmatprep.subr.mxu0 0.0
    %2296 = vmatpush1.msra.mxu0 0.0
    %2297 = vmatprep.subr.mxu0 0.0
    %2298 = vmatpush1.msra.mxu0 0.0
    %2299 = vmatprep.subr.mxu0 0.0
    %2300 = vmatpush1.msra.mxu0 0.0
    %2301 = vmatprep.subr.mxu0 0.0
    %2302 = vmatpush1.msra.mxu0 0.0
    %2303 = vmatprep.subr.mxu0 0.0
    %2304 = vmatpush1.msra.mxu0 0.0
    %2305 = vmatprep.subr.mxu0 0.0
    %2306 = vmatpush1.msra.mxu0 0.0
    %2307 = vmatprep.subr.mxu0 0.0
    %2308 = vmatpush1.msra.mxu0 0.0
    %2309 = vmatprep.subr.mxu0 0.0
    %2310 = vmatpush1.msra.mxu0 0.0
    %2311 = vmatprep.subr.mxu0 0.0
    %2312 = vmatpush1.msra.mxu0 0.0
    %2313 = vmatprep.subr.mxu0 0.0
    %2314 = vmatpush1.msra.mxu0 0.0
    %2315 = vmatprep.subr.mxu0 0.0
    %2316 = vmatpush1.msra.mxu0 0.0
    %2317 = vmatprep.subr.mxu0 0.0
    %2318 = vmatpush1.msra.mxu0 0.0
    %2319 = vmatprep.subr.mxu0 0.0
    %2320 = vmatpush1.msra.mxu0 0.0
    %2321 = vmatprep.subr.mxu0 0.0
    %2322 = vmatpush1.msra.mxu0 0.0
    %2323 = vmatprep.subr.mxu0 0.0
    %2324 = vmatpush1.msra.mxu0 0.0
    %2325 = vmatprep.subr.mxu0 0.0
    %2326 = vmatpush1.msra.mxu0 0.0
    %2327 = vmatprep.subr.mxu0 0.0
    %2328 = vmatpush1.msra.mxu0 0.0
    %2329 = vmatprep.subr.mxu0 0.0
    %2330 = vmatpush1.msra.mxu0 0.0
    %2331 = vmatprep.subr.mxu0 0.0
    %2332 = vmatpush1.msra.mxu0 0.0
    %2333 = vmatprep.subr.mxu0 0.0
    %2334 = vmatpush1.msra.mxu0 0.0
    %2335 = vmatprep.subr.mxu0 0.0
    %2336 = vmatpush1.msra.mxu0 0.0
    %2337 = vmatprep.subr.mxu0 0.0
    %2338 = vmatpush1.msra.mxu0 0.0
    %2339 = vmatprep.mubr.f32.mxu0 0.0
    %2340 = vmatmul.mubr.f32.gmra.mrb[0].mxu0 %v2273
    %v2341 = vpop.f32.mrb[0].mxu0
    %v2342 = vadd.f32 0.0, %v2341
    %v2343 = vpop.f32.mrb[0].mxu0
    %2344 = vdwg.mxu0
    %v2345 = vadd.f32 %v2269, %v2342
    %v2346 = vxor.u32 %v2345, 2147483648
    %v2347 = vmul.f32 %v2346, 1.442695
    %v2348 = vpow.pop %v2347
    %v2349 = vadd.f32 %v2348, 1.0
    %v2350 = vrcp.pop %v2349
    %v2351 = vmul.f32 1.0, %v2350
    %v2352 = vadd.f32 %v2342, %v517
    %2354 = vrot.lane.b32.xlu0 %v2352, 64
    %v2355 = vpop.permute.xlu0 %2354
    %v2357 = vmul.f32 %v2351, %v2355
    %2359 = vrot.lane.b32.xlu0 %v2357, 64
    %v2360 = vpop.permute.xlu0 %2359
    %v2362 = vadd.f32 %v2269, %v2360
    %v2363 = vtanh.pop %v2362
    %v2364 = vsub.f32 1.0, %v2351
    %2366 = vrot.lane.b32.xlu0 %v2363, 96
    %v2367 = vpop.permute.xlu0 %2366
    %v2369 = vmul.f32 %v2364, %v2367
    %v2370 = vmul.f32 %v2351, %v2084
    %v2371 = vadd.f32 %v2369, %v2370
    %2372 = vmatprep.subr.mxu0 0.0
    %2373 = vmatpush1.msra.mxu0 %v408
    %2374 = vmatprep.subr.mxu0 0.0
    %2375 = vmatpush1.msra.mxu0 %v409
    %2376 = vmatprep.subr.mxu0 0.0
    %2377 = vmatpush1.msra.mxu0 %v410
    %2378 = vmatprep.subr.mxu0 0.0
    %2379 = vmatpush1.msra.mxu0 %v411
    %2380 = vmatprep.subr.mxu0 0.0
    %2381 = vmatpush1.msra.mxu0 0.0
    %2382 = vmatprep.subr.mxu0 0.0
    %2383 = vmatpush1.msra.mxu0 0.0
    %2384 = vmatprep.subr.mxu0 0.0
    %2385 = vmatpush1.msra.mxu0 0.0
    %2386 = vmatprep.subr.mxu0 0.0
    %2387 = vmatpush1.msra.mxu0 0.0
    %2388 = vmatprep.subr.mxu0 0.0
    %2389 = vmatpush1.msra.mxu0 0.0
    %2390 = vmatprep.subr.mxu0 0.0
    %2391 = vmatpush1.msra.mxu0 0.0
    %2392 = vmatprep.subr.mxu0 0.0
    %2393 = vmatpush1.msra.mxu0 0.0
    %2394 = vmatprep.subr.mxu0 0.0
    %2395 = vmatpush1.msra.mxu0 0.0
    %2396 = vmatprep.subr.mxu0 0.0
    %2397 = vmatpush1.msra.mxu0 0.0
    %2398 = vmatprep.subr.mxu0 0.0
    %2399 = vmatpush1.msra.mxu0 0.0
    %2400 = vmatprep.subr.mxu0 0.0
    %2401 = vmatpush1.msra.mxu0 0.0
    %2402 = vmatprep.subr.mxu0 0.0
    %2403 = vmatpush1.msra.mxu0 0.0
    %2404 = vmatprep.subr.mxu0 0.0
    %2405 = vmatpush1.msra.mxu0 0.0
    %2406 = vmatprep.subr.mxu0 0.0
    %2407 = vmatpush1.msra.mxu0 0.0
    %2408 = vmatprep.subr.mxu0 0.0
    %2409 = vmatpush1.msra.mxu0 0.0
    %2410 = vmatprep.subr.mxu0 0.0
    %2411 = vmatpush1.msra.mxu0 0.0
    %2412 = vmatprep.subr.mxu0 0.0
    %2413 = vmatpush1.msra.mxu0 0.0
    %2414 = vmatprep.subr.mxu0 0.0
    %2415 = vmatpush1.msra.mxu0 0.0
    %2416 = vmatprep.subr.mxu0 0.0
    %2417 = vmatpush1.msra.mxu0 0.0
    %2418 = vmatprep.subr.mxu0 0.0
    %2419 = vmatpush1.msra.mxu0 0.0
    %2420 = vmatprep.subr.mxu0 0.0
    %2421 = vmatpush1.msra.mxu0 0.0
    %2422 = vmatprep.subr.mxu0 0.0
    %2423 = vmatpush1.msra.mxu0 0.0
    %2424 = vmatprep.subr.mxu0 0.0
    %2425 = vmatpush1.msra.mxu0 0.0
    %2426 = vmatprep.subr.mxu0 0.0
    %2427 = vmatpush1.msra.mxu0 0.0
    %2428 = vmatprep.subr.mxu0 0.0
    %2429 = vmatpush1.msra.mxu0 0.0
    %2430 = vmatprep.subr.mxu0 0.0
    %2431 = vmatpush1.msra.mxu0 0.0
    %2432 = vmatprep.subr.mxu0 0.0
    %2433 = vmatpush1.msra.mxu0 0.0
    %2434 = vmatprep.subr.mxu0 0.0
    %2435 = vmatpush1.msra.mxu0 0.0
    %2436 = vmatprep.mubr.f32.mxu0 0.0
    %2437 = vmatmul.mubr.f32.gmra.mrb[0].mxu0 %v2273
    %v2438 = vpop.f32.mrb[0].mxu0
    %v2439 = vadd.f32 %v429, %v2438
    %v2440 = vpop.f32.mrb[0].mxu0
    %2441 = vdwg.mxu0
    %2443 = vrot.lane.b32.xlu0 %v2256, 96
    %v2444 = vpop.permute.xlu0 %2443
    %v2445 = vsel %vm435, %v2444, 0
    %2447 = vmatprep.subr.mxu0 0.0
    %2448 = vmatpush1.msra.mxu0 %v404
    %2449 = vmatprep.subr.mxu0 0.0
    %2450 = vmatpush1.msra.mxu0 %v405
    %2451 = vmatprep.subr.mxu0 0.0
    %2452 = vmatpush1.msra.mxu0 %v406
    %2453 = vmatprep.subr.mxu0 0.0
    %2454 = vmatpush1.msra.mxu0 %v407
    %2455 = vmatprep.subr.mxu0 0.0
    %2456 = vmatpush1.msra.mxu0 0.0
    %2457 = vmatprep.subr.mxu0 0.0
    %2458 = vmatpush1.msra.mxu0 0.0
    %2459 = vmatprep.subr.mxu0 0.0
    %2460 = vmatpush1.msra.mxu0 0.0
    %2461 = vmatprep.subr.mxu0 0.0
    %2462 = vmatpush1.msra.mxu0 0.0
    %2463 = vmatprep.subr.mxu0 0.0
    %2464 = vmatpush1.msra.mxu0 0.0
    %2465 = vmatprep.subr.mxu0 0.0
    %2466 = vmatpush1.msra.mxu0 0.0
    %2467 = vmatprep.subr.mxu0 0.0
    %2468 = vmatpush1.msra.mxu0 0.0
    %2469 = vmatprep.subr.mxu0 0.0
    %2470 = vmatpush1.msra.mxu0 0.0
    %2471 = vmatprep.subr.mxu0 0.0
    %2472 = vmatpush1.msra.mxu0 0.0
    %2473 = vmatprep.subr.mxu0 0.0
    %2474 = vmatpush1.msra.mxu0 0.0
    %2475 = vmatprep.subr.mxu0 0.0
    %2476 = vmatpush1.msra.mxu0 0.0
    %2477 = vmatprep.subr.mxu0 0.0
    %2478 = vmatpush1.msra.mxu0 0.0
    %2479 = vmatprep.subr.mxu0 0.0
    %2480 = vmatpush1.msra.mxu0 0.0
    %2481 = vmatprep.subr.mxu0 0.0
    %2482 = vmatpush1.msra.mxu0 0.0
    %2483 = vmatprep.subr.mxu0 0.0
    %2484 = vmatpush1.msra.mxu0 0.0
    %2485 = vmatprep.subr.mxu0 0.0
    %2486 = vmatpush1.msra.mxu0 0.0
    %2487 = vmatprep.subr.mxu0 0.0
    %2488 = vmatpush1.msra.mxu0 0.0
    %2489 = vmatprep.subr.mxu0 0.0
    %2490 = vmatpush1.msra.mxu0 0.0
    %2491 = vmatprep.subr.mxu0 0.0
    %2492 = vmatpush1.msra.mxu0 0.0
    %2493 = vmatprep.subr.mxu0 0.0
    %2494 = vmatpush1.msra.mxu0 0.0
    %2495 = vmatprep.subr.mxu0 0.0
    %2496 = vmatpush1.msra.mxu0 0.0
    %2497 = vmatprep.subr.mxu0 0.0
    %2498 = vmatpush1.msra.mxu0 0.0
    %2499 = vmatprep.subr.mxu0 0.0
    %2500 = vmatpush1.msra.mxu0 0.0
    %2501 = vmatprep.subr.mxu0 0.0
    %2502 = vmatpush1.msra.mxu0 0.0
    %2503 = vmatprep.subr.mxu0 0.0
    %2504 = vmatpush1.msra.mxu0 0.0
    %2505 = vmatprep.subr.mxu0 0.0
    %2506 = vmatpush1.msra.mxu0 0.0
    %2507 = vmatprep.subr.mxu0 0.0
    %2508 = vmatpush1.msra.mxu0 0.0
    %2509 = vmatprep.subr.mxu0 0.0
    %2510 = vmatpush1.msra.mxu0 0.0
    %2511 = vmatprep.mubr.f32.mxu0 0.0
    %2512 = vmatmul.mubr.f32.gmra.mrb[0].mxu0 %v2445
    %v2513 = vpop.f32.mrb[0].mxu0
    %v2514 = vadd.f32 0.0, %v2513
    %v2515 = vpop.f32.mrb[0].mxu0
    %2516 = vdwg.mxu0
    %v2517 = vadd.f32 %v2439, %v2514
    %v2518 = vxor.u32 %v2517, 2147483648
    %v2519 = vmul.f32 %v2518, 1.442695
    %v2520 = vpow.pop %v2519
    %v2521 = vadd.f32 %v2520, 1.0
    %v2522 = vrcp.pop %v2521
    %v2523 = vmul.f32 1.0, %v2522
    %v2524 = vadd.f32 %v2514, %v796
    %2526 = vrot.lane.b32.xlu0 %v2524, 64
    %v2527 = vpop.permute.xlu0 %2526
    %v2529 = vmul.f32 %v2523, %v2527
    %2531 = vrot.lane.b32.xlu0 %v2529, 64
    %v2532 = vpop.permute.xlu0 %2531
    %v2534 = vadd.f32 %v2439, %v2532
    %v2535 = vtanh.pop %v2534
    %v2536 = vsub.f32 1.0, %v2523
    %2538 = vrot.lane.b32.xlu0 %v2535, 96
    %v2539 = vpop.permute.xlu0 %2538
    %v2541 = vmul.f32 %v2536, %v2539
    %v2542 = vmul.f32 %v2523, %v2256
    %v2543 = vadd.f32 %v2541, %v2542
    %v2544 = vld [vmem:[%s1 + $0xc] sm:$0x3]
    %2546 = vset.pattern.permute.xlu0 0
    %2547 = vperm.xlu0 %2546, %v2544
    %v2548 = vpop.permute.xlu0 %2547
    %v2550 = vmul.f32 %v2543, %v2548
    %2552 = vrot.lane.b32.xlu0 %v2550, 96
    %v2553 = vpop.permute.xlu0 %2552
    %2555 = vst.msk [vmem:[#allocation3 + $0xc] sm:$0x3] %vm832, %v2553
    %2557 = vrot.lane.b32.xlu0 %v2371, 96
    %v2558 = vpop.permute.xlu0 %2557
    %v2559 = vsel %vm435, %v2558, 0
    %2561 = vmatprep.subr.mxu0 0.0
    %2562 = vmatpush1.msra.mxu0 %v408
    %2563 = vmatprep.subr.mxu0 0.0
    %2564 = vmatpush1.msra.mxu0 %v409
    %2565 = vmatprep.subr.mxu0 0.0
    %2566 = vmatpush1.msra.mxu0 %v410
    %2567 = vmatprep.subr.mxu0 0.0
    %2568 = vmatpush1.msra.mxu0 %v411
    %2569 = vmatprep.subr.mxu0 0.0
    %2570 = vmatpush1.msra.mxu0 0.0
    %2571 = vmatprep.subr.mxu0 0.0
    %2572 = vmatpush1.msra.mxu0 0.0
    %2573 = vmatprep.subr.mxu0 0.0
    %2574 = vmatpush1.msra.mxu0 0.0
    %2575 = vmatprep.subr.mxu0 0.0
    %2576 = vmatpush1.msra.mxu0 0.0
    %2577 = vmatprep.subr.mxu0 0.0
    %2578 = vmatpush1.msra.mxu0 0.0
    %2579 = vmatprep.subr.mxu0 0.0
    %2580 = vmatpush1.msra.mxu0 0.0
    %2581 = vmatprep.subr.mxu0 0.0
    %2582 = vmatpush1.msra.mxu0 0.0
    %2583 = vmatprep.subr.mxu0 0.0
    %2584 = vmatpush1.msra.mxu0 0.0
    %2585 = vmatprep.subr.mxu0 0.0
    %2586 = vmatpush1.msra.mxu0 0.0
    %2587 = vmatprep.subr.mxu0 0.0
    %2588 = vmatpush1.msra.mxu0 0.0
    %2589 = vmatprep.subr.mxu0 0.0
    %2590 = vmatpush1.msra.mxu0 0.0
    %2591 = vmatprep.subr.mxu0 0.0
    %2592 = vmatpush1.msra.mxu0 0.0
    %2593 = vmatprep.subr.mxu0 0.0
    %2594 = vmatpush1.msra.mxu0 0.0
    %2595 = vmatprep.subr.mxu0 0.0
    %2596 = vmatpush1.msra.mxu0 0.0
    %2597 = vmatprep.subr.mxu0 0.0
    %2598 = vmatpush1.msra.mxu0 0.0
    %2599 = vmatprep.subr.mxu0 0.0
    %2600 = vmatpush1.msra.mxu0 0.0
    %2601 = vmatprep.subr.mxu0 0.0
    %2602 = vmatpush1.msra.mxu0 0.0
    %2603 = vmatprep.subr.mxu0 0.0
    %2604 = vmatpush1.msra.mxu0 0.0
    %2605 = vmatprep.subr.mxu0 0.0
    %2606 = vmatpush1.msra.mxu0 0.0
    %2607 = vmatprep.subr.mxu0 0.0
    %2608 = vmatpush1.msra.mxu0 0.0
    %2609 = vmatprep.subr.mxu0 0.0
    %2610 = vmatpush1.msra.mxu0 0.0
    %2611 = vmatprep.subr.mxu0 0.0
    %2612 = vmatpush1.msra.mxu0 0.0
    %2613 = vmatprep.subr.mxu0 0.0
    %2614 = vmatpush1.msra.mxu0 0.0
    %2615 = vmatprep.subr.mxu0 0.0
    %2616 = vmatpush1.msra.mxu0 0.0
    %2617 = vmatprep.subr.mxu0 0.0
    %2618 = vmatpush1.msra.mxu0 0.0
    %2619 = vmatprep.subr.mxu0 0.0
    %2620 = vmatpush1.msra.mxu0 0.0
    %2621 = vmatprep.subr.mxu0 0.0
    %2622 = vmatpush1.msra.mxu0 0.0
    %2623 = vmatprep.subr.mxu0 0.0
    %2624 = vmatpush1.msra.mxu0 0.0
    %2625 = vmatprep.mubr.f32.mxu0 0.0
    %2626 = vmatmul.mubr.f32.gmra.mrb[0].mxu0 %v2559
    %v2627 = vpop.f32.mrb[0].mxu0
    %v2628 = vadd.f32 %v429, %v2627
    %v2629 = vpop.f32.mrb[0].mxu0
    %2630 = vdwg.mxu0
    %2632 = vrot.lane.b32.xlu0 %v2543, 96
    %v2633 = vpop.permute.xlu0 %2632
    %v2634 = vsel %vm435, %v2633, 0
    %2636 = vmatprep.subr.mxu0 0.0
    %2637 = vmatpush1.msra.mxu0 %v404
    %2638 = vmatprep.subr.mxu0 0.0
    %2639 = vmatpush1.msra.mxu0 %v405
    %2640 = vmatprep.subr.mxu0 0.0
    %2641 = vmatpush1.msra.mxu0 %v406
    %2642 = vmatprep.subr.mxu0 0.0
    %2643 = vmatpush1.msra.mxu0 %v407
    %2644 = vmatprep.subr.mxu0 0.0
    %2645 = vmatpush1.msra.mxu0 0.0
    %2646 = vmatprep.subr.mxu0 0.0
    %2647 = vmatpush1.msra.mxu0 0.0
    %2648 = vmatprep.subr.mxu0 0.0
    %2649 = vmatpush1.msra.mxu0 0.0
    %2650 = vmatprep.subr.mxu0 0.0
    %2651 = vmatpush1.msra.mxu0 0.0
    %2652 = vmatprep.subr.mxu0 0.0
    %2653 = vmatpush1.msra.mxu0 0.0
    %2654 = vmatprep.subr.mxu0 0.0
    %2655 = vmatpush1.msra.mxu0 0.0
    %2656 = vmatprep.subr.mxu0 0.0
    %2657 = vmatpush1.msra.mxu0 0.0
    %2658 = vmatprep.subr.mxu0 0.0
    %2659 = vmatpush1.msra.mxu0 0.0
    %2660 = vmatprep.subr.mxu0 0.0
    %2661 = vmatpush1.msra.mxu0 0.0
    %2662 = vmatprep.subr.mxu0 0.0
    %2663 = vmatpush1.msra.mxu0 0.0
    %2664 = vmatprep.subr.mxu0 0.0
    %2665 = vmatpush1.msra.mxu0 0.0
    %2666 = vmatprep.subr.mxu0 0.0
    %2667 = vmatpush1.msra.mxu0 0.0
    %2668 = vmatprep.subr.mxu0 0.0
    %2669 = vmatpush1.msra.mxu0 0.0
    %2670 = vmatprep.subr.mxu0 0.0
    %2671 = vmatpush1.msra.mxu0 0.0
    %2672 = vmatprep.subr.mxu0 0.0
    %2673 = vmatpush1.msra.mxu0 0.0
    %2674 = vmatprep.subr.mxu0 0.0
    %2675 = vmatpush1.msra.mxu0 0.0
    %2676 = vmatprep.subr.mxu0 0.0
    %2677 = vmatpush1.msra.mxu0 0.0
    %2678 = vmatprep.subr.mxu0 0.0
    %2679 = vmatpush1.msra.mxu0 0.0
    %2680 = vmatprep.subr.mxu0 0.0
    %2681 = vmatpush1.msra.mxu0 0.0
    %2682 = vmatprep.subr.mxu0 0.0
    %2683 = vmatpush1.msra.mxu0 0.0
    %2684 = vmatprep.subr.mxu0 0.0
    %2685 = vmatpush1.msra.mxu0 0.0
    %2686 = vmatprep.subr.mxu0 0.0
    %2687 = vmatpush1.msra.mxu0 0.0
    %2688 = vmatprep.subr.mxu0 0.0
    %2689 = vmatpush1.msra.mxu0 0.0
    %2690 = vmatprep.subr.mxu0 0.0
    %2691 = vmatpush1.msra.mxu0 0.0
    %2692 = vmatprep.subr.mxu0 0.0
    %2693 = vmatpush1.msra.mxu0 0.0
    %2694 = vmatprep.subr.mxu0 0.0
    %2695 = vmatpush1.msra.mxu0 0.0
    %2696 = vmatprep.subr.mxu0 0.0
    %2697 = vmatpush1.msra.mxu0 0.0
    %2698 = vmatprep.subr.mxu0 0.0
    %2699 = vmatpush1.msra.mxu0 0.0
    %2700 = vmatprep.mubr.f32.mxu0 0.0
    %2701 = vmatmul.mubr.f32.gmra.mrb[0].mxu0 %v2634
    %v2702 = vpop.f32.mrb[0].mxu0
    %v2703 = vadd.f32 0.0, %v2702
    %v2704 = vpop.f32.mrb[0].mxu0
    %2705 = vdwg.mxu0
    %v2706 = vadd.f32 %v2628, %v2703
    %v2707 = vxor.u32 %v2706, 2147483648
    %v2708 = vmul.f32 %v2707, 1.442695
    %v2709 = vpow.pop %v2708
    %v2710 = vadd.f32 %v2709, 1.0
    %v2711 = vrcp.pop %v2710
    %v2712 = vmul.f32 1.0, %v2711
    %v2713 = vadd.f32 %v2703, %v796
    %2715 = vrot.lane.b32.xlu0 %v2713, 64
    %v2716 = vpop.permute.xlu0 %2715
    %v2718 = vmul.f32 %v2712, %v2716
    %2720 = vrot.lane.b32.xlu0 %v2718, 64
    %v2721 = vpop.permute.xlu0 %2720
    %v2723 = vadd.f32 %v2628, %v2721
    %v2724 = vtanh.pop %v2723
    %v2725 = vsub.f32 1.0, %v2712
    %2727 = vrot.lane.b32.xlu0 %v2724, 96
    %v2728 = vpop.permute.xlu0 %2727
    %v2730 = vmul.f32 %v2725, %v2728
    %v2731 = vmul.f32 %v2712, %v2543
    %v2732 = vadd.f32 %v2730, %v2731
    %v2733 = vld [vmem:[%s1 + $0xe] sm:$0x3]
    %2735 = vset.pattern.permute.xlu0 0
    %2736 = vperm.xlu0 %2735, %v2733
    %v2737 = vpop.permute.xlu0 %2736
    %v2739 = vmul.f32 %v2732, %v2737
    %2741 = vrot.lane.b32.xlu0 %v2739, 96
    %v2742 = vpop.permute.xlu0 %2741
    %2744 = vst.msk [vmem:[#allocation3 + $0xe] sm:$0x3] %vm832, %v2742
    %v2745 = vld [vmem:[#allocation3] sm:$0xff]
    %v2746 = vld [vmem:[#allocation3 + $0x8] sm:$0xff]
    %v2747 = vld [vmem:[#allocation10] sm:$0xff]
    %v2748 = vld [vmem:[#allocation10 + $0x8] sm:$0xff]
    %v2749 = vld [vmem:[#allocation10 + $0x10] sm:$0xff]
    %v2750 = vld [vmem:[#allocation20] sm:$0xff]
    %v2751 = vld [vmem:[#allocation20 + $0x8] sm:$0xff]
    %v2752 = vld [vmem:[#allocation20 + $0x10] sm:$0xff]
    %v2753 = vld [vmem:[#allocation20 + $0x18] sm:$0xff]
    %v2754 = vld [vmem:[#allocation22] sm:$0x1]
    %v2756 = vlaneseq
    %v2757 = vshrl.u32 %v2756, 7
    %v2758 = vsub.s32 0, %v2757
    %v2759 = vrot.slane %v2754, %v2758
    %v2762 = vsel %vm435, %v2745, 0
    %v2765 = vsel %vm435, %v2746, 0
    %2767 = vmatprep.subr.mxu0 0.0
    %2768 = vmatpush1.msra.mxu0 %v2750
    %2769 = vmatprep.subr.mxu0 0.0
    %2770 = vmatpush1.msra.mxu0 %v2751
    %2771 = vmatprep.subr.mxu0 0.0
    %2772 = vmatpush1.msra.mxu0 %v2752
    %2773 = vmatprep.subr.mxu0 0.0
    %2774 = vmatpush1.msra.mxu0 %v2753
    %2775 = vmatprep.subr.mxu0 0.0
    %2776 = vmatpush1.msra.mxu0 0.0
    %2777 = vmatprep.subr.mxu0 0.0
    %2778 = vmatpush1.msra.mxu0 0.0
    %2779 = vmatprep.subr.mxu0 0.0
    %2780 = vmatpush1.msra.mxu0 0.0
    %2781 = vmatprep.subr.mxu0 0.0
    %2782 = vmatpush1.msra.mxu0 0.0
    %2783 = vmatprep.subr.mxu0 0.0
    %2784 = vmatpush1.msra.mxu0 0.0
    %2785 = vmatprep.subr.mxu0 0.0
    %2786 = vmatpush1.msra.mxu0 0.0
    %2787 = vmatprep.subr.mxu0 0.0
    %2788 = vmatpush1.msra.mxu0 0.0
    %2789 = vmatprep.subr.mxu0 0.0
    %2790 = vmatpush1.msra.mxu0 0.0
    %2791 = vmatprep.subr.mxu0 0.0
    %2792 = vmatpush1.msra.mxu0 0.0
    %2793 = vmatprep.subr.mxu0 0.0
    %2794 = vmatpush1.msra.mxu0 0.0
    %2795 = vmatprep.subr.mxu0 0.0
    %2796 = vmatpush1.msra.mxu0 0.0
    %2797 = vmatprep.subr.mxu0 0.0
    %2798 = vmatpush1.msra.mxu0 0.0
    %2799 = vmatprep.subr.mxu0 0.0
    %2800 = vmatpush1.msra.mxu0 0.0
    %2801 = vmatprep.subr.mxu0 0.0
    %2802 = vmatpush1.msra.mxu0 0.0
    %2803 = vmatprep.subr.mxu0 0.0
    %2804 = vmatpush1.msra.mxu0 0.0
    %2805 = vmatprep.subr.mxu0 0.0
    %2806 = vmatpush1.msra.mxu0 0.0
    %2807 = vmatprep.subr.mxu0 0.0
    %2808 = vmatpush1.msra.mxu0 0.0
    %2809 = vmatprep.subr.mxu0 0.0
    %2810 = vmatpush1.msra.mxu0 0.0
    %2811 = vmatprep.subr.mxu0 0.0
    %2812 = vmatpush1.msra.mxu0 0.0
    %2813 = vmatprep.subr.mxu0 0.0
    %2814 = vmatpush1.msra.mxu0 0.0
    %2815 = vmatprep.subr.mxu0 0.0
    %2816 = vmatpush1.msra.mxu0 0.0
    %2817 = vmatprep.subr.mxu0 0.0
    %2818 = vmatpush1.msra.mxu0 0.0
    %2819 = vmatprep.subr.mxu0 0.0
    %2820 = vmatpush1.msra.mxu0 0.0
    %2821 = vmatprep.subr.mxu0 0.0
    %2822 = vmatpush1.msra.mxu0 0.0
    %2823 = vmatprep.subr.mxu0 0.0
    %2824 = vmatpush1.msra.mxu0 0.0
    %2825 = vmatprep.subr.mxu0 0.0
    %2826 = vmatpush1.msra.mxu0 0.0
    %2827 = vmatprep.subr.mxu0 0.0
    %2828 = vmatpush1.msra.mxu0 0.0
    %2829 = vmatprep.subr.mxu0 0.0
    %2830 = vmatpush1.msra.mxu0 0.0
    %2831 = vmatprep.mubr.f32.mxu0 0.0
    %2832 = vmatmul.mubr.f32.gmra.mrb[0].mxu0 %v2762
    %v2833 = vpop.f32.mrb[0].mxu0
    %v2834 = vadd.f32 %v2759, %v2833
    %v2835 = vpop.f32.mrb[0].mxu0
    %2836 = vmatprep.mubr.f32.mxu0 0.0
    %2837 = vmatmul.mubr.f32.gmra.mrb[0].mxu0 %v2765
    %v2838 = vpop.f32.mrb[0].mxu0
    %v2839 = vadd.f32 %v2759, %v2838
    %v2840 = vpop.f32.mrb[0].mxu0
    %2841 = vdwg.mxu0
    %v2842 = vld [vmem:[#allocation23] sm:$0xff]
    %v2843 = vld [vmem:[#allocation23 + $0x8] sm:$0xff]
    %v2844 = vld [vmem:[#allocation23 + $0x10] sm:$0xff]
    %v2845 = vld [vmem:[#allocation23 + $0x18] sm:$0xff]
    %v2846 = vld [vmem:[#allocation25] sm:$0x1]
    %v2848 = vlaneseq
    %v2849 = vshrl.u32 %v2848, 7
    %v2850 = vsub.s32 0, %v2849
    %v2851 = vrot.slane %v2846, %v2850
    %v2854 = vsel %vm435, %v2747, 0
    %v2857 = vsel %vm435, %v2748, 0
    %v2860 = vsel %vm435, %v2749, 0
    %2862 = vmatprep.subr.mxu0 0.0
    %2863 = vmatpush1.msra.mxu0 %v2842
    %2864 = vmatprep.subr.mxu0 0.0
    %2865 = vmatpush1.msra.mxu0 %v2843
    %2866 = vmatprep.subr.mxu0 0.0
    %2867 = vmatpush1.msra.mxu0 %v2844
    %2868 = vmatprep.subr.mxu0 0.0
    %2869 = vmatpush1.msra.mxu0 %v2845
    %2870 = vmatprep.subr.mxu0 0.0
    %2871 = vmatpush1.msra.mxu0 0.0
    %2872 = vmatprep.subr.mxu0 0.0
    %2873 = vmatpush1.msra.mxu0 0.0
    %2874 = vmatprep.subr.mxu0 0.0
    %2875 = vmatpush1.msra.mxu0 0.0
    %2876 = vmatprep.subr.mxu0 0.0
    %2877 = vmatpush1.msra.mxu0 0.0
    %2878 = vmatprep.subr.mxu0 0.0
    %2879 = vmatpush1.msra.mxu0 0.0
    %2880 = vmatprep.subr.mxu0 0.0
    %2881 = vmatpush1.msra.mxu0 0.0
    %2882 = vmatprep.subr.mxu0 0.0
    %2883 = vmatpush1.msra.mxu0 0.0
    %2884 = vmatprep.subr.mxu0 0.0
    %2885 = vmatpush1.msra.mxu0 0.0
    %2886 = vmatprep.subr.mxu0 0.0
    %2887 = vmatpush1.msra.mxu0 0.0
    %2888 = vmatprep.subr.mxu0 0.0
    %2889 = vmatpush1.msra.mxu0 0.0
    %2890 = vmatprep.subr.mxu0 0.0
    %2891 = vmatpush1.msra.mxu0 0.0
    %2892 = vmatprep.subr.mxu0 0.0
    %2893 = vmatpush1.msra.mxu0 0.0
    %2894 = vmatprep.subr.mxu0 0.0
    %2895 = vmatpush1.msra.mxu0 0.0
    %2896 = vmatprep.subr.mxu0 0.0
    %2897 = vmatpush1.msra.mxu0 0.0
    %2898 = vmatprep.subr.mxu0 0.0
    %2899 = vmatpush1.msra.mxu0 0.0
    %2900 = vmatprep.subr.mxu0 0.0
    %2901 = vmatpush1.msra.mxu0 0.0
    %2902 = vmatprep.subr.mxu0 0.0
    %2903 = vmatpush1.msra.mxu0 0.0
    %2904 = vmatprep.subr.mxu0 0.0
    %2905 = vmatpush1.msra.mxu0 0.0
    %2906 = vmatprep.subr.mxu0 0.0
    %2907 = vmatpush1.msra.mxu0 0.0
    %2908 = vmatprep.subr.mxu0 0.0
    %2909 = vmatpush1.msra.mxu0 0.0
    %2910 = vmatprep.subr.mxu0 0.0
    %2911 = vmatpush1.msra.mxu0 0.0
    %2912 = vmatprep.subr.mxu0 0.0
    %2913 = vmatpush1.msra.mxu0 0.0
    %2914 = vmatprep.subr.mxu0 0.0
    %2915 = vmatpush1.msra.mxu0 0.0
    %2916 = vmatprep.subr.mxu0 0.0
    %2917 = vmatpush1.msra.mxu0 0.0
    %2918 = vmatprep.subr.mxu0 0.0
    %2919 = vmatpush1.msra.mxu0 0.0
    %2920 = vmatprep.subr.mxu0 0.0
    %2921 = vmatpush1.msra.mxu0 0.0
    %2922 = vmatprep.subr.mxu0 0.0
    %2923 = vmatpush1.msra.mxu0 0.0
    %2924 = vmatprep.subr.mxu0 0.0
    %2925 = vmatpush1.msra.mxu0 0.0
    %2926 = vmatprep.mubr.f32.mxu0 0.0
    %2927 = vmatmul.mubr.f32.gmra.mrb[0].mxu0 %v2854
    %v2928 = vpop.f32.mrb[0].mxu0
    %v2929 = vadd.f32 %v2851, %v2928
    %v2930 = vpop.f32.mrb[0].mxu0
    %2931 = vmatprep.mubr.f32.mxu0 0.0
    %2932 = vmatmul.mubr.f32.gmra.mrb[0].mxu0 %v2857
    %v2933 = vpop.f32.mrb[0].mxu0
    %v2934 = vadd.f32 %v2851, %v2933
    %v2935 = vpop.f32.mrb[0].mxu0
    %2936 = vmatprep.mubr.f32.mxu0 0.0
    %2937 = vmatmul.mubr.f32.gmra.mrb[0].mxu0 %v2860
    %v2938 = vpop.f32.mrb[0].mxu0
    %v2939 = vadd.f32 %v2851, %v2938
    %v2940 = vpop.f32.mrb[0].mxu0
    %2941 = vdwg.mxu0
    %v2942 = vld [vmem:[%s17] sm:$0xff]
    %v2943 = vld [vmem:[%s17 + $0x8] sm:$0xff]
    %v2944 = vld [vmem:[%s17 + $0x10] sm:$0xff]
    %v2945 = vld [vmem:[%s17 + $0x18] sm:$0xff]
    %v2946 = vld [vmem:[#allocation26] sm:$0x1]
    %v2948 = vlaneseq
    %v2949 = vshrl.u32 %v2948, 7
    %v2950 = vsub.s32 0, %v2949
    %v2951 = vrot.slane %v2946, %v2950
    %2953 = vmatprep.subr.mxu0 0.0
    %2954 = vmatpush1.msra.mxu0 %v2942
    %2955 = vmatprep.subr.mxu0 0.0
    %2956 = vmatpush1.msra.mxu0 %v2943
    %2957 = vmatprep.subr.mxu0 0.0
    %2958 = vmatpush1.msra.mxu0 %v2944
    %2959 = vmatprep.subr.mxu0 0.0
    %2960 = vmatpush1.msra.mxu0 %v2945
    %2961 = vmatprep.subr.mxu0 0.0
    %2962 = vmatpush1.msra.mxu0 0.0
    %2963 = vmatprep.subr.mxu0 0.0
    %2964 = vmatpush1.msra.mxu0 0.0
    %2965 = vmatprep.subr.mxu0 0.0
    %2966 = vmatpush1.msra.mxu0 0.0
    %2967 = vmatprep.subr.mxu0 0.0
    %2968 = vmatpush1.msra.mxu0 0.0
    %2969 = vmatprep.subr.mxu0 0.0
    %2970 = vmatpush1.msra.mxu0 0.0
    %2971 = vmatprep.subr.mxu0 0.0
    %2972 = vmatpush1.msra.mxu0 0.0
    %2973 = vmatprep.subr.mxu0 0.0
    %2974 = vmatpush1.msra.mxu0 0.0
    %2975 = vmatprep.subr.mxu0 0.0
    %2976 = vmatpush1.msra.mxu0 0.0
    %2977 = vmatprep.subr.mxu0 0.0
    %2978 = vmatpush1.msra.mxu0 0.0
    %2979 = vmatprep.subr.mxu0 0.0
    %2980 = vmatpush1.msra.mxu0 0.0
    %2981 = vmatprep.subr.mxu0 0.0
    %2982 = vmatpush1.msra.mxu0 0.0
    %2983 = vmatprep.subr.mxu0 0.0
    %2984 = vmatpush1.msra.mxu0 0.0
    %2985 = vmatprep.subr.mxu0 0.0
    %2986 = vmatpush1.msra.mxu0 0.0
    %2987 = vmatprep.subr.mxu0 0.0
    %2988 = vmatpush1.msra.mxu0 0.0
    %2989 = vmatprep.subr.mxu0 0.0
    %2990 = vmatpush1.msra.mxu0 0.0
    %2991 = vmatprep.subr.mxu0 0.0
    %2992 = vmatpush1.msra.mxu0 0.0
    %2993 = vmatprep.subr.mxu0 0.0
    %2994 = vmatpush1.msra.mxu0 0.0
    %2995 = vmatprep.subr.mxu0 0.0
    %2996 = vmatpush1.msra.mxu0 0.0
    %2997 = vmatprep.subr.mxu0 0.0
    %2998 = vmatpush1.msra.mxu0 0.0
    %2999 = vmatprep.subr.mxu0 0.0
    %3000 = vmatpush1.msra.mxu0 0.0
    %3001 = vmatprep.subr.mxu0 0.0
    %3002 = vmatpush1.msra.mxu0 0.0
    %3003 = vmatprep.subr.mxu0 0.0
    %3004 = vmatpush1.msra.mxu0 0.0
    %3005 = vmatprep.subr.mxu0 0.0
    %3006 = vmatpush1.msra.mxu0 0.0
    %3007 = vmatprep.subr.mxu0 0.0
    %3008 = vmatpush1.msra.mxu0 0.0
    %3009 = vmatprep.subr.mxu0 0.0
    %3010 = vmatpush1.msra.mxu0 0.0
    %3011 = vmatprep.subr.mxu0 0.0
    %3012 = vmatpush1.msra.mxu0 0.0
    %3013 = vmatprep.subr.mxu0 0.0
    %3014 = vmatpush1.msra.mxu0 0.0
    %3015 = vmatprep.subr.mxu0 0.0
    %3016 = vmatpush1.msra.mxu0 0.0
    %3017 = vmatprep.mubr.f32.mxu0 0.0
    %3018 = vmatmul.mubr.f32.gmra.mrb[0].mxu0 %v2854
    %v3019 = vpop.f32.mrb[0].mxu0
    %v3020 = vadd.f32 %v2951, %v3019
    %v3021 = vpop.f32.mrb[0].mxu0
    %3022 = vmatprep.mubr.f32.mxu0 0.0
    %3023 = vmatmul.mubr.f32.gmra.mrb[0].mxu0 %v2857
    %v3024 = vpop.f32.mrb[0].mxu0
    %v3025 = vadd.f32 %v2951, %v3024
    %v3026 = vpop.f32.mrb[0].mxu0
    %3027 = vmatprep.mubr.f32.mxu0 0.0
    %3028 = vmatmul.mubr.f32.gmra.mrb[0].mxu0 %v2860
    %v3029 = vpop.f32.mrb[0].mxu0
    %v3030 = vadd.f32 %v2951, %v3029
    %v3031 = vpop.f32.mrb[0].mxu0
    %3032 = vdwg.mxu0
    %v3034 = vsel %vm435, %v2834, 0
    %v3037 = vsel %vm435, %v2839, 0
    %v3040 = vsel %vm435, %v2929, 0
    %v3043 = vsel %vm435, %v2934, 0
    %v3046 = vsel %vm435, %v2939, 0
    %3048 = vmatprep.subr.mxu0 0.0
    %3049 = vmatpush1.xpose.msra.mxu0 %v3040
    %3050 = vmatprep.subr.mxu0 0.0
    %3051 = vmatpush1.xpose.msra.mxu0 %v3043
    %3052 = vmatprep.subr.mxu0 0.0
    %3053 = vmatpush1.xpose.msra.mxu0 %v3046
    %3054 = vmatprep.subr.mxu0 0.0
    %3055 = vmatpush1.xpose.msra.mxu0 0.0
    %3056 = vmatprep.subr.mxu0 0.0
    %3057 = vmatpush1.xpose.msra.mxu0 0.0
    %3058 = vmatprep.subr.mxu0 0.0
    %3059 = vmatpush1.xpose.msra.mxu0 0.0
    %3060 = vmatprep.subr.mxu0 0.0
    %3061 = vmatpush1.xpose.msra.mxu0 0.0
    %3062 = vmatprep.subr.mxu0 0.0
    %3063 = vmatpush1.xpose.msra.mxu0 0.0
    %3064 = vmatprep.subr.mxu0 0.0
    %3065 = vmatpush1.xpose.msra.mxu0 0.0
    %3066 = vmatprep.subr.mxu0 0.0
    %3067 = vmatpush1.xpose.msra.mxu0 0.0
    %3068 = vmatprep.subr.mxu0 0.0
    %3069 = vmatpush1.xpose.msra.mxu0 0.0
    %3070 = vmatprep.subr.mxu0 0.0
    %3071 = vmatpush1.xpose.msra.mxu0 0.0
    %3072 = vmatprep.subr.mxu0 0.0
    %3073 = vmatpush1.xpose.msra.mxu0 0.0
    %3074 = vmatprep.subr.mxu0 0.0
    %3075 = vmatpush1.xpose.msra.mxu0 0.0
    %3076 = vmatprep.subr.mxu0 0.0
    %3077 = vmatpush1.xpose.msra.mxu0 0.0
    %3078 = vmatprep.subr.mxu0 0.0
    %3079 = vmatpush1.xpose.msra.mxu0 0.0
    %3080 = vmatprep.subr.mxu0 0.0
    %3081 = vmatpush1.xpose.msra.mxu0 0.0
    %3082 = vmatprep.subr.mxu0 0.0
    %3083 = vmatpush1.xpose.msra.mxu0 0.0
    %3084 = vmatprep.subr.mxu0 0.0
    %3085 = vmatpush1.xpose.msra.mxu0 0.0
    %3086 = vmatprep.subr.mxu0 0.0
    %3087 = vmatpush1.xpose.msra.mxu0 0.0
    %3088 = vmatprep.subr.mxu0 0.0
    %3089 = vmatpush1.xpose.msra.mxu0 0.0
    %3090 = vmatprep.subr.mxu0 0.0
    %3091 = vmatpush1.xpose.msra.mxu0 0.0
    %3092 = vmatprep.subr.mxu0 0.0
    %3093 = vmatpush1.xpose.msra.mxu0 0.0
    %3094 = vmatprep.subr.mxu0 0.0
    %3095 = vmatpush1.xpose.msra.mxu0 0.0
    %3096 = vmatprep.subr.mxu0 0.0
    %3097 = vmatpush1.xpose.msra.mxu0 0.0
    %3098 = vmatprep.subr.mxu0 0.0
    %3099 = vmatpush1.xpose.msra.mxu0 0.0
    %3100 = vmatprep.subr.mxu0 0.0
    %3101 = vmatpush1.xpose.msra.mxu0 0.0
    %3102 = vmatprep.subr.mxu0 0.0
    %3103 = vmatpush1.xpose.msra.mxu0 0.0
    %3104 = vmatprep.subr.mxu0 0.0
    %3105 = vmatpush1.xpose.msra.mxu0 0.0
    %3106 = vmatprep.subr.mxu0 0.0
    %3107 = vmatpush1.xpose.msra.mxu0 0.0
    %3108 = vmatprep.subr.mxu0 0.0
    %3109 = vmatpush1.xpose.msra.mxu0 0.0
    %3110 = vmatprep.subr.mxu0 0.0
    %3111 = vmatpush1.xpose.msra.mxu0 0.0
    %3112 = vmatprep.mubr.f32.mxu0 0.0
    %3113 = vmatmul.mubr.f32.gmra.mrb[0].mxu0 %v3034
    %v3114 = vpop.f32.mrb[0].mxu0
    %v3115 = vadd.f32 0.0, %v3114
    %v3116 = vpop.f32.mrb[0].mxu0
    %3117 = vmatprep.mubr.f32.mxu0 0.0
    %3118 = vmatmul.mubr.f32.gmra.mrb[0].mxu0 %v3037
    %v3119 = vpop.f32.mrb[0].mxu0
    %v3120 = vadd.f32 0.0, %v3119
    %v3121 = vpop.f32.mrb[0].mxu0
    %3122 = vdwg.mxu0
    %v3123 = vld [vmem:[#allocation8] sm:$0xff]
    %v3124 = vld [vmem:[#allocation8 + $0x8] sm:$0xff]
    %vm3125 = vcmp.gt.f32.partialorder %v3123, 0.0
    %vm3126 = vcmp.gt.f32.partialorder %v3124, 0.0
    %v3127 = vsel %vm3125, %v3115, -1e+30
    %v3128 = vsel %vm3126, %v3120, -1e+30
    %v3129 = vsel %vm315, %v3127, -inf
    %3130 = vmax.xlane.f32.xlu0 %v3129
    %v3131 = vpop.xlane.xlu0 %3130
    %v3132 = vsel %vm315, %v3128, -inf
    %3133 = vmax.xlane.f32.xlu0 %v3132
    %v3134 = vpop.xlane.xlu0 %3133
    %v3135 = vsub.f32 %v3127, %v3131
    %v3136 = vsub.f32 %v3128, %v3134
    %v3137 = vmul.f32 %v3135, 1.442695
    %v3138 = vpow.pop %v3137
    %v3139 = vmul.f32 %v3136, 1.442695
    %v3140 = vpow.pop %v3139
    %v3141 = vsel %vm315, %v3138, 0.0
    %3142 = vadd.xlane.f32.xlu0 %v3141
    %v3143 = vpop.xlane.xlu0 %3142
    %v3144 = vsel %vm315, %v3140, 0.0
    %3145 = vadd.xlane.f32.xlu0 %v3144
    %v3146 = vpop.xlane.xlu0 %3145
    %v3147 = vrcp.pop %v3143
    %v3148 = vrcp.pop %v3146
    %v3149 = vmul.f32 %v3138, %v3147
    %v3150 = vmul.f32 %v3140, %v3148
    %3151 = vst.msk [vmem:[#allocation33] sm:$0xff] %vm315, %v3149
    %3152 = vst.msk [vmem:[#allocation33 + $0x8] sm:$0xff] %vm315, %v3150
    %v3154 = vsel %vm315, %v3149, 0
    %v3157 = vsel %vm315, %v3150, 0
    %3159 = vmatprep.subr.mxu0 0.0
    %3160 = vmatpush1.msra.mxu0 %v3020
    %3161 = vmatprep.subr.mxu0 0.0
    %3162 = vmatpush1.msra.mxu0 %v3025
    %3163 = vmatprep.subr.mxu0 0.0
    %3164 = vmatpush1.msra.mxu0 %v3030
    %3165 = vmatprep.subr.mxu0 0.0
    %3166 = vmatpush1.msra.mxu0 0.0
    %3167 = vmatprep.subr.mxu0 0.0
    %3168 = vmatpush1.msra.mxu0 0.0
    %3169 = vmatprep.subr.mxu0 0.0
    %3170 = vmatpush1.msra.mxu0 0.0
    %3171 = vmatprep.subr.mxu0 0.0
    %3172 = vmatpush1.msra.mxu0 0.0
    %3173 = vmatprep.subr.mxu0 0.0
    %3174 = vmatpush1.msra.mxu0 0.0
    %3175 = vmatprep.subr.mxu0 0.0
    %3176 = vmatpush1.msra.mxu0 0.0
    %3177 = vmatprep.subr.mxu0 0.0
    %3178 = vmatpush1.msra.mxu0 0.0
    %3179 = vmatprep.subr.mxu0 0.0
    %3180 = vmatpush1.msra.mxu0 0.0
    %3181 = vmatprep.subr.mxu0 0.0
    %3182 = vmatpush1.msra.mxu0 0.0
    %3183 = vmatprep.subr.mxu0 0.0
    %3184 = vmatpush1.msra.mxu0 0.0
    %3185 = vmatprep.subr.mxu0 0.0
    %3186 = vmatpush1.msra.mxu0 0.0
    %3187 = vmatprep.subr.mxu0 0.0
    %3188 = vmatpush1.msra.mxu0 0.0
    %3189 = vmatprep.subr.mxu0 0.0
    %3190 = vmatpush1.msra.mxu0 0.0
    %3191 = vmatprep.subr.mxu0 0.0
    %3192 = vmatpush1.msra.mxu0 0.0
    %3193 = vmatprep.subr.mxu0 0.0
    %3194 = vmatpush1.msra.mxu0 0.0
    %3195 = vmatprep.subr.mxu0 0.0
    %3196 = vmatpush1.msra.mxu0 0.0
    %3197 = vmatprep.subr.mxu0 0.0
    %3198 = vmatpush1.msra.mxu0 0.0
    %3199 = vmatprep.subr.mxu0 0.0
    %3200 = vmatpush1.msra.mxu0 0.0
    %3201 = vmatprep.subr.mxu0 0.0
    %3202 = vmatpush1.msra.mxu0 0.0
    %3203 = vmatprep.subr.mxu0 0.0
    %3204 = vmatpush1.msra.mxu0 0.0
    %3205 = vmatprep.subr.mxu0 0.0
    %3206 = vmatpush1.msra.mxu0 0.0
    %3207 = vmatprep.subr.mxu0 0.0
    %3208 = vmatpush1.msra.mxu0 0.0
    %3209 = vmatprep.subr.mxu0 0.0
    %3210 = vmatpush1.msra.mxu0 0.0
    %3211 = vmatprep.subr.mxu0 0.0
    %3212 = vmatpush1.msra.mxu0 0.0
    %3213 = vmatprep.subr.mxu0 0.0
    %3214 = vmatpush1.msra.mxu0 0.0
    %3215 = vmatprep.subr.mxu0 0.0
    %3216 = vmatpush1.msra.mxu0 0.0
    %3217 = vmatprep.subr.mxu0 0.0
    %3218 = vmatpush1.msra.mxu0 0.0
    %3219 = vmatprep.subr.mxu0 0.0
    %3220 = vmatpush1.msra.mxu0 0.0
    %3221 = vmatprep.subr.mxu0 0.0
    %3222 = vmatpush1.msra.mxu0 0.0
    %3223 = vmatprep.mubr.f32.mxu0 0.0
    %3224 = vmatmul.mubr.f32.gmra.mrb[0].mxu0 %v3154
    %v3225 = vpop.f32.mrb[0].mxu0
    %v3226 = vadd.f32 0.0, %v3225
    %v3227 = vpop.f32.mrb[0].mxu0
    %3228 = vmatprep.mubr.f32.mxu0 0.0
    %3229 = vmatmul.mubr.f32.gmra.mrb[0].mxu0 %v3157
    %v3230 = vpop.f32.mrb[0].mxu0
    %v3231 = vadd.f32 0.0, %v3230
    %v3232 = vpop.f32.mrb[0].mxu0
    %3233 = vdwg.mxu0
    %v3234 = vld [vmem:[#allocation28] sm:$0xff]
    %v3235 = vld [vmem:[#allocation28 + $0x8] sm:$0xff]
    %v3236 = vld [vmem:[#allocation28 + $0x10] sm:$0xff]
    %v3237 = vld [vmem:[#allocation28 + $0x18] sm:$0xff]
    %v3238 = vld [vmem:[#allocation29] sm:$0xff]
    %v3239 = vld [vmem:[#allocation29 + $0x8] sm:$0xff]
    %v3240 = vld [vmem:[#allocation29 + $0x10] sm:$0xff]
    %v3241 = vld [vmem:[#allocation29 + $0x18] sm:$0xff]
    %v3243 = vsel %vm435, %v3226, 0
    %v3246 = vsel %vm435, %v3231, 0
    %3248 = vmatprep.subr.mxu0 0.0
    %3249 = vmatpush1.msra.mxu0 %v3238
    %3250 = vmatprep.subr.mxu0 0.0
    %3251 = vmatpush1.msra.mxu0 %v3239
    %3252 = vmatprep.subr.mxu0 0.0
    %3253 = vmatpush1.msra.mxu0 %v3240
    %3254 = vmatprep.subr.mxu0 0.0
    %3255 = vmatpush1.msra.mxu0 %v3241
    %3256 = vmatprep.subr.mxu0 0.0
    %3257 = vmatpush1.msra.mxu0 0.0
    %3258 = vmatprep.subr.mxu0 0.0
    %3259 = vmatpush1.msra.mxu0 0.0
    %3260 = vmatprep.subr.mxu0 0.0
    %3261 = vmatpush1.msra.mxu0 0.0
    %3262 = vmatprep.subr.mxu0 0.0
    %3263 = vmatpush1.msra.mxu0 0.0
    %3264 = vmatprep.subr.mxu0 0.0
    %3265 = vmatpush1.msra.mxu0 0.0
    %3266 = vmatprep.subr.mxu0 0.0
    %3267 = vmatpush1.msra.mxu0 0.0
    %3268 = vmatprep.subr.mxu0 0.0
    %3269 = vmatpush1.msra.mxu0 0.0
    %3270 = vmatprep.subr.mxu0 0.0
    %3271 = vmatpush1.msra.mxu0 0.0
    %3272 = vmatprep.subr.mxu0 0.0
    %3273 = vmatpush1.msra.mxu0 0.0
    %3274 = vmatprep.subr.mxu0 0.0
    %3275 = vmatpush1.msra.mxu0 0.0
    %3276 = vmatprep.subr.mxu0 0.0
    %3277 = vmatpush1.msra.mxu0 0.0
    %3278 = vmatprep.subr.mxu0 0.0
    %3279 = vmatpush1.msra.mxu0 0.0
    %3280 = vmatprep.subr.mxu0 0.0
    %3281 = vmatpush1.msra.mxu0 0.0
    %3282 = vmatprep.subr.mxu0 0.0
    %3283 = vmatpush1.msra.mxu0 0.0
    %3284 = vmatprep.subr.mxu0 0.0
    %3285 = vmatpush1.msra.mxu0 0.0
    %3286 = vmatprep.subr.mxu0 0.0
    %3287 = vmatpush1.msra.mxu0 0.0
    %3288 = vmatprep.subr.mxu0 0.0
    %3289 = vmatpush1.msra.mxu0 0.0
    %3290 = vmatprep.subr.mxu0 0.0
    %3291 = vmatpush1.msra.mxu0 0.0
    %3292 = vmatprep.subr.mxu0 0.0
    %3293 = vmatpush1.msra.mxu0 0.0
    %3294 = vmatprep.subr.mxu0 0.0
    %3295 = vmatpush1.msra.mxu0 0.0
    %3296 = vmatprep.subr.mxu0 0.0
    %3297 = vmatpush1.msra.mxu0 0.0
    %3298 = vmatprep.subr.mxu0 0.0
    %3299 = vmatpush1.msra.mxu0 0.0
    %3300 = vmatprep.subr.mxu0 0.0
    %3301 = vmatpush1.msra.mxu0 0.0
    %3302 = vmatprep.subr.mxu0 0.0
    %3303 = vmatpush1.msra.mxu0 0.0
    %3304 = vmatprep.subr.mxu0 0.0
    %3305 = vmatpush1.msra.mxu0 0.0
    %3306 = vmatprep.subr.mxu0 0.0
    %3307 = vmatpush1.msra.mxu0 0.0
    %3308 = vmatprep.subr.mxu0 0.0
    %3309 = vmatpush1.msra.mxu0 0.0
    %3310 = vmatprep.subr.mxu0 0.0
    %3311 = vmatpush1.msra.mxu0 0.0
    %3312 = vmatprep.mubr.f32.mxu0 0.0
    %3313 = vmatmul.mubr.f32.gmra.mrb[0].mxu0 %v3243
    %v3314 = vpop.f32.mrb[0].mxu0
    %v3315 = vadd.f32 0.0, %v3314
    %v3316 = vpop.f32.mrb[0].mxu0
    %3317 = vmatprep.mubr.f32.mxu0 0.0
    %3318 = vmatmul.mubr.f32.gmra.mrb[0].mxu0 %v3246
    %v3319 = vpop.f32.mrb[0].mxu0
    %v3320 = vadd.f32 0.0, %v3319
    %v3321 = vpop.f32.mrb[0].mxu0
    %3322 = vdwg.mxu0
    %3323 = vmatprep.subr.mxu0 0.0
    %3324 = vmatpush1.msra.mxu0 %v3234
    %3325 = vmatprep.subr.mxu0 0.0
    %3326 = vmatpush1.msra.mxu0 %v3235
    %3327 = vmatprep.subr.mxu0 0.0
    %3328 = vmatpush1.msra.mxu0 %v3236
    %3329 = vmatprep.subr.mxu0 0.0
    %3330 = vmatpush1.msra.mxu0 %v3237
    %3331 = vmatprep.subr.mxu0 0.0
    %3332 = vmatpush1.msra.mxu0 0.0
    %3333 = vmatprep.subr.mxu0 0.0
    %3334 = vmatpush1.msra.mxu0 0.0
    %3335 = vmatprep.subr.mxu0 0.0
    %3336 = vmatpush1.msra.mxu0 0.0
    %3337 = vmatprep.subr.mxu0 0.0
    %3338 = vmatpush1.msra.mxu0 0.0
    %3339 = vmatprep.subr.mxu0 0.0
    %3340 = vmatpush1.msra.mxu0 0.0
    %3341 = vmatprep.subr.mxu0 0.0
    %3342 = vmatpush1.msra.mxu0 0.0
    %3343 = vmatprep.subr.mxu0 0.0
    %3344 = vmatpush1.msra.mxu0 0.0
    %3345 = vmatprep.subr.mxu0 0.0
    %3346 = vmatpush1.msra.mxu0 0.0
    %3347 = vmatprep.subr.mxu0 0.0
    %3348 = vmatpush1.msra.mxu0 0.0
    %3349 = vmatprep.subr.mxu0 0.0
    %3350 = vmatpush1.msra.mxu0 0.0
    %3351 = vmatprep.subr.mxu0 0.0
    %3352 = vmatpush1.msra.mxu0 0.0
    %3353 = vmatprep.subr.mxu0 0.0
    %3354 = vmatpush1.msra.mxu0 0.0
    %3355 = vmatprep.subr.mxu0 0.0
    %3356 = vmatpush1.msra.mxu0 0.0
    %3357 = vmatprep.subr.mxu0 0.0
    %3358 = vmatpush1.msra.mxu0 0.0
    %3359 = vmatprep.subr.mxu0 0.0
    %3360 = vmatpush1.msra.mxu0 0.0
    %3361 = vmatprep.subr.mxu0 0.0
    %3362 = vmatpush1.msra.mxu0 0.0
    %3363 = vmatprep.subr.mxu0 0.0
    %3364 = vmatpush1.msra.mxu0 0.0
    %3365 = vmatprep.subr.mxu0 0.0
    %3366 = vmatpush1.msra.mxu0 0.0
    %3367 = vmatprep.subr.mxu0 0.0
    %3368 = vmatpush1.msra.mxu0 0.0
    %3369 = vmatprep.subr.mxu0 0.0
    %3370 = vmatpush1.msra.mxu0 0.0
    %3371 = vmatprep.subr.mxu0 0.0
    %3372 = vmatpush1.msra.mxu0 0.0
    %3373 = vmatprep.subr.mxu0 0.0
    %3374 = vmatpush1.msra.mxu0 0.0
    %3375 = vmatprep.subr.mxu0 0.0
    %3376 = vmatpush1.msra.mxu0 0.0
    %3377 = vmatprep.subr.mxu0 0.0
    %3378 = vmatpush1.msra.mxu0 0.0
    %3379 = vmatprep.subr.mxu0 0.0
    %3380 = vmatpush1.msra.mxu0 0.0
    %3381 = vmatprep.subr.mxu0 0.0
    %3382 = vmatpush1.msra.mxu0 0.0
    %3383 = vmatprep.subr.mxu0 0.0
    %3384 = vmatpush1.msra.mxu0 0.0
    %3385 = vmatprep.subr.mxu0 0.0
    %3386 = vmatpush1.msra.mxu0 0.0
    %3387 = vmatprep.mubr.f32.mxu0 0.0
    %3388 = vmatmul.mubr.f32.gmra.mrb[0].mxu0 %v2762
    %v3389 = vpop.f32.mrb[0].mxu0
    %v3390 = vadd.f32 %v3315, %v3389
    %v3391 = vpop.f32.mrb[0].mxu0
    %3392 = vmatprep.mubr.f32.mxu0 0.0
    %3393 = vmatmul.mubr.f32.gmra.mrb[0].mxu0 %v2765
    %v3394 = vpop.f32.mrb[0].mxu0
    %v3395 = vadd.f32 %v3320, %v3394
    %v3396 = vpop.f32.mrb[0].mxu0
    %3397 = vdwg.mxu0
    %v3398 = vld [vmem:[%s22] sm:$0x1]
    %v3400 = vlaneseq
    %v3401 = vshrl.u32 %v3400, 7
    %v3402 = vsub.s32 0, %v3401
    %v3403 = vrot.slane %v3398, %v3402
    %v3405 = vadd.f32 %v3390, %v3403
    %v3406 = vadd.f32 %v3395, %v3403
    %3407 = vst.msk [vmem:[#allocation2] sm:$0xff] %vm397, %v3405
    %3408 = vst.msk [vmem:[#allocation2 + $0x8] sm:$0xff] %vm397, %v3406
    %v3409 = vld [vmem:[#allocation31] sm:$0xff]
    %v3410 = vld [vmem:[#allocation31 + $0x8] sm:$0xff]
    %v3411 = vld [vmem:[#allocation31 + $0x10] sm:$0xff]
    %v3412 = vld [vmem:[#allocation31 + $0x18] sm:$0xff]
    %v3413 = vld [vmem:[%s23] sm:$0x1]
    %v3415 = vlaneseq
    %v3416 = vshrl.u32 %v3415, 7
    %v3417 = vsub.s32 0, %v3416
    %v3418 = vrot.slane %v3413, %v3417
    %v3419 = vld [vmem:[#allocation2] sm:$0x3]
    %v3421 = vsel %vm435, 0.0, 0
    %3423 = vmatprep.subr.mxu0 0.0
    %3424 = vmatpush1.msra.mxu0 %v3409
    %3425 = vmatprep.subr.mxu0 0.0
    %3426 = vmatpush1.msra.mxu0 %v3410
    %3427 = vmatprep.subr.mxu0 0.0
    %3428 = vmatpush1.msra.mxu0 %v3411
    %3429 = vmatprep.subr.mxu0 0.0
    %3430 = vmatpush1.msra.mxu0 %v3412
    %3431 = vmatprep.subr.mxu0 0.0
    %3432 = vmatpush1.msra.mxu0 0.0
    %3433 = vmatprep.subr.mxu0 0.0
    %3434 = vmatpush1.msra.mxu0 0.0
    %3435 = vmatprep.subr.mxu0 0.0
    %3436 = vmatpush1.msra.mxu0 0.0
    %3437 = vmatprep.subr.mxu0 0.0
    %3438 = vmatpush1.msra.mxu0 0.0
    %3439 = vmatprep.subr.mxu0 0.0
    %3440 = vmatpush1.msra.mxu0 0.0
    %3441 = vmatprep.subr.mxu0 0.0
    %3442 = vmatpush1.msra.mxu0 0.0
    %3443 = vmatprep.subr.mxu0 0.0
    %3444 = vmatpush1.msra.mxu0 0.0
    %3445 = vmatprep.subr.mxu0 0.0
    %3446 = vmatpush1.msra.mxu0 0.0
    %3447 = vmatprep.subr.mxu0 0.0
    %3448 = vmatpush1.msra.mxu0 0.0
    %3449 = vmatprep.subr.mxu0 0.0
    %3450 = vmatpush1.msra.mxu0 0.0
    %3451 = vmatprep.subr.mxu0 0.0
    %3452 = vmatpush1.msra.mxu0 0.0
    %3453 = vmatprep.subr.mxu0 0.0
    %3454 = vmatpush1.msra.mxu0 0.0
    %3455 = vmatprep.subr.mxu0 0.0
    %3456 = vmatpush1.msra.mxu0 0.0
    %3457 = vmatprep.subr.mxu0 0.0
    %3458 = vmatpush1.msra.mxu0 0.0
    %3459 = vmatprep.subr.mxu0 0.0
    %3460 = vmatpush1.msra.mxu0 0.0
    %3461 = vmatprep.subr.mxu0 0.0
    %3462 = vmatpush1.msra.mxu0 0.0
    %3463 = vmatprep.subr.mxu0 0.0
    %3464 = vmatpush1.msra.mxu0 0.0
    %3465 = vmatprep.subr.mxu0 0.0
    %3466 = vmatpush1.msra.mxu0 0.0
    %3467 = vmatprep.subr.mxu0 0.0
    %3468 = vmatpush1.msra.mxu0 0.0
    %3469 = vmatprep.subr.mxu0 0.0
    %3470 = vmatpush1.msra.mxu0 0.0
    %3471 = vmatprep.subr.mxu0 0.0
    %3472 = vmatpush1.msra.mxu0 0.0
    %3473 = vmatprep.subr.mxu0 0.0
    %3474 = vmatpush1.msra.mxu0 0.0
    %3475 = vmatprep.subr.mxu0 0.0
    %3476 = vmatpush1.msra.mxu0 0.0
    %3477 = vmatprep.subr.mxu0 0.0
    %3478 = vmatpush1.msra.mxu0 0.0
    %3479 = vmatprep.subr.mxu0 0.0
    %3480 = vmatpush1.msra.mxu0 0.0
    %3481 = vmatprep.subr.mxu0 0.0
    %3482 = vmatpush1.msra.mxu0 0.0
    %3483 = vmatprep.subr.mxu0 0.0
    %3484 = vmatpush1.msra.mxu0 0.0
    %3485 = vmatprep.subr.mxu0 0.0
    %3486 = vmatpush1.msra.mxu0 0.0
    %3487 = vmatprep.mubr.f32.mxu0 0.0
    %3488 = vmatmul.mubr.f32.gmra.mrb[0].mxu0 %v3421
    %v3489 = vpop.f32.mrb[0].mxu0
    %v3490 = vadd.f32 0.0, %v3489
    %v3491 = vpop.f32.mrb[0].mxu0
    %3492 = vdwg.mxu0
    %v3493 = vadd.f32 %v3419, %v3490
    %v3494 = vxor.u32 %v3493, 2147483648
    %v3495 = vmul.f32 %v3494, 1.442695
    %v3496 = vpow.pop %v3495
    %v3497 = vadd.f32 %v3496, 1.0
    %v3498 = vrcp.pop %v3497
    %v3499 = vmul.f32 1.0, %v3498
    %3500 = vrot.lane.b32.xlu0 %v3418, 64
    %v3501 = vpop.permute.xlu0 %3500
    %v3503 = vadd.f32 %v3490, %v3501
    %3505 = vrot.lane.b32.xlu0 %v3503, 64
    %v3506 = vpop.permute.xlu0 %3505
    %v3508 = vmul.f32 %v3499, %v3506
    %3510 = vrot.lane.b32.xlu0 %v3508, 64
    %v3511 = vpop.permute.xlu0 %3510
    %v3513 = vadd.f32 %v3419, %v3511
    %v3514 = vtanh.pop %v3513
    %v3515 = vsub.f32 1.0, %v3499
    %3517 = vrot.lane.b32.xlu0 %v3514, 96
    %v3518 = vpop.permute.xlu0 %3517
    %v3520 = vmul.f32 %v3515, %v3518
    %v3521 = vmul.f32 %v3499, 0.0
    %v3522 = vadd.f32 %v3520, %v3521
    %3524 = vrot.lane.b32.xlu0 %v3522, 96
    %v3525 = vpop.permute.xlu0 %3524
    %3527 = vst.msk [vmem:[#allocation4] sm:$0x3] %vm832, %v3525
    %v3528 = vld [vmem:[#allocation2 + $0x2] sm:$0x3]
    %v3529 = vsel %vm435, %v3525, 0
    %3531 = vmatprep.subr.mxu0 0.0
    %3532 = vmatpush1.msra.mxu0 %v3409
    %3533 = vmatprep.subr.mxu0 0.0
    %3534 = vmatpush1.msra.mxu0 %v3410
    %3535 = vmatprep.subr.mxu0 0.0
    %3536 = vmatpush1.msra.mxu0 %v3411
    %3537 = vmatprep.subr.mxu0 0.0
    %3538 = vmatpush1.msra.mxu0 %v3412
    %3539 = vmatprep.subr.mxu0 0.0
    %3540 = vmatpush1.msra.mxu0 0.0
    %3541 = vmatprep.subr.mxu0 0.0
    %3542 = vmatpush1.msra.mxu0 0.0
    %3543 = vmatprep.subr.mxu0 0.0
    %3544 = vmatpush1.msra.mxu0 0.0
    %3545 = vmatprep.subr.mxu0 0.0
    %3546 = vmatpush1.msra.mxu0 0.0
    %3547 = vmatprep.subr.mxu0 0.0
    %3548 = vmatpush1.msra.mxu0 0.0
    %3549 = vmatprep.subr.mxu0 0.0
    %3550 = vmatpush1.msra.mxu0 0.0
    %3551 = vmatprep.subr.mxu0 0.0
    %3552 = vmatpush1.msra.mxu0 0.0
    %3553 = vmatprep.subr.mxu0 0.0
    %3554 = vmatpush1.msra.mxu0 0.0
    %3555 = vmatprep.subr.mxu0 0.0
    %3556 = vmatpush1.msra.mxu0 0.0
    %3557 = vmatprep.subr.mxu0 0.0
    %3558 = vmatpush1.msra.mxu0 0.0
    %3559 = vmatprep.subr.mxu0 0.0
    %3560 = vmatpush1.msra.mxu0 0.0
    %3561 = vmatprep.subr.mxu0 0.0
    %3562 = vmatpush1.msra.mxu0 0.0
    %3563 = vmatprep.subr.mxu0 0.0
    %3564 = vmatpush1.msra.mxu0 0.0
    %3565 = vmatprep.subr.mxu0 0.0
    %3566 = vmatpush1.msra.mxu0 0.0
    %3567 = vmatprep.subr.mxu0 0.0
    %3568 = vmatpush1.msra.mxu0 0.0
    %3569 = vmatprep.subr.mxu0 0.0
    %3570 = vmatpush1.msra.mxu0 0.0
    %3571 = vmatprep.subr.mxu0 0.0
    %3572 = vmatpush1.msra.mxu0 0.0
    %3573 = vmatprep.subr.mxu0 0.0
    %3574 = vmatpush1.msra.mxu0 0.0
    %3575 = vmatprep.subr.mxu0 0.0
    %3576 = vmatpush1.msra.mxu0 0.0
    %3577 = vmatprep.subr.mxu0 0.0
    %3578 = vmatpush1.msra.mxu0 0.0
    %3579 = vmatprep.subr.mxu0 0.0
    %3580 = vmatpush1.msra.mxu0 0.0
    %3581 = vmatprep.subr.mxu0 0.0
    %3582 = vmatpush1.msra.mxu0 0.0
    %3583 = vmatprep.subr.mxu0 0.0
    %3584 = vmatpush1.msra.mxu0 0.0
    %3585 = vmatprep.subr.mxu0 0.0
    %3586 = vmatpush1.msra.mxu0 0.0
    %3587 = vmatprep.subr.mxu0 0.0
    %3588 = vmatpush1.msra.mxu0 0.0
    %3589 = vmatprep.subr.mxu0 0.0
    %3590 = vmatpush1.msra.mxu0 0.0
    %3591 = vmatprep.subr.mxu0 0.0
    %3592 = vmatpush1.msra.mxu0 0.0
    %3593 = vmatprep.subr.mxu0 0.0
    %3594 = vmatpush1.msra.mxu0 0.0
    %3595 = vmatprep.mubr.f32.mxu0 0.0
    %3596 = vmatmul.mubr.f32.gmra.mrb[0].mxu0 %v3529
    %v3597 = vpop.f32.mrb[0].mxu0
    %v3598 = vadd.f32 0.0, %v3597
    %v3599 = vpop.f32.mrb[0].mxu0
    %3600 = vdwg.mxu0
    %v3601 = vadd.f32 %v3528, %v3598
    %v3602 = vxor.u32 %v3601, 2147483648
    %v3603 = vmul.f32 %v3602, 1.442695
    %v3604 = vpow.pop %v3603
    %v3605 = vadd.f32 %v3604, 1.0
    %v3606 = vrcp.pop %v3605
    %v3607 = vmul.f32 1.0, %v3606
    %v3608 = vadd.f32 %v3598, %v3501
    %3610 = vrot.lane.b32.xlu0 %v3608, 64
    %v3611 = vpop.permute.xlu0 %3610
    %v3613 = vmul.f32 %v3607, %v3611
    %3615 = vrot.lane.b32.xlu0 %v3613, 64
    %v3616 = vpop.permute.xlu0 %3615
    %v3618 = vadd.f32 %v3528, %v3616
    %v3619 = vtanh.pop %v3618
    %v3620 = vsub.f32 1.0, %v3607
    %3622 = vrot.lane.b32.xlu0 %v3619, 96
    %v3623 = vpop.permute.xlu0 %3622
    %v3625 = vmul.f32 %v3620, %v3623
    %v3626 = vmul.f32 %v3607, %v3522
    %v3627 = vadd.f32 %v3625, %v3626
    %3629 = vrot.lane.b32.xlu0 %v3627, 96
    %v3630 = vpop.permute.xlu0 %3629
    %3632 = vst.msk [vmem:[#allocation4 + $0x2] sm:$0x3] %vm832, %v3630
    %v3633 = vld [vmem:[#allocation2 + $0x4] sm:$0x3]
    %v3634 = vsel %vm435, %v3630, 0
    %3636 = vmatprep.subr.mxu0 0.0
    %3637 = vmatpush1.msra.mxu0 %v3409
    %3638 = vmatprep.subr.mxu0 0.0
    %3639 = vmatpush1.msra.mxu0 %v3410
    %3640 = vmatprep.subr.mxu0 0.0
    %3641 = vmatpush1.msra.mxu0 %v3411
    %3642 = vmatprep.subr.mxu0 0.0
    %3643 = vmatpush1.msra.mxu0 %v3412
    %3644 = vmatprep.subr.mxu0 0.0
    %3645 = vmatpush1.msra.mxu0 0.0
    %3646 = vmatprep.subr.mxu0 0.0
    %3647 = vmatpush1.msra.mxu0 0.0
    %3648 = vmatprep.subr.mxu0 0.0
    %3649 = vmatpush1.msra.mxu0 0.0
    %3650 = vmatprep.subr.mxu0 0.0
    %3651 = vmatpush1.msra.mxu0 0.0
    %3652 = vmatprep.subr.mxu0 0.0
    %3653 = vmatpush1.msra.mxu0 0.0
    %3654 = vmatprep.subr.mxu0 0.0
    %3655 = vmatpush1.msra.mxu0 0.0
    %3656 = vmatprep.subr.mxu0 0.0
    %3657 = vmatpush1.msra.mxu0 0.0
    %3658 = vmatprep.subr.mxu0 0.0
    %3659 = vmatpush1.msra.mxu0 0.0
    %3660 = vmatprep.subr.mxu0 0.0
    %3661 = vmatpush1.msra.mxu0 0.0
    %3662 = vmatprep.subr.mxu0 0.0
    %3663 = vmatpush1.msra.mxu0 0.0
    %3664 = vmatprep.subr.mxu0 0.0
    %3665 = vmatpush1.msra.mxu0 0.0
    %3666 = vmatprep.subr.mxu0 0.0
    %3667 = vmatpush1.msra.mxu0 0.0
    %3668 = vmatprep.subr.mxu0 0.0
    %3669 = vmatpush1.msra.mxu0 0.0
    %3670 = vmatprep.subr.mxu0 0.0
    %3671 = vmatpush1.msra.mxu0 0.0
    %3672 = vmatprep.subr.mxu0 0.0
    %3673 = vmatpush1.msra.mxu0 0.0
    %3674 = vmatprep.subr.mxu0 0.0
    %3675 = vmatpush1.msra.mxu0 0.0
    %3676 = vmatprep.subr.mxu0 0.0
    %3677 = vmatpush1.msra.mxu0 0.0
    %3678 = vmatprep.subr.mxu0 0.0
    %3679 = vmatpush1.msra.mxu0 0.0
    %3680 = vmatprep.subr.mxu0 0.0
    %3681 = vmatpush1.msra.mxu0 0.0
    %3682 = vmatprep.subr.mxu0 0.0
    %3683 = vmatpush1.msra.mxu0 0.0
    %3684 = vmatprep.subr.mxu0 0.0
    %3685 = vmatpush1.msra.mxu0 0.0
    %3686 = vmatprep.subr.mxu0 0.0
    %3687 = vmatpush1.msra.mxu0 0.0
    %3688 = vmatprep.subr.mxu0 0.0
    %3689 = vmatpush1.msra.mxu0 0.0
    %3690 = vmatprep.subr.mxu0 0.0
    %3691 = vmatpush1.msra.mxu0 0.0
    %3692 = vmatprep.subr.mxu0 0.0
    %3693 = vmatpush1.msra.mxu0 0.0
    %3694 = vmatprep.subr.mxu0 0.0
    %3695 = vmatpush1.msra.mxu0 0.0
    %3696 = vmatprep.subr.mxu0 0.0
    %3697 = vmatpush1.msra.mxu0 0.0
    %3698 = vmatprep.subr.mxu0 0.0
    %3699 = vmatpush1.msra.mxu0 0.0
    %3700 = vmatprep.mubr.f32.mxu0 0.0
    %3701 = vmatmul.mubr.f32.gmra.mrb[0].mxu0 %v3634
    %v3702 = vpop.f32.mrb[0].mxu0
    %v3703 = vadd.f32 0.0, %v3702
    %v3704 = vpop.f32.mrb[0].mxu0
    %3705 = vdwg.mxu0
    %v3706 = vadd.f32 %v3633, %v3703
    %v3707 = vxor.u32 %v3706, 2147483648
    %v3708 = vmul.f32 %v3707, 1.442695
    %v3709 = vpow.pop %v3708
    %v3710 = vadd.f32 %v3709, 1.0
    %v3711 = vrcp.pop %v3710
    %v3712 = vmul.f32 1.0, %v3711
    %v3713 = vadd.f32 %v3703, %v3501
    %3715 = vrot.lane.b32.xlu0 %v3713, 64
    %v3716 = vpop.permute.xlu0 %3715
    %v3718 = vmul.f32 %v3712, %v3716
    %3720 = vrot.lane.b32.xlu0 %v3718, 64
    %v3721 = vpop.permute.xlu0 %3720
    %v3723 = vadd.f32 %v3633, %v3721
    %v3724 = vtanh.pop %v3723
    %v3725 = vsub.f32 1.0, %v3712
    %3727 = vrot.lane.b32.xlu0 %v3724, 96
    %v3728 = vpop.permute.xlu0 %3727
    %v3730 = vmul.f32 %v3725, %v3728
    %v3731 = vmul.f32 %v3712, %v3627
    %v3732 = vadd.f32 %v3730, %v3731
    %3734 = vrot.lane.b32.xlu0 %v3732, 96
    %v3735 = vpop.permute.xlu0 %3734
    %3737 = vst.msk [vmem:[#allocation4 + $0x4] sm:$0x3] %vm832, %v3735
    %v3738 = vld [vmem:[#allocation2 + $0x6] sm:$0x3]
    %v3739 = vsel %vm435, %v3735, 0
    %3741 = vmatprep.subr.mxu0 0.0
    %3742 = vmatpush1.msra.mxu0 %v3409
    %3743 = vmatprep.subr.mxu0 0.0
    %3744 = vmatpush1.msra.mxu0 %v3410
    %3745 = vmatprep.subr.mxu0 0.0
    %3746 = vmatpush1.msra.mxu0 %v3411
    %3747 = vmatprep.subr.mxu0 0.0
    %3748 = vmatpush1.msra.mxu0 %v3412
    %3749 = vmatprep.subr.mxu0 0.0
    %3750 = vmatpush1.msra.mxu0 0.0
    %3751 = vmatprep.subr.mxu0 0.0
    %3752 = vmatpush1.msra.mxu0 0.0
    %3753 = vmatprep.subr.mxu0 0.0
    %3754 = vmatpush1.msra.mxu0 0.0
    %3755 = vmatprep.subr.mxu0 0.0
    %3756 = vmatpush1.msra.mxu0 0.0
    %3757 = vmatprep.subr.mxu0 0.0
    %3758 = vmatpush1.msra.mxu0 0.0
    %3759 = vmatprep.subr.mxu0 0.0
    %3760 = vmatpush1.msra.mxu0 0.0
    %3761 = vmatprep.subr.mxu0 0.0
    %3762 = vmatpush1.msra.mxu0 0.0
    %3763 = vmatprep.subr.mxu0 0.0
    %3764 = vmatpush1.msra.mxu0 0.0
    %3765 = vmatprep.subr.mxu0 0.0
    %3766 = vmatpush1.msra.mxu0 0.0
    %3767 = vmatprep.subr.mxu0 0.0
    %3768 = vmatpush1.msra.mxu0 0.0
    %3769 = vmatprep.subr.mxu0 0.0
    %3770 = vmatpush1.msra.mxu0 0.0
    %3771 = vmatprep.subr.mxu0 0.0
    %3772 = vmatpush1.msra.mxu0 0.0
    %3773 = vmatprep.subr.mxu0 0.0
    %3774 = vmatpush1.msra.mxu0 0.0
    %3775 = vmatprep.subr.mxu0 0.0
    %3776 = vmatpush1.msra.mxu0 0.0
    %3777 = vmatprep.subr.mxu0 0.0
    %3778 = vmatpush1.msra.mxu0 0.0
    %3779 = vmatprep.subr.mxu0 0.0
    %3780 = vmatpush1.msra.mxu0 0.0
    %3781 = vmatprep.subr.mxu0 0.0
    %3782 = vmatpush1.msra.mxu0 0.0
    %3783 = vmatprep.subr.mxu0 0.0
    %3784 = vmatpush1.msra.mxu0 0.0
    %3785 = vmatprep.subr.mxu0 0.0
    %3786 = vmatpush1.msra.mxu0 0.0
    %3787 = vmatprep.subr.mxu0 0.0
    %3788 = vmatpush1.msra.mxu0 0.0
    %3789 = vmatprep.subr.mxu0 0.0
    %3790 = vmatpush1.msra.mxu0 0.0
    %3791 = vmatprep.subr.mxu0 0.0
    %3792 = vmatpush1.msra.mxu0 0.0
    %3793 = vmatprep.subr.mxu0 0.0
    %3794 = vmatpush1.msra.mxu0 0.0
    %3795 = vmatprep.subr.mxu0 0.0
    %3796 = vmatpush1.msra.mxu0 0.0
    %3797 = vmatprep.subr.mxu0 0.0
    %3798 = vmatpush1.msra.mxu0 0.0
    %3799 = vmatprep.subr.mxu0 0.0
    %3800 = vmatpush1.msra.mxu0 0.0
    %3801 = vmatprep.subr.mxu0 0.0
    %3802 = vmatpush1.msra.mxu0 0.0
    %3803 = vmatprep.subr.mxu0 0.0
    %3804 = vmatpush1.msra.mxu0 0.0
    %3805 = vmatprep.mubr.f32.mxu0 0.0
    %3806 = vmatmul.mubr.f32.gmra.mrb[0].mxu0 %v3739
    %v3807 = vpop.f32.mrb[0].mxu0
    %v3808 = vadd.f32 0.0, %v3807
    %v3809 = vpop.f32.mrb[0].mxu0
    %3810 = vdwg.mxu0
    %v3811 = vadd.f32 %v3738, %v3808
    %v3812 = vxor.u32 %v3811, 2147483648
    %v3813 = vmul.f32 %v3812, 1.442695
    %v3814 = vpow.pop %v3813
    %v3815 = vadd.f32 %v3814, 1.0
    %v3816 = vrcp.pop %v3815
    %v3817 = vmul.f32 1.0, %v3816
    %v3818 = vadd.f32 %v3808, %v3501
    %3820 = vrot.lane.b32.xlu0 %v3818, 64
    %v3821 = vpop.permute.xlu0 %3820
    %v3823 = vmul.f32 %v3817, %v3821
    %3825 = vrot.lane.b32.xlu0 %v3823, 64
    %v3826 = vpop.permute.xlu0 %3825
    %v3828 = vadd.f32 %v3738, %v3826
    %v3829 = vtanh.pop %v3828
    %v3830 = vsub.f32 1.0, %v3817
    %3832 = vrot.lane.b32.xlu0 %v3829, 96
    %v3833 = vpop.permute.xlu0 %3832
    %v3835 = vmul.f32 %v3830, %v3833
    %v3836 = vmul.f32 %v3817, %v3732
    %v3837 = vadd.f32 %v3835, %v3836
    %3839 = vrot.lane.b32.xlu0 %v3837, 96
    %v3840 = vpop.permute.xlu0 %3839
    %3842 = vst.msk [vmem:[#allocation4 + $0x6] sm:$0x3] %vm832, %v3840
    %v3843 = vld [vmem:[#allocation2 + $0x8] sm:$0x3]
    %v3844 = vsel %vm435, %v3840, 0
    %3846 = vmatprep.subr.mxu0 0.0
    %3847 = vmatpush1.msra.mxu0 %v3409
    %3848 = vmatprep.subr.mxu0 0.0
    %3849 = vmatpush1.msra.mxu0 %v3410
    %3850 = vmatprep.subr.mxu0 0.0
    %3851 = vmatpush1.msra.mxu0 %v3411
    %3852 = vmatprep.subr.mxu0 0.0
    %3853 = vmatpush1.msra.mxu0 %v3412
    %3854 = vmatprep.subr.mxu0 0.0
    %3855 = vmatpush1.msra.mxu0 0.0
    %3856 = vmatprep.subr.mxu0 0.0
    %3857 = vmatpush1.msra.mxu0 0.0
    %3858 = vmatprep.subr.mxu0 0.0
    %3859 = vmatpush1.msra.mxu0 0.0
    %3860 = vmatprep.subr.mxu0 0.0
    %3861 = vmatpush1.msra.mxu0 0.0
    %3862 = vmatprep.subr.mxu0 0.0
    %3863 = vmatpush1.msra.mxu0 0.0
    %3864 = vmatprep.subr.mxu0 0.0
    %3865 = vmatpush1.msra.mxu0 0.0
    %3866 = vmatprep.subr.mxu0 0.0
    %3867 = vmatpush1.msra.mxu0 0.0
    %3868 = vmatprep.subr.mxu0 0.0
    %3869 = vmatpush1.msra.mxu0 0.0
    %3870 = vmatprep.subr.mxu0 0.0
    %3871 = vmatpush1.msra.mxu0 0.0
    %3872 = vmatprep.subr.mxu0 0.0
    %3873 = vmatpush1.msra.mxu0 0.0
    %3874 = vmatprep.subr.mxu0 0.0
    %3875 = vmatpush1.msra.mxu0 0.0
    %3876 = vmatprep.subr.mxu0 0.0
    %3877 = vmatpush1.msra.mxu0 0.0
    %3878 = vmatprep.subr.mxu0 0.0
    %3879 = vmatpush1.msra.mxu0 0.0
    %3880 = vmatprep.subr.mxu0 0.0
    %3881 = vmatpush1.msra.mxu0 0.0
    %3882 = vmatprep.subr.mxu0 0.0
    %3883 = vmatpush1.msra.mxu0 0.0
    %3884 = vmatprep.subr.mxu0 0.0
    %3885 = vmatpush1.msra.mxu0 0.0
    %3886 = vmatprep.subr.mxu0 0.0
    %3887 = vmatpush1.msra.mxu0 0.0
    %3888 = vmatprep.subr.mxu0 0.0
    %3889 = vmatpush1.msra.mxu0 0.0
    %3890 = vmatprep.subr.mxu0 0.0
    %3891 = vmatpush1.msra.mxu0 0.0
    %3892 = vmatprep.subr.mxu0 0.0
    %3893 = vmatpush1.msra.mxu0 0.0
    %3894 = vmatprep.subr.mxu0 0.0
    %3895 = vmatpush1.msra.mxu0 0.0
    %3896 = vmatprep.subr.mxu0 0.0
    %3897 = vmatpush1.msra.mxu0 0.0
    %3898 = vmatprep.subr.mxu0 0.0
    %3899 = vmatpush1.msra.mxu0 0.0
    %3900 = vmatprep.subr.mxu0 0.0
    %3901 = vmatpush1.msra.mxu0 0.0
    %3902 = vmatprep.subr.mxu0 0.0
    %3903 = vmatpush1.msra.mxu0 0.0
    %3904 = vmatprep.subr.mxu0 0.0
    %3905 = vmatpush1.msra.mxu0 0.0
    %3906 = vmatprep.subr.mxu0 0.0
    %3907 = vmatpush1.msra.mxu0 0.0
    %3908 = vmatprep.subr.mxu0 0.0
    %3909 = vmatpush1.msra.mxu0 0.0
    %3910 = vmatprep.mubr.f32.mxu0 0.0
    %3911 = vmatmul.mubr.f32.gmra.mrb[0].mxu0 %v3844
    %v3912 = vpop.f32.mrb[0].mxu0
    %v3913 = vadd.f32 0.0, %v3912
    %v3914 = vpop.f32.mrb[0].mxu0
    %3915 = vdwg.mxu0
    %v3916 = vadd.f32 %v3843, %v3913
    %v3917 = vxor.u32 %v3916, 2147483648
    %v3918 = vmul.f32 %v3917, 1.442695
    %v3919 = vpow.pop %v3918
    %v3920 = vadd.f32 %v3919, 1.0
    %v3921 = vrcp.pop %v3920
    %v3922 = vmul.f32 1.0, %v3921
    %v3923 = vadd.f32 %v3913, %v3501
    %3925 = vrot.lane.b32.xlu0 %v3923, 64
    %v3926 = vpop.permute.xlu0 %3925
    %v3928 = vmul.f32 %v3922, %v3926
    %3930 = vrot.lane.b32.xlu0 %v3928, 64
    %v3931 = vpop.permute.xlu0 %3930
    %v3933 = vadd.f32 %v3843, %v3931
    %v3934 = vtanh.pop %v3933
    %v3935 = vsub.f32 1.0, %v3922
    %3937 = vrot.lane.b32.xlu0 %v3934, 96
    %v3938 = vpop.permute.xlu0 %3937
    %v3940 = vmul.f32 %v3935, %v3938
    %v3941 = vmul.f32 %v3922, %v3837
    %v3942 = vadd.f32 %v3940, %v3941
    %3944 = vrot.lane.b32.xlu0 %v3942, 96
    %v3945 = vpop.permute.xlu0 %3944
    %3947 = vst.msk [vmem:[#allocation4 + $0x8] sm:$0x3] %vm832, %v3945
    %v3948 = vld [vmem:[#allocation2 + $0xa] sm:$0x3]
    %v3949 = vsel %vm435, %v3945, 0
    %3951 = vmatprep.subr.mxu0 0.0
    %3952 = vmatpush1.msra.mxu0 %v3409
    %3953 = vmatprep.subr.mxu0 0.0
    %3954 = vmatpush1.msra.mxu0 %v3410
    %3955 = vmatprep.subr.mxu0 0.0
    %3956 = vmatpush1.msra.mxu0 %v3411
    %3957 = vmatprep.subr.mxu0 0.0
    %3958 = vmatpush1.msra.mxu0 %v3412
    %3959 = vmatprep.subr.mxu0 0.0
    %3960 = vmatpush1.msra.mxu0 0.0
    %3961 = vmatprep.subr.mxu0 0.0
    %3962 = vmatpush1.msra.mxu0 0.0
    %3963 = vmatprep.subr.mxu0 0.0
    %3964 = vmatpush1.msra.mxu0 0.0
    %3965 = vmatprep.subr.mxu0 0.0
    %3966 = vmatpush1.msra.mxu0 0.0
    %3967 = vmatprep.subr.mxu0 0.0
    %3968 = vmatpush1.msra.mxu0 0.0
    %3969 = vmatprep.subr.mxu0 0.0
    %3970 = vmatpush1.msra.mxu0 0.0
    %3971 = vmatprep.subr.mxu0 0.0
    %3972 = vmatpush1.msra.mxu0 0.0
    %3973 = vmatprep.subr.mxu0 0.0
    %3974 = vmatpush1.msra.mxu0 0.0
    %3975 = vmatprep.subr.mxu0 0.0
    %3976 = vmatpush1.msra.mxu0 0.0
    %3977 = vmatprep.subr.mxu0 0.0
    %3978 = vmatpush1.msra.mxu0 0.0
    %3979 = vmatprep.subr.mxu0 0.0
    %3980 = vmatpush1.msra.mxu0 0.0
    %3981 = vmatprep.subr.mxu0 0.0
    %3982 = vmatpush1.msra.mxu0 0.0
    %3983 = vmatprep.subr.mxu0 0.0
    %3984 = vmatpush1.msra.mxu0 0.0
    %3985 = vmatprep.subr.mxu0 0.0
    %3986 = vmatpush1.msra.mxu0 0.0
    %3987 = vmatprep.subr.mxu0 0.0
    %3988 = vmatpush1.msra.mxu0 0.0
    %3989 = vmatprep.subr.mxu0 0.0
    %3990 = vmatpush1.msra.mxu0 0.0
    %3991 = vmatprep.subr.mxu0 0.0
    %3992 = vmatpush1.msra.mxu0 0.0
    %3993 = vmatprep.subr.mxu0 0.0
    %3994 = vmatpush1.msra.mxu0 0.0
    %3995 = vmatprep.subr.mxu0 0.0
    %3996 = vmatpush1.msra.mxu0 0.0
    %3997 = vmatprep.subr.mxu0 0.0
    %3998 = vmatpush1.msra.mxu0 0.0
    %3999 = vmatprep.subr.mxu0 0.0
    %4000 = vmatpush1.msra.mxu0 0.0
    %4001 = vmatprep.subr.mxu0 0.0
    %4002 = vmatpush1.msra.mxu0 0.0
    %4003 = vmatprep.subr.mxu0 0.0
    %4004 = vmatpush1.msra.mxu0 0.0
    %4005 = vmatprep.subr.mxu0 0.0
    %4006 = vmatpush1.msra.mxu0 0.0
    %4007 = vmatprep.subr.mxu0 0.0
    %4008 = vmatpush1.msra.mxu0 0.0
    %4009 = vmatprep.subr.mxu0 0.0
    %4010 = vmatpush1.msra.mxu0 0.0
    %4011 = vmatprep.subr.mxu0 0.0
    %4012 = vmatpush1.msra.mxu0 0.0
    %4013 = vmatprep.subr.mxu0 0.0
    %4014 = vmatpush1.msra.mxu0 0.0
    %4015 = vmatprep.mubr.f32.mxu0 0.0
    %4016 = vmatmul.mubr.f32.gmra.mrb[0].mxu0 %v3949
    %v4017 = vpop.f32.mrb[0].mxu0
    %v4018 = vadd.f32 0.0, %v4017
    %v4019 = vpop.f32.mrb[0].mxu0
    %4020 = vdwg.mxu0
    %v4021 = vadd.f32 %v3948, %v4018
    %v4022 = vxor.u32 %v4021, 2147483648
    %v4023 = vmul.f32 %v4022, 1.442695
    %v4024 = vpow.pop %v4023
    %v4025 = vadd.f32 %v4024, 1.0
    %v4026 = vrcp.pop %v4025
    %v4027 = vmul.f32 1.0, %v4026
    %v4028 = vadd.f32 %v4018, %v3501
    %4030 = vrot.lane.b32.xlu0 %v4028, 64
    %v4031 = vpop.permute.xlu0 %4030
    %v4033 = vmul.f32 %v4027, %v4031
    %4035 = vrot.lane.b32.xlu0 %v4033, 64
    %v4036 = vpop.permute.xlu0 %4035
    %v4038 = vadd.f32 %v3948, %v4036
    %v4039 = vtanh.pop %v4038
    %v4040 = vsub.f32 1.0, %v4027
    %4042 = vrot.lane.b32.xlu0 %v4039, 96
    %v4043 = vpop.permute.xlu0 %4042
    %v4045 = vmul.f32 %v4040, %v4043
    %v4046 = vmul.f32 %v4027, %v3942
    %v4047 = vadd.f32 %v4045, %v4046
    %4049 = vrot.lane.b32.xlu0 %v4047, 96
    %v4050 = vpop.permute.xlu0 %4049
    %4052 = vst.msk [vmem:[#allocation4 + $0xa] sm:$0x3] %vm832, %v4050
    %v4053 = vld [vmem:[#allocation2 + $0xc] sm:$0x3]
    %v4054 = vsel %vm435, %v4050, 0
    %4056 = vmatprep.subr.mxu0 0.0
    %4057 = vmatpush1.msra.mxu0 %v3409
    %4058 = vmatprep.subr.mxu0 0.0
    %4059 = vmatpush1.msra.mxu0 %v3410
    %4060 = vmatprep.subr.mxu0 0.0
    %4061 = vmatpush1.msra.mxu0 %v3411
    %4062 = vmatprep.subr.mxu0 0.0
    %4063 = vmatpush1.msra.mxu0 %v3412
    %4064 = vmatprep.subr.mxu0 0.0
    %4065 = vmatpush1.msra.mxu0 0.0
    %4066 = vmatprep.subr.mxu0 0.0
    %4067 = vmatpush1.msra.mxu0 0.0
    %4068 = vmatprep.subr.mxu0 0.0
    %4069 = vmatpush1.msra.mxu0 0.0
    %4070 = vmatprep.subr.mxu0 0.0
    %4071 = vmatpush1.msra.mxu0 0.0
    %4072 = vmatprep.subr.mxu0 0.0
    %4073 = vmatpush1.msra.mxu0 0.0
    %4074 = vmatprep.subr.mxu0 0.0
    %4075 = vmatpush1.msra.mxu0 0.0
    %4076 = vmatprep.subr.mxu0 0.0
    %4077 = vmatpush1.msra.mxu0 0.0
    %4078 = vmatprep.subr.mxu0 0.0
    %4079 = vmatpush1.msra.mxu0 0.0
    %4080 = vmatprep.subr.mxu0 0.0
    %4081 = vmatpush1.msra.mxu0 0.0
    %4082 = vmatprep.subr.mxu0 0.0
    %4083 = vmatpush1.msra.mxu0 0.0
    %4084 = vmatprep.subr.mxu0 0.0
    %4085 = vmatpush1.msra.mxu0 0.0
    %4086 = vmatprep.subr.mxu0 0.0
    %4087 = vmatpush1.msra.mxu0 0.0
    %4088 = vmatprep.subr.mxu0 0.0
    %4089 = vmatpush1.msra.mxu0 0.0
    %4090 = vmatprep.subr.mxu0 0.0
    %4091 = vmatpush1.msra.mxu0 0.0
    %4092 = vmatprep.subr.mxu0 0.0
    %4093 = vmatpush1.msra.mxu0 0.0
    %4094 = vmatprep.subr.mxu0 0.0
    %4095 = vmatpush1.msra.mxu0 0.0
    %4096 = vmatprep.subr.mxu0 0.0
    %4097 = vmatpush1.msra.mxu0 0.0
    %4098 = vmatprep.subr.mxu0 0.0
    %4099 = vmatpush1.msra.mxu0 0.0
    %4100 = vmatprep.subr.mxu0 0.0
    %4101 = vmatpush1.msra.mxu0 0.0
    %4102 = vmatprep.subr.mxu0 0.0
    %4103 = vmatpush1.msra.mxu0 0.0
    %4104 = vmatprep.subr.mxu0 0.0
    %4105 = vmatpush1.msra.mxu0 0.0
    %4106 = vmatprep.subr.mxu0 0.0
    %4107 = vmatpush1.msra.mxu0 0.0
    %4108 = vmatprep.subr.mxu0 0.0
    %4109 = vmatpush1.msra.mxu0 0.0
    %4110 = vmatprep.subr.mxu0 0.0
    %4111 = vmatpush1.msra.mxu0 0.0
    %4112 = vmatprep.subr.mxu0 0.0
    %4113 = vmatpush1.msra.mxu0 0.0
    %4114 = vmatprep.subr.mxu0 0.0
    %4115 = vmatpush1.msra.mxu0 0.0
    %4116 = vmatprep.subr.mxu0 0.0
    %4117 = vmatpush1.msra.mxu0 0.0
    %4118 = vmatprep.subr.mxu0 0.0
    %4119 = vmatpush1.msra.mxu0 0.0
    %4120 = vmatprep.mubr.f32.mxu0 0.0
    %4121 = vmatmul.mubr.f32.gmra.mrb[0].mxu0 %v4054
    %v4122 = vpop.f32.mrb[0].mxu0
    %v4123 = vadd.f32 0.0, %v4122
    %v4124 = vpop.f32.mrb[0].mxu0
    %4125 = vdwg.mxu0
    %v4126 = vadd.f32 %v4053, %v4123
    %v4127 = vxor.u32 %v4126, 2147483648
    %v4128 = vmul.f32 %v4127, 1.442695
    %v4129 = vpow.pop %v4128
    %v4130 = vadd.f32 %v4129, 1.0
    %v4131 = vrcp.pop %v4130
    %v4132 = vmul.f32 1.0, %v4131
    %v4133 = vadd.f32 %v4123, %v3501
    %4135 = vrot.lane.b32.xlu0 %v4133, 64
    %v4136 = vpop.permute.xlu0 %4135
    %v4138 = vmul.f32 %v4132, %v4136
    %4140 = vrot.lane.b32.xlu0 %v4138, 64
    %v4141 = vpop.permute.xlu0 %4140
    %v4143 = vadd.f32 %v4053, %v4141
    %v4144 = vtanh.pop %v4143
    %v4145 = vsub.f32 1.0, %v4132
    %4147 = vrot.lane.b32.xlu0 %v4144, 96
    %v4148 = vpop.permute.xlu0 %4147
    %v4150 = vmul.f32 %v4145, %v4148
    %v4151 = vmul.f32 %v4132, %v4047
    %v4152 = vadd.f32 %v4150, %v4151
    %4154 = vrot.lane.b32.xlu0 %v4152, 96
    %v4155 = vpop.permute.xlu0 %4154
    %4157 = vst.msk [vmem:[#allocation4 + $0xc] sm:$0x3] %vm832, %v4155
    %v4158 = vld [vmem:[#allocation2 + $0xe] sm:$0x3]
    %v4159 = vsel %vm435, %v4155, 0
    %4161 = vmatprep.subr.mxu0 0.0
    %4162 = vmatpush1.msra.mxu0 %v3409
    %4163 = vmatprep.subr.mxu0 0.0
    %4164 = vmatpush1.msra.mxu0 %v3410
    %4165 = vmatprep.subr.mxu0 0.0
    %4166 = vmatpush1.msra.mxu0 %v3411
    %4167 = vmatprep.subr.mxu0 0.0
    %4168 = vmatpush1.msra.mxu0 %v3412
    %4169 = vmatprep.subr.mxu0 0.0
    %4170 = vmatpush1.msra.mxu0 0.0
    %4171 = vmatprep.subr.mxu0 0.0
    %4172 = vmatpush1.msra.mxu0 0.0
    %4173 = vmatprep.subr.mxu0 0.0
    %4174 = vmatpush1.msra.mxu0 0.0
    %4175 = vmatprep.subr.mxu0 0.0
    %4176 = vmatpush1.msra.mxu0 0.0
    %4177 = vmatprep.subr.mxu0 0.0
    %4178 = vmatpush1.msra.mxu0 0.0
    %4179 = vmatprep.subr.mxu0 0.0
    %4180 = vmatpush1.msra.mxu0 0.0
    %4181 = vmatprep.subr.mxu0 0.0
    %4182 = vmatpush1.msra.mxu0 0.0
    %4183 = vmatprep.subr.mxu0 0.0
    %4184 = vmatpush1.msra.mxu0 0.0
    %4185 = vmatprep.subr.mxu0 0.0
    %4186 = vmatpush1.msra.mxu0 0.0
    %4187 = vmatprep.subr.mxu0 0.0
    %4188 = vmatpush1.msra.mxu0 0.0
    %4189 = vmatprep.subr.mxu0 0.0
    %4190 = vmatpush1.msra.mxu0 0.0
    %4191 = vmatprep.subr.mxu0 0.0
    %4192 = vmatpush1.msra.mxu0 0.0
    %4193 = vmatprep.subr.mxu0 0.0
    %4194 = vmatpush1.msra.mxu0 0.0
    %4195 = vmatprep.subr.mxu0 0.0
    %4196 = vmatpush1.msra.mxu0 0.0
    %4197 = vmatprep.subr.mxu0 0.0
    %4198 = vmatpush1.msra.mxu0 0.0
    %4199 = vmatprep.subr.mxu0 0.0
    %4200 = vmatpush1.msra.mxu0 0.0
    %4201 = vmatprep.subr.mxu0 0.0
    %4202 = vmatpush1.msra.mxu0 0.0
    %4203 = vmatprep.subr.mxu0 0.0
    %4204 = vmatpush1.msra.mxu0 0.0
    %4205 = vmatprep.subr.mxu0 0.0
    %4206 = vmatpush1.msra.mxu0 0.0
    %4207 = vmatprep.subr.mxu0 0.0
    %4208 = vmatpush1.msra.mxu0 0.0
    %4209 = vmatprep.subr.mxu0 0.0
    %4210 = vmatpush1.msra.mxu0 0.0
    %4211 = vmatprep.subr.mxu0 0.0
    %4212 = vmatpush1.msra.mxu0 0.0
    %4213 = vmatprep.subr.mxu0 0.0
    %4214 = vmatpush1.msra.mxu0 0.0
    %4215 = vmatprep.subr.mxu0 0.0
    %4216 = vmatpush1.msra.mxu0 0.0
    %4217 = vmatprep.subr.mxu0 0.0
    %4218 = vmatpush1.msra.mxu0 0.0
    %4219 = vmatprep.subr.mxu0 0.0
    %4220 = vmatpush1.msra.mxu0 0.0
    %4221 = vmatprep.subr.mxu0 0.0
    %4222 = vmatpush1.msra.mxu0 0.0
    %4223 = vmatprep.subr.mxu0 0.0
    %4224 = vmatpush1.msra.mxu0 0.0
    %4225 = vmatprep.mubr.f32.mxu0 0.0
    %4226 = vmatmul.mubr.f32.gmra.mrb[0].mxu0 %v4159
    %v4227 = vpop.f32.mrb[0].mxu0
    %v4228 = vadd.f32 0.0, %v4227
    %v4229 = vpop.f32.mrb[0].mxu0
    %4230 = vdwg.mxu0
    %v4231 = vadd.f32 %v4158, %v4228
    %v4232 = vxor.u32 %v4231, 2147483648
    %v4233 = vmul.f32 %v4232, 1.442695
    %v4234 = vpow.pop %v4233
    %v4235 = vadd.f32 %v4234, 1.0
    %v4236 = vrcp.pop %v4235
    %v4237 = vmul.f32 1.0, %v4236
    %v4238 = vadd.f32 %v4228, %v3501
    %4240 = vrot.lane.b32.xlu0 %v4238, 64
    %v4241 = vpop.permute.xlu0 %4240
    %v4243 = vmul.f32 %v4237, %v4241
    %4245 = vrot.lane.b32.xlu0 %v4243, 64
    %v4246 = vpop.permute.xlu0 %4245
    %v4248 = vadd.f32 %v4158, %v4246
    %v4249 = vtanh.pop %v4248
    %v4250 = vsub.f32 1.0, %v4237
    %4252 = vrot.lane.b32.xlu0 %v4249, 96
    %v4253 = vpop.permute.xlu0 %4252
    %v4255 = vmul.f32 %v4250, %v4253
    %v4256 = vmul.f32 %v4237, %v4152
    %v4257 = vadd.f32 %v4255, %v4256
    %4259 = vrot.lane.b32.xlu0 %v4257, 96
    %v4260 = vpop.permute.xlu0 %4259
    %4262 = vst.msk [vmem:[#allocation4 + $0xe] sm:$0x3] %vm832, %v4260
    %v4263 = vld [vmem:[#allocation4] sm:$0xff]
    %v4264 = vld [vmem:[#allocation4 + $0x8] sm:$0xff]
    %v4265 = vld [vmem:[%s24] sm:$0xff]
    %v4266 = vld [vmem:[%s24 + $0x8] sm:$0xff]
    %v4267 = vld [vmem:[%s24 + $0x10] sm:$0xff]
    %v4268 = vld [vmem:[%s24 + $0x18] sm:$0xff]
    %v4269 = vld [vmem:[%s25] sm:$0x1]
    %v4271 = vlaneseq
    %v4272 = vshrl.u32 %v4271, 7
    %v4273 = vsub.s32 0, %v4272
    %v4274 = vrot.slane %v4269, %v4273
    %v4277 = vsel %vm435, %v4263, 0
    %v4280 = vsel %vm435, %v4264, 0
    %4282 = vmatprep.subr.mxu0 0.0
    %4283 = vmatpush1.msra.mxu0 %v4265
    %4284 = vmatprep.subr.mxu0 0.0
    %4285 = vmatpush1.msra.mxu0 %v4266
    %4286 = vmatprep.subr.mxu0 0.0
    %4287 = vmatpush1.msra.mxu0 %v4267
    %4288 = vmatprep.subr.mxu0 0.0
    %4289 = vmatpush1.msra.mxu0 %v4268
    %4290 = vmatprep.subr.mxu0 0.0
    %4291 = vmatpush1.msra.mxu0 0.0
    %4292 = vmatprep.subr.mxu0 0.0
    %4293 = vmatpush1.msra.mxu0 0.0
    %4294 = vmatprep.subr.mxu0 0.0
    %4295 = vmatpush1.msra.mxu0 0.0
    %4296 = vmatprep.subr.mxu0 0.0
    %4297 = vmatpush1.msra.mxu0 0.0
    %4298 = vmatprep.subr.mxu0 0.0
    %4299 = vmatpush1.msra.mxu0 0.0
    %4300 = vmatprep.subr.mxu0 0.0
    %4301 = vmatpush1.msra.mxu0 0.0
    %4302 = vmatprep.subr.mxu0 0.0
    %4303 = vmatpush1.msra.mxu0 0.0
    %4304 = vmatprep.subr.mxu0 0.0
    %4305 = vmatpush1.msra.mxu0 0.0
    %4306 = vmatprep.subr.mxu0 0.0
    %4307 = vmatpush1.msra.mxu0 0.0
    %4308 = vmatprep.subr.mxu0 0.0
    %4309 = vmatpush1.msra.mxu0 0.0
    %4310 = vmatprep.subr.mxu0 0.0
    %4311 = vmatpush1.msra.mxu0 0.0
    %4312 = vmatprep.subr.mxu0 0.0
    %4313 = vmatpush1.msra.mxu0 0.0
    %4314 = vmatprep.subr.mxu0 0.0
    %4315 = vmatpush1.msra.mxu0 0.0
    %4316 = vmatprep.subr.mxu0 0.0
    %4317 = vmatpush1.msra.mxu0 0.0
    %4318 = vmatprep.subr.mxu0 0.0
    %4319 = vmatpush1.msra.mxu0 0.0
    %4320 = vmatprep.subr.mxu0 0.0
    %4321 = vmatpush1.msra.mxu0 0.0
    %4322 = vmatprep.subr.mxu0 0.0
    %4323 = vmatpush1.msra.mxu0 0.0
    %4324 = vmatprep.subr.mxu0 0.0
    %4325 = vmatpush1.msra.mxu0 0.0
    %4326 = vmatprep.subr.mxu0 0.0
    %4327 = vmatpush1.msra.mxu0 0.0
    %4328 = vmatprep.subr.mxu0 0.0
    %4329 = vmatpush1.msra.mxu0 0.0
    %4330 = vmatprep.subr.mxu0 0.0
    %4331 = vmatpush1.msra.mxu0 0.0
    %4332 = vmatprep.subr.mxu0 0.0
    %4333 = vmatpush1.msra.mxu0 0.0
    %4334 = vmatprep.subr.mxu0 0.0
    %4335 = vmatpush1.msra.mxu0 0.0
    %4336 = vmatprep.subr.mxu0 0.0
    %4337 = vmatpush1.msra.mxu0 0.0
    %4338 = vmatprep.subr.mxu0 0.0
    %4339 = vmatpush1.msra.mxu0 0.0
    %4340 = vmatprep.subr.mxu0 0.0
    %4341 = vmatpush1.msra.mxu0 0.0
    %4342 = vmatprep.subr.mxu0 0.0
    %4343 = vmatpush1.msra.mxu0 0.0
    %4344 = vmatprep.subr.mxu0 0.0
    %4345 = vmatpush1.msra.mxu0 0.0
    %4346 = vmatprep.mubr.f32.mxu0 0.0
    %4347 = vmatmul.mubr.f32.gmra.mrb[0].mxu0 %v4277
    %v4348 = vpop.f32.mrb[0].mxu0
    %v4349 = vadd.f32 %v4274, %v4348
    %v4350 = vpop.f32.mrb[0].mxu0
    %4351 = vmatprep.mubr.f32.mxu0 0.0
    %4352 = vmatmul.mubr.f32.gmra.mrb[0].mxu0 %v4280
    %v4353 = vpop.f32.mrb[0].mxu0
    %v4354 = vadd.f32 %v4274, %v4353
    %v4355 = vpop.f32.mrb[0].mxu0
    %4356 = vdwg.mxu0
    %vm4357 = vcmask 80896
    %v4358 = vsel %vm4357, %v4349, -inf
    %4359 = vmax.xlane.f32.xlu0 %v4358
    %v4360 = vpop.xlane.xlu0 %4359
    %v4361 = vsel %vm4357, %v4354, -inf
    %4362 = vmax.xlane.f32.xlu0 %v4361
    %v4363 = vpop.xlane.xlu0 %4362
    %v4364 = vsub.f32 %v4349, %v4360
    %v4365 = vsub.f32 %v4354, %v4363
    %v4366 = vmul.f32 %v4364, 1.442695
    %v4367 = vpow.pop %v4366
    %v4368 = vmul.f32 %v4365, 1.442695
    %v4369 = vpow.pop %v4368
    %v4370 = vsel %vm4357, %v4367, 0.0
    %4371 = vadd.xlane.f32.xlu0 %v4370
    %v4372 = vpop.xlane.xlu0 %4371
    %v4373 = vsel %vm4357, %v4369, 0.0
    %4374 = vadd.xlane.f32.xlu0 %v4373
    %v4375 = vpop.xlane.xlu0 %4374
    %v4376 = vrcp.pop %v4372
    %v4377 = vrcp.pop %v4375
    %v4378 = vmul.f32 %v4367, %v4376
    %v4379 = vmul.f32 %v4369, %v4377
    %vm4380 = vcmask 130128
    %v4381 = vsel %vm4380, %v4349, -inf
    %4382 = vmax.xlane.f32.xlu0 %v4381
    %v4383 = vpop.xlane.xlu0 %4382
    %v4384 = vsel %vm4380, %v4354, -inf
    %4385 = vmax.xlane.f32.xlu0 %v4384
    %v4386 = vpop.xlane.xlu0 %4385
    %v4387 = vsub.f32 %v4349, %v4383
    %v4388 = vsub.f32 %v4354, %v4386
    %v4389 = vmul.f32 %v4387, 1.442695
    %v4390 = vpow.pop %v4389
    %v4391 = vmul.f32 %v4388, 1.442695
    %v4392 = vpow.pop %v4391
    %4395 = vrot.lane.b32.xlu0 %v4390, 118
    %v4396 = vpop.permute.xlu0 %4395
    %4397 = vrot.lane.b32.xlu0 %v4392, 118
    %v4398 = vpop.permute.xlu0 %4397
    %vm4401 = vcmask 48128
    %v4402 = vsel %vm4401, %v4396, 0.0
    %4403 = vadd.xlane.f32.xlu0 %v4402
    %v4404 = vpop.xlane.xlu0 %4403
    %v4405 = vsel %vm4401, %v4398, 0.0
    %4406 = vadd.xlane.f32.xlu0 %v4405
    %v4407 = vpop.xlane.xlu0 %4406
    %v4408 = vrcp.pop %v4404
    %v4409 = vrcp.pop %v4407
    %v4410 = vmul.f32 %v4390, %v4408
    %v4411 = vmul.f32 %v4392, %v4409
    %4412 = vst.msk [vmem:[#allocation32] sm:$0xff] %vm4357, %v4378
    %4413 = vst.msk [vmem:[#allocation32 + $0x8] sm:$0xff] %vm4357, %v4379
    %4414 = vst.msk [vmem:[#allocation32] sm:$0xff] %vm4380, %v4410
    %4415 = vst.msk [vmem:[#allocation32 + $0x8] sm:$0xff] %vm4380, %v4411
    // Predicated region
    $region174: #{tpu_custom_call.1} parent=1 // pred_check
      _
    $region175: #{tpu_custom_call.1} parent=1 // pred_check_branch
      %4417 = sbr.rel (0) target = $region177
    $region176: #{tpu_custom_call.1} parent=1 // pred_region
      %s4419 = ssub.s32 256, 256
      %4420 = vsyncadd [#allocation7], %s4419
      %s4421 = sshll.u32 [#allocation32], 4
      %s4422 = int_to_ptr.vmem [resolvable:$true] %s4421
      %4427 = dma.vmem_to_hbm [thread:$0]  %s4422, 256, %s26, [#allocation7], 128, 128, 8
    $region177: #{tpu_custom_call.1} parent=1 // pred_fallthru
      _
    // Predicated region
    $region178: #{tpu_custom_call.1} parent=1 // pred_check
      _
    $region179: #{tpu_custom_call.1} parent=1 // pred_check_branch
      %4429 = sbr.rel (0) target = $region181
    $region180: #{tpu_custom_call.1} parent=1 // pred_region
      %s4431 = ssub.s32 256, 256
      %4432 = vsyncadd [#allocation34], %s4431
      %s4433 = sshll.u32 [#allocation33], 4
      %s4434 = int_to_ptr.vmem [resolvable:$true] %s4433
      %4439 = dma.vmem_to_hbm [thread:$0]  %s4434, 256, %s27, [#allocation34], 128, 128, 8
    $region181: #{tpu_custom_call.1} parent=1 // pred_fallthru
      _
    // Predicated region
    $region182: #{tpu_custom_call.1} parent=1 // pred_check
      _
    $region183: #{tpu_custom_call.1} parent=1 // pred_check_branch
      %4441 = sbr.rel (0) target = $region185
    $region184: #{tpu_custom_call.1} parent=1 // pred_region
      %4442 = dma.done [#allocation7], 256
    $region185: #{tpu_custom_call.1} parent=1 // pred_fallthru
      _
    // Predicated region
    $region186: #{tpu_custom_call.1} parent=1 // pred_check
      _
    $region187: #{tpu_custom_call.1} parent=1 // pred_check_branch
      %4444 = sbr.rel (0) target = $region189
    $region188: #{tpu_custom_call.1} parent=1 // pred_region
      %4445 = dma.done [#allocation34], 256
    $region189: #{tpu_custom_call.1} parent=1 // pred_fallthru
      _
    %4446 = vsyncpa [#allocation6], 1
    %4447 = vsyncpa [#allocation9], 1
    %4448 = vsyncpa [#allocation12], 1
    %4449 = vsyncpa [#allocation15], 1
    %4450 = vsyncpa [#allocation18], 1
    %4451 = vsyncpa [#allocation21], 1
    %4452 = vsyncpa [#allocation24], 1
    %4453 = vsyncpa [#allocation27], 1
    %4454 = vsyncpa [#allocation30], 1
    %4455 = vsyncpa [#allocation7], 1
    %4456 = vsyncpa [#allocation34], 1

</llo_original>
